<compile_context>
chip_gen: v6e
topology: v6e:2x2x1
jax: 0.10.0
libtpu: 0.0.40
codegen_flags: <defaults>
</compile_context>

<pallas_src>
import functools

import numpy as np
import jax
import jax.numpy as jnp
from jax import lax
from jax.experimental import pallas as pl
from jax.experimental.pallas import tpu as pltpu


# ---------------------------------------------------------------------------
# Weight construction (weights_init): separable Gaussian impulse response.
# ---------------------------------------------------------------------------
def _gaussian_impulse_response_1d(kernel_size, sigma, truncate=4.0):
    """1-D factor g of scipy.ndimage.gaussian_filter(impulse_KxK, sigma).

    gaussian_filter applies two correlate1d passes (mode='reflect', half-sample
    symmetric), so the 2-D impulse response is exactly g ⊗ g with g the 1-D
    response of a length-K delta computed here (float64).
    """
    radius = int(truncate * float(sigma) + 0.5)
    offs = np.arange(-radius, radius + 1)
    w1 = np.exp(-0.5 * (offs / float(sigma)) ** 2)
    w1 /= w1.sum()

    L = kernel_size
    center = L // 2
    g = np.zeros(L, np.float64)
    for i in range(L):
        idx = i + offs
        idx = np.mod(idx, 2 * L)
        idx = np.where(idx < L, idx, 2 * L - 1 - idx)   # scipy 'reflect': d c b a | a b c d
        g[i] = w1[idx == center].sum()
    return g


def make_gaussian_layer_weight(in_channels, out_channels, kernel_size, sigma, groups=8):
    """weights_init: f.data.copy_(k) broadcasts the (K,K) Gaussian over the conv weight."""
    g = _gaussian_impulse_response_1d(kernel_size, sigma)
    k = np.outer(g, g).astype(np.float32)
    w = np.broadcast_to(
        k, (out_channels, in_channels // groups, kernel_size, kernel_size)).copy()
    return jnp.asarray(w)


def _reflect_blur_matrix(n, pad, g):
    """M (n,n) such that M @ x == 1-D 'VALID' correlation of ReflectionPad1d(pad)(x) with g.

    The reflection boundary (nn.ReflectionPad2d / jnp.pad mode='reflect', edge NOT
    repeated) is folded into the matrix, so no explicit padding is needed anywhere.
    """
    K = len(g)
    M = np.zeros((n, n), np.float64)
    for y in range(n):
        for t in range(K):
            s = y + t - pad
            while s < 0 or s >= n:          # whole-sample reflection (period 2(n-1))
                if s < 0:
                    s = -s
                if s >= n:
                    s = 2 * (n - 1) - s
            M[y, s] += g[t]
    return M


# ---------------------------------------------------------------------------
# Pallas kernel: per grid step, blur a (channel_tile, H, W) stack of planes on the MXU.
# ---------------------------------------------------------------------------
def _blur_mxu_kernel(a_ref, bt_ref, x_ref, o_ref, *, ct):
    """out[c] = A @ x[c] @ B^T  ==  reflection-padded KxK Gaussian conv of plane c.

    a_ref : VMEM (H, H) f32   vertical blur matrix (reflection pad baked in)
    bt_ref: VMEM (W, W) f32   transposed horizontal blur matrix
    x_ref : VMEM (ct, H, W)   input planes of this (image, channel-tile) block
    o_ref : VMEM (ct, H, W)   output planes
    """
    a = a_ref[...]
    bt = bt_ref[...]
    for c in range(ct):                                   # small, unrolled; 2 MXU dots each
        xc = x_ref[c].astype(jnp.float32)                 # (H, W)
        y1 = jnp.dot(xc, bt, preferred_element_type=jnp.float32)   # horizontal pass
        yc = jnp.dot(a, y1, preferred_element_type=jnp.float32)    # vertical pass
        o_ref[c] = yc.astype(o_ref.dtype)


def _pick_channel_tile(groups, n_batch, H, W, itemsize, vmem_cap):
    """Largest divisor-of-groups channel tile that fits the VMEM budget, with >=2 grid steps."""
    budget = int(0.5 * vmem_cap)
    fixed = 2 * (H * H + W * W) * 4 + (2 << 20)           # A, Bt (x2 buffers) + headroom
    ct = 1
    for cand in range(groups, 0, -1):
        if groups % cand:
            continue
        need = fixed + 4 * cand * H * W * itemsize + 2 * cand * H * W * 4
        if need <= budget:
            ct = cand
            break
    # v7x has 2 TensorCores: keep at least 2 "parallel" grid steps when possible.
    if n_batch * (groups // ct) < 2 and groups > 1:
        for cand in range(ct - 1, 0, -1):
            if groups % cand == 0:
                ct = cand
                break
    return ct


def gaussian_layer_pallas(x_nchw, *, out_channels, kernel_size, sigma, groups=8,
                          channel_tile=None):
    """Forward pass of GaussianLayer: ReflectionPad2d(K//2) + grouped Gaussian conv (bias=None).

    weights_init broadcasts one (K,K) Gaussian to every filter plane, so each output
    channel of a group is the blur of the sum of that group's input channels; the
    blur + reflection pad are computed as  A @ X @ B^T  on the MXU.
    """
    N, Cin, H, W = x_nchw.shape
    K = kernel_size
    pad = K // 2
    assert Cin % groups == 0 and out_channels % groups == 0
    assert pad < H and pad < W, "ReflectionPad2d requires padding < spatial size"
    cpg_in = Cin // groups
    cpg_out = out_channels // groups

    # Depthwise in the shipped config (cpg_in == 1); otherwise sum the group's inputs.
    if cpg_in > 1:
        xg = x_nchw.reshape(N, groups, cpg_in, H, W).sum(axis=2)
    else:
        xg = x_nchw                                        # (N, groups, H, W)

    # Trace-time constants: 1-D Gaussian factor and per-axis blur matrices (f64 -> f32).
    g = _gaussian_impulse_response_1d(K, sigma)
    A = jnp.asarray(_reflect_blur_matrix(H, pad, g), jnp.float32)        # (H, H)
    Bt = jnp.asarray(_reflect_blur_matrix(W, pad, g).T, jnp.float32)     # (W, W)

    itemsize = jnp.dtype(x_nchw.dtype).itemsize
    try:
        vmem_cap = int(pltpu.get_tpu_info().vmem_capacity_bytes)
    except Exception:
        vmem_cap = 64 << 20                                # v7x floor: always safe

    if channel_tile is None:
        channel_tile = _pick_channel_tile(groups, N, H, W, itemsize, vmem_cap)
    ct = int(channel_tile)
    assert groups % ct == 0

    # Double-buffered in/out blocks + blur matrices + f32 intermediates + headroom.
    need = (4 * ct * H * W * itemsize + 2 * (H * H + W * W) * 4
            + 2 * ct * H * W * 4 + (2 << 20))
    vmem_limit = int(min(max(need, 16 << 20), int(0.75 * vmem_cap)))

    yg = pl.pallas_call(
        functools.partial(_blur_mxu_kernel, ct=ct),
        out_shape=jax.ShapeDtypeStruct((N, groups, H, W), x_nchw.dtype),
        grid=(N, groups // ct),
        in_specs=[
            pl.BlockSpec((H, H), lambda n, c: (0, 0)),                 # A (resident)
            pl.BlockSpec((W, W), lambda n, c: (0, 0)),                 # B^T (resident)
            pl.BlockSpec((None, ct, H, W), lambda n, c: (n, c, 0, 0)),  # input planes
        ],
        out_specs=pl.BlockSpec((None, ct, H, W), lambda n, c: (n, c, 0, 0)),
        compiler_params=pltpu.CompilerParams(
            dimension_semantics=("parallel", "parallel"),
            vmem_limit_bytes=vmem_limit),
    )(A, Bt, xg)

    if cpg_out > 1:
        yg = jnp.repeat(yg, cpg_out, axis=1)               # identical weights per group
    return yg


# ---------------------------------------------------------------------------
# Pure-JAX reference (independent formulation: explicit pad + grouped conv).
# ---------------------------------------------------------------------------
def gaussian_layer_reference(x_nchw, weight, *, kernel_size, groups=8):
    pad = kernel_size // 2
    x_pad = jnp.pad(x_nchw, ((0, 0), (0, 0), (pad, pad), (pad, pad)), mode="reflect")
    return lax.conv_general_dilated(
        x_pad, weight, window_strides=(1, 1), padding="VALID",
        feature_group_count=groups,
        dimension_numbers=("NCHW", "OIHW", "NCHW"),
        precision=lax.Precision.HIGHEST)


if __name__ == "__main__":
    # GaussianLayer.get_instance() config: in=out=8, kernel_size=13, sigma=6, groups=8.
    # Spatial size 128 keeps the demo small but lane-dense / MXU-tile aligned.
    N, C, H, W = 2, 8, 128, 128
    K, SIGMA, G = 13, 6, 8

    x = jax.random.normal(jax.random.PRNGKey(0), (N, C, H, W), dtype=jnp.float32)
    weight = make_gaussian_layer_weight(C, C, K, SIGMA, groups=G)

    out = jax.block_until_ready(
        gaussian_layer_pallas(x, out_channels=C, kernel_size=K, sigma=SIGMA, groups=G))
    ref = jax.block_until_ready(
        gaussian_layer_reference(x, weight, kernel_size=K, groups=G))

    assert out.shape == (N, C, H, W), out.shape
    max_err = float(jnp.max(jnp.abs(out - ref)))
    assert jnp.allclose(out, ref, atol=1e-4, rtol=1e-4), max_err
    print("KERNEL_OK")
</pallas_src>

<mosaic_0001>
module attributes {stable_mosaic.version = 11 : i64} {
  func.func @_blur_mxu_kernel(%arg0: i32, %arg1: i32, %arg2: memref<128x128xf32, #tpu.memory_space<vmem>>, %arg3: memref<128x128xf32, #tpu.memory_space<vmem>>, %arg4: memref<1x8x128x128xf32, #tpu.memory_space<vmem>>, %arg5: memref<1x8x128x128xf32, #tpu.memory_space<vmem>>) attributes {dimension_semantics = [#tpu.dimension_semantics<parallel>, #tpu.dimension_semantics<parallel>], iteration_bounds = array<i64: 2, 1>, scalar_prefetch = 0 : i64, scratch_operands = 0 : i64, tpu.core_type = #tpu.core_type<tc>, window_params = [{pipeline_mode = #tpu.pipeline_mode<synchronous>, transform_indices = @transform_0, window_bounds = array<i64: 128, 128>}, {pipeline_mode = #tpu.pipeline_mode<synchronous>, transform_indices = @transform_1, window_bounds = array<i64: 128, 128>}, {transform_indices = @transform_2, window_bounds = array<i64: 1, 8, 128, 128>}, {transform_indices = @transform_3, window_bounds = array<i64: 1, 8, 128, 128>}]} {
    %c0 = arith.constant 0 : index
    %c0_0 = arith.constant 0 : index
    %0 = vector.load %arg2[%c0, %c0_0] : memref<128x128xf32, #tpu.memory_space<vmem>>, vector<128x128xf32>
    %c0_1 = arith.constant 0 : index
    %c0_2 = arith.constant 0 : index
    %1 = vector.load %arg3[%c0_1, %c0_2] : memref<128x128xf32, #tpu.memory_space<vmem>>, vector<128x128xf32>
    %c0_3 = arith.constant 0 : index
    %c0_4 = arith.constant 0 : index
    %c0_5 = arith.constant 0 : index
    %c0_6 = arith.constant 0 : index
    %2 = vector.load %arg4[%c0_3, %c0_4, %c0_5, %c0_6] : memref<1x8x128x128xf32, #tpu.memory_space<vmem>>, vector<1x1x128x128xf32>
    %3 = vector.shape_cast %2 : vector<1x1x128x128xf32> to vector<128x128xf32>
    %cst = arith.constant dense<0.000000e+00> : vector<128x128xf32>
    %4 = tpu.matmul %3, %1, %cst {dimension_numbers = #tpu.dot_dimension_numbers<[1], [0], [0], [1], [0, 0, 1, 1], [], []>} : vector<128x128xf32>, vector<128x128xf32>, vector<128x128xf32> -> vector<128x128xf32>
    %cst_7 = arith.constant dense<0.000000e+00> : vector<128x128xf32>
    %5 = tpu.matmul %0, %4, %cst_7 {dimension_numbers = #tpu.dot_dimension_numbers<[1], [0], [0], [1], [0, 0, 1, 1], [], []>} : vector<128x128xf32>, vector<128x128xf32>, vector<128x128xf32> -> vector<128x128xf32>
    %c0_8 = arith.constant 0 : index
    %c0_9 = arith.constant 0 : index
    %c0_10 = arith.constant 0 : index
    %c0_11 = arith.constant 0 : index
    %6 = vector.load %arg5[%c0_8, %c0_9, %c0_10, %c0_11] : memref<1x8x128x128xf32, #tpu.memory_space<vmem>>, vector<1x1x128x128xf32>
    %7 = vector.shape_cast %6 : vector<1x1x128x128xf32> to vector<128x128xf32>
    %8 = vector.shape_cast %5 : vector<128x128xf32> to vector<1x1x128x128xf32>
    tpu.vector_store %arg5[%c0_8, %c0_9, %c0_10, %c0_11], %8 {strides = array<i32>} : memref<1x8x128x128xf32, #tpu.memory_space<vmem>>, vector<1x1x128x128xf32>,
    %c0_12 = arith.constant 0 : index
    %c1 = arith.constant 1 : index
    %c0_13 = arith.constant 0 : index
    %c0_14 = arith.constant 0 : index
    %9 = vector.load %arg4[%c0_12, %c1, %c0_13, %c0_14] : memref<1x8x128x128xf32, #tpu.memory_space<vmem>>, vector<1x1x128x128xf32>
    %10 = vector.shape_cast %9 : vector<1x1x128x128xf32> to vector<128x128xf32>
    %cst_15 = arith.constant dense<0.000000e+00> : vector<128x128xf32>
    %11 = tpu.matmul %10, %1, %cst_15 {dimension_numbers = #tpu.dot_dimension_numbers<[1], [0], [0], [1], [0, 0, 1, 1], [], []>} : vector<128x128xf32>, vector<128x128xf32>, vector<128x128xf32> -> vector<128x128xf32>
    %cst_16 = arith.constant dense<0.000000e+00> : vector<128x128xf32>
    %12 = tpu.matmul %0, %11, %cst_16 {dimension_numbers = #tpu.dot_dimension_numbers<[1], [0], [0], [1], [0, 0, 1, 1], [], []>} : vector<128x128xf32>, vector<128x128xf32>, vector<128x128xf32> -> vector<128x128xf32>
    %c0_17 = arith.constant 0 : index
    %c1_18 = arith.constant 1 : index
    %c0_19 = arith.constant 0 : index
    %c0_20 = arith.constant 0 : index
    %13 = vector.load %arg5[%c0_17, %c1_18, %c0_19, %c0_20] : memref<1x8x128x128xf32, #tpu.memory_space<vmem>>, vector<1x1x128x128xf32>
    %14 = vector.shape_cast %13 : vector<1x1x128x128xf32> to vector<128x128xf32>
    %15 = vector.shape_cast %12 : vector<128x128xf32> to vector<1x1x128x128xf32>
    tpu.vector_store %arg5[%c0_17, %c1_18, %c0_19, %c0_20], %15 {strides = array<i32>} : memref<1x8x128x128xf32, #tpu.memory_space<vmem>>, vector<1x1x128x128xf32>,
    %c0_21 = arith.constant 0 : index
    %c2 = arith.constant 2 : index
    %c0_22 = arith.constant 0 : index
    %c0_23 = arith.constant 0 : index
    %16 = vector.load %arg4[%c0_21, %c2, %c0_22, %c0_23] : memref<1x8x128x128xf32, #tpu.memory_space<vmem>>, vector<1x1x128x128xf32>
    %17 = vector.shape_cast %16 : vector<1x1x128x128xf32> to vector<128x128xf32>
    %cst_24 = arith.constant dense<0.000000e+00> : vector<128x128xf32>
    %18 = tpu.matmul %17, %1, %cst_24 {dimension_numbers = #tpu.dot_dimension_numbers<[1], [0], [0], [1], [0, 0, 1, 1], [], []>} : vector<128x128xf32>, vector<128x128xf32>, vector<128x128xf32> -> vector<128x128xf32>
    %cst_25 = arith.constant dense<0.000000e+00> : vector<128x128xf32>
    %19 = tpu.matmul %0, %18, %cst_25 {dimension_numbers = #tpu.dot_dimension_numbers<[1], [0], [0], [1], [0, 0, 1, 1], [], []>} : vector<128x128xf32>, vector<128x128xf32>, vector<128x128xf32> -> vector<128x128xf32>
    %c0_26 = arith.constant 0 : index
    %c2_27 = arith.constant 2 : index
    %c0_28 = arith.constant 0 : index
    %c0_29 = arith.constant 0 : index
    %20 = vector.load %arg5[%c0_26, %c2_27, %c0_28, %c0_29] : memref<1x8x128x128xf32, #tpu.memory_space<vmem>>, vector<1x1x128x128xf32>
    %21 = vector.shape_cast %20 : vector<1x1x128x128xf32> to vector<128x128xf32>
    %22 = vector.shape_cast %19 : vector<128x128xf32> to vector<1x1x128x128xf32>
    tpu.vector_store %arg5[%c0_26, %c2_27, %c0_28, %c0_29], %22 {strides = array<i32>} : memref<1x8x128x128xf32, #tpu.memory_space<vmem>>, vector<1x1x128x128xf32>,
    %c0_30 = arith.constant 0 : index
    %c3 = arith.constant 3 : index
    %c0_31 = arith.constant 0 : index
    %c0_32 = arith.constant 0 : index
    %23 = vector.load %arg4[%c0_30, %c3, %c0_31, %c0_32] : memref<1x8x128x128xf32, #tpu.memory_space<vmem>>, vector<1x1x128x128xf32>
    %24 = vector.shape_cast %23 : vector<1x1x128x128xf32> to vector<128x128xf32>
    %cst_33 = arith.constant dense<0.000000e+00> : vector<128x128xf32>
    %25 = tpu.matmul %24, %1, %cst_33 {dimension_numbers = #tpu.dot_dimension_numbers<[1], [0], [0], [1], [0, 0, 1, 1], [], []>} : vector<128x128xf32>, vector<128x128xf32>, vector<128x128xf32> -> vector<128x128xf32>
    %cst_34 = arith.constant dense<0.000000e+00> : vector<128x128xf32>
    %26 = tpu.matmul %0, %25, %cst_34 {dimension_numbers = #tpu.dot_dimension_numbers<[1], [0], [0], [1], [0, 0, 1, 1], [], []>} : vector<128x128xf32>, vector<128x128xf32>, vector<128x128xf32> -> vector<128x128xf32>
    %c0_35 = arith.constant 0 : index
    %c3_36 = arith.constant 3 : index
    %c0_37 = arith.constant 0 : index
    %c0_38 = arith.constant 0 : index
    %27 = vector.load %arg5[%c0_35, %c3_36, %c0_37, %c0_38] : memref<1x8x128x128xf32, #tpu.memory_space<vmem>>, vector<1x1x128x128xf32>
    %28 = vector.shape_cast %27 : vector<1x1x128x128xf32> to vector<128x128xf32>
    %29 = vector.shape_cast %26 : vector<128x128xf32> to vector<1x1x128x128xf32>
    tpu.vector_store %arg5[%c0_35, %c3_36, %c0_37, %c0_38], %29 {strides = array<i32>} : memref<1x8x128x128xf32, #tpu.memory_space<vmem>>, vector<1x1x128x128xf32>,
    %c0_39 = arith.constant 0 : index
    %c4 = arith.constant 4 : index
    %c0_40 = arith.constant 0 : index
    %c0_41 = arith.constant 0 : index
    %30 = vector.load %arg4[%c0_39, %c4, %c0_40, %c0_41] : memref<1x8x128x128xf32, #tpu.memory_space<vmem>>, vector<1x1x128x128xf32>
    %31 = vector.shape_cast %30 : vector<1x1x128x128xf32> to vector<128x128xf32>
    %cst_42 = arith.constant dense<0.000000e+00> : vector<128x128xf32>
    %32 = tpu.matmul %31, %1, %cst_42 {dimension_numbers = #tpu.dot_dimension_numbers<[1], [0], [0], [1], [0, 0, 1, 1], [], []>} : vector<128x128xf32>, vector<128x128xf32>, vector<128x128xf32> -> vector<128x128xf32>
    %cst_43 = arith.constant dense<0.000000e+00> : vector<128x128xf32>
    %33 = tpu.matmul %0, %32, %cst_43 {dimension_numbers = #tpu.dot_dimension_numbers<[1], [0], [0], [1], [0, 0, 1, 1], [], []>} : vector<128x128xf32>, vector<128x128xf32>, vector<128x128xf32> -> vector<128x128xf32>
    %c0_44 = arith.constant 0 : index
    %c4_45 = arith.constant 4 : index
    %c0_46 = arith.constant 0 : index
    %c0_47 = arith.constant 0 : index
    %34 = vector.load %arg5[%c0_44, %c4_45, %c0_46, %c0_47] : memref<1x8x128x128xf32, #tpu.memory_space<vmem>>, vector<1x1x128x128xf32>
    %35 = vector.shape_cast %34 : vector<1x1x128x128xf32> to vector<128x128xf32>
    %36 = vector.shape_cast %33 : vector<128x128xf32> to vector<1x1x128x128xf32>
    tpu.vector_store %arg5[%c0_44, %c4_45, %c0_46, %c0_47], %36 {strides = array<i32>} : memref<1x8x128x128xf32, #tpu.memory_space<vmem>>, vector<1x1x128x128xf32>,
    %c0_48 = arith.constant 0 : index
    %c5 = arith.constant 5 : index
    %c0_49 = arith.constant 0 : index
    %c0_50 = arith.constant 0 : index
    %37 = vector.load %arg4[%c0_48, %c5, %c0_49, %c0_50] : memref<1x8x128x128xf32, #tpu.memory_space<vmem>>, vector<1x1x128x128xf32>
    %38 = vector.shape_cast %37 : vector<1x1x128x128xf32> to vector<128x128xf32>
    %cst_51 = arith.constant dense<0.000000e+00> : vector<128x128xf32>
    %39 = tpu.matmul %38, %1, %cst_51 {dimension_numbers = #tpu.dot_dimension_numbers<[1], [0], [0], [1], [0, 0, 1, 1], [], []>} : vector<128x128xf32>, vector<128x128xf32>, vector<128x128xf32> -> vector<128x128xf32>
    %cst_52 = arith.constant dense<0.000000e+00> : vector<128x128xf32>
    %40 = tpu.matmul %0, %39, %cst_52 {dimension_numbers = #tpu.dot_dimension_numbers<[1], [0], [0], [1], [0, 0, 1, 1], [], []>} : vector<128x128xf32>, vector<128x128xf32>, vector<128x128xf32> -> vector<128x128xf32>
    %c0_53 = arith.constant 0 : index
    %c5_54 = arith.constant 5 : index
    %c0_55 = arith.constant 0 : index
    %c0_56 = arith.constant 0 : index
    %41 = vector.load %arg5[%c0_53, %c5_54, %c0_55, %c0_56] : memref<1x8x128x128xf32, #tpu.memory_space<vmem>>, vector<1x1x128x128xf32>
    %42 = vector.shape_cast %41 : vector<1x1x128x128xf32> to vector<128x128xf32>
    %43 = vector.shape_cast %40 : vector<128x128xf32> to vector<1x1x128x128xf32>
    tpu.vector_store %arg5[%c0_53, %c5_54, %c0_55, %c0_56], %43 {strides = array<i32>} : memref<1x8x128x128xf32, #tpu.memory_space<vmem>>, vector<1x1x128x128xf32>,
    %c0_57 = arith.constant 0 : index
    %c6 = arith.constant 6 : index
    %c0_58 = arith.constant 0 : index
    %c0_59 = arith.constant 0 : index
    %44 = vector.load %arg4[%c0_57, %c6, %c0_58, %c0_59] : memref<1x8x128x128xf32, #tpu.memory_space<vmem>>, vector<1x1x128x128xf32>
    %45 = vector.shape_cast %44 : vector<1x1x128x128xf32> to vector<128x128xf32>
    %cst_60 = arith.constant dense<0.000000e+00> : vector<128x128xf32>
    %46 = tpu.matmul %45, %1, %cst_60 {dimension_numbers = #tpu.dot_dimension_numbers<[1], [0], [0], [1], [0, 0, 1, 1], [], []>} : vector<128x128xf32>, vector<128x128xf32>, vector<128x128xf32> -> vector<128x128xf32>
    %cst_61 = arith.constant dense<0.000000e+00> : vector<128x128xf32>
    %47 = tpu.matmul %0, %46, %cst_61 {dimension_numbers = #tpu.dot_dimension_numbers<[1], [0], [0], [1], [0, 0, 1, 1], [], []>} : vector<128x128xf32>, vector<128x128xf32>, vector<128x128xf32> -> vector<128x128xf32>
    %c0_62 = arith.constant 0 : index
    %c6_63 = arith.constant 6 : index
    %c0_64 = arith.constant 0 : index
    %c0_65 = arith.constant 0 : index
    %48 = vector.load %arg5[%c0_62, %c6_63, %c0_64, %c0_65] : memref<1x8x128x128xf32, #tpu.memory_space<vmem>>, vector<1x1x128x128xf32>
    %49 = vector.shape_cast %48 : vector<1x1x128x128xf32> to vector<128x128xf32>
    %50 = vector.shape_cast %47 : vector<128x128xf32> to vector<1x1x128x128xf32>
    tpu.vector_store %arg5[%c0_62, %c6_63, %c0_64, %c0_65], %50 {strides = array<i32>} : memref<1x8x128x128xf32, #tpu.memory_space<vmem>>, vector<1x1x128x128xf32>,
    %c0_66 = arith.constant 0 : index
    %c7 = arith.constant 7 : index
    %c0_67 = arith.constant 0 : index
    %c0_68 = arith.constant 0 : index
    %51 = vector.load %arg4[%c0_66, %c7, %c0_67, %c0_68] : memref<1x8x128x128xf32, #tpu.memory_space<vmem>>, vector<1x1x128x128xf32>
    %52 = vector.shape_cast %51 : vector<1x1x128x128xf32> to vector<128x128xf32>
    %cst_69 = arith.constant dense<0.000000e+00> : vector<128x128xf32>
    %53 = tpu.matmul %52, %1, %cst_69 {dimension_numbers = #tpu.dot_dimension_numbers<[1], [0], [0], [1], [0, 0, 1, 1], [], []>} : vector<128x128xf32>, vector<128x128xf32>, vector<128x128xf32> -> vector<128x128xf32>
    %cst_70 = arith.constant dense<0.000000e+00> : vector<128x128xf32>
    %54 = tpu.matmul %0, %53, %cst_70 {dimension_numbers = #tpu.dot_dimension_numbers<[1], [0], [0], [1], [0, 0, 1, 1], [], []>} : vector<128x128xf32>, vector<128x128xf32>, vector<128x128xf32> -> vector<128x128xf32>
    %c0_71 = arith.constant 0 : index
    %c7_72 = arith.constant 7 : index
    %c0_73 = arith.constant 0 : index
    %c0_74 = arith.constant 0 : index
    %55 = vector.load %arg5[%c0_71, %c7_72, %c0_73, %c0_74] : memref<1x8x128x128xf32, #tpu.memory_space<vmem>>, vector<1x1x128x128xf32>
    %56 = vector.shape_cast %55 : vector<1x1x128x128xf32> to vector<128x128xf32>
    %57 = vector.shape_cast %54 : vector<128x128xf32> to vector<1x1x128x128xf32>
    tpu.vector_store %arg5[%c0_71, %c7_72, %c0_73, %c0_74], %57 {strides = array<i32>} : memref<1x8x128x128xf32, #tpu.memory_space<vmem>>, vector<1x1x128x128xf32>,
    return
  }
  func.func @transform_0(%arg0: i32, %arg1: i32) -> (i32, i32) {
    %c0_i32 = arith.constant 0 : i32
    %c0_i32_0 = arith.constant 0 : i32
    %c0_i32_1 = arith.constant 0 : i32
    return %c0_i32, %c0_i32_0 : i32, i32
  }
  func.func @transform_1(%arg0: i32, %arg1: i32) -> (i32, i32) {
    %c0_i32 = arith.constant 0 : i32
    %c0_i32_0 = arith.constant 0 : i32
    %c0_i32_1 = arith.constant 0 : i32
    return %c0_i32, %c0_i32_0 : i32, i32
  }
  func.func @transform_2(%arg0: i32, %arg1: i32) -> (i32, i32, i32, i32) {
    %c0_i32 = arith.constant 0 : i32
    %c0_i32_0 = arith.constant 0 : i32
    %c0_i32_1 = arith.constant 0 : i32
    return %arg0, %arg1, %c0_i32, %c0_i32_0 : i32, i32, i32, i32
  }
  func.func @transform_3(%arg0: i32, %arg1: i32) -> (i32, i32, i32, i32) {
    %c0_i32 = arith.constant 0 : i32
    %c0_i32_0 = arith.constant 0 : i32
    %c0_i32_1 = arith.constant 0 : i32
    return %arg0, %arg1, %c0_i32, %c0_i32_0 : i32, i32, i32, i32
  }
}

</mosaic_0001>

<llo_original>
// kernel: tpu_custom_call.1
$region0: #{tpu_custom_call.1}
  #allocation0 [shape = 'u32[]', space=smem, size = 0x4, offset = 0x4, fixed_abs, tag = 'smem constant byte address 0x4 - core index']
  #allocation1 [shape = 'u32[144,128]{1,0:T(1,128)}', space=vmem, size = 0x12000, scoped, tag = 'internal scratch']
  %s0 = inlined_call_operand.hbm [shape: f32[128,128], index: 0, kind: input, shape index: {}]
  %s1 = inlined_call_operand.hbm [shape: f32[128,128], index: 1, kind: input, shape index: {}]
  %s2 = inlined_call_operand.hbm [shape: f32[2,8,128,128], index: 2, kind: input, shape index: {}]
  %s3 = inlined_call_operand.hbm [shape: f32[2,8,128,128], index: 3, kind: output, shape index: {}]
  %s4 = sld [smem:[#allocation0]]
  $region57: #{tpu_custom_call.1} parent=0
    _
  %s6 = ssub.s32 1, %s4
  %s7 = scalar_select 0, %s6, %s4
  $region1: #{tpu_custom_call.1} parent=0
    #allocation2 [shape = 'u8[65536]{0}', space=vmem, size = 0x10000, scoped, tag = 'input window, operand 0, single buffered']
    #allocation3 [shape = 's32[2]{0}', space=sflag, size = 0x8, scoped, tag = 'scoped memory for tpu_custom_call.1']
    #allocation4 [shape = 's32[2]{0}', space=sflag, size = 0x8, scoped, tag = 'scoped memory for tpu_custom_call.1']
    #allocation5 [shape = 'u8[65536]{0}', space=vmem, size = 0x10000, scoped, tag = 'input window, operand 1, single buffered']
    #allocation6 [shape = 's32[1]{0}', space=sflag, size = 0x4, scoped, tag = 'scoped memory for tpu_custom_call.1']
    #allocation7 [shape = 'u8[1048576]{0}', space=vmem, size = 0x100000, scoped, tag = 'input window, operand 2']
    #allocation8 [shape = 'u8[1048576]{0}', space=vmem, size = 0x100000, scoped, tag = 'output window, operand 0']
    %8 = vsyncpa [#allocation3], 0
    %9 = vsyncpa [#allocation6], 0
    %10 = vsyncpa [#allocation4], 0
    %s11 = scalar_lea.sflag [#allocation4], 1
    %12 = vsyncpa %s11, 0
    loop: start=0, step=1, limit=4
    $region2: #{tpu_custom_call.1} parent=1 // loop_pre_header
      _
    $region3: #{tpu_custom_call.1} parent=1 // loop_header
      %s14 = sphi 0, %s18
      %p15 = scmp.ge.s32.totalorder %s14, 4
      %s21 = sphi 0, %s33
      %s22 = sphi 0, %s29
      %s23 = sphi 0, %s21
      %s24 = sphi 0, %s22
      %s25 = sphi 0, %s23
      %s26 = sphi 0, %s24
      %s34 = sphi 0, %s34
      %s36 = sphi 0, %s34
      %s37 = sphi 0, %s36
      %s51 = sphi 0, %s37
      %s55 = sphi 0, %s55
      %s57 = sphi 0, %s55
      %s58 = sphi 0, %s57
      %s72 = sphi 0, %s58
      %s80 = sphi 0, %s82
      %s83 = sphi 0, %s80
      %s84 = sphi 0, %s83
      %s100 = sphi 0, %s84
      %s108 = sphi 0, %s110
      %s111 = sphi 0, %s108
      %s112 = sphi 0, %s111
      %s128 = sphi 0, %s112
    $region4: #{tpu_custom_call.1} parent=1 // loop_header_branch
      %17 = sbr.rel (%p15) target = $region8
    $region5: #{tpu_custom_call.1} parent=1 // loop_body
      %s19 = ssub.s32 %s14, 1
      %s20 = ssub.s32 %s14, 2
      %s27 = sadd.s32 1, %s22
      %p28 = scmp.ge.s32.totalorder %s27, 1
      %s29 = scalar_select %p28, 0, %s27
      %s30 = sadd.s32 1, %s21
      %s31 = scalar_select %p28, %s30, %s21
      %p32 = scmp.ge.s32.totalorder %s31, 2
      %s33 = scalar_select %p32, 0, %s31
      %s35 = sadd.s32 %s34, 1
      %p38 = scmp.eq.s32.totalorder %s14, 1
      %p39 = scmp.ne.s32.totalorder %s34, %s36
      %p40 = scmp.eq.s32.totalorder %s14, 0
      %p41 = por %p39, %p40
      %p42 = scmp.ne.s32.totalorder %s34, %s36
      %p43 = scmp.eq.s32.totalorder %s19, 1
      %p44 = por %p42, %p43
      %p45 = scmp.ne.s32.totalorder %s36, %s37
      %p46 = scmp.eq.s32.totalorder %s19, 0
      %p47 = por %p45, %p46
      %p48 = scmp.ne.s32.totalorder %s36, %s37
      %p49 = scmp.eq.s32.totalorder %s20, 1
      %p50 = por %p48, %p49
      %p52 = scmp.ne.s32.totalorder %s37, %s51
      %p53 = scmp.eq.s32.totalorder %s20, 0
      %p54 = por %p52, %p53
      %s56 = sadd.s32 %s55, 1
      %p59 = scmp.eq.s32.totalorder %s14, 1
      %p60 = scmp.ne.s32.totalorder %s55, %s57
      %p61 = scmp.eq.s32.totalorder %s14, 0
      %p62 = por %p60, %p61
      %p63 = scmp.ne.s32.totalorder %s55, %s57
      %p64 = scmp.eq.s32.totalorder %s19, 1
      %p65 = por %p63, %p64
      %p66 = scmp.ne.s32.totalorder %s57, %s58
      %p67 = scmp.eq.s32.totalorder %s19, 0
      %p68 = por %p66, %p67
      %p69 = scmp.ne.s32.totalorder %s57, %s58
      %p70 = scmp.eq.s32.totalorder %s20, 1
      %p71 = por %p69, %p70
      %p73 = scmp.ne.s32.totalorder %s58, %s72
      %p74 = scmp.eq.s32.totalorder %s20, 0
      %p75 = por %p73, %p74
      %s76 = ssub.s32 %s21, %s33
      %s77 = ssub.s32 %s22, %s29
      %s78 = sor.u32 %s76, %s77
      %p79 = scmp.eq.s32.totalorder %s78, 0
      %s81 = sadd.s32 %s80, 1
      %s82 = scalar_select %p79, %s80, %s81
      %p85 = pneg %p79
      %p86 = scmp.eq.s32.totalorder %s14, 1
      %p87 = por %p85, %p86
      %p88 = scmp.ne.s32.totalorder %s80, %s83
      %p89 = scmp.eq.s32.totalorder %s14, 0
      %p90 = por %p88, %p89
      %p91 = scmp.ne.s32.totalorder %s80, %s83
      %p92 = scmp.eq.s32.totalorder %s19, 1
      %p93 = por %p91, %p92
      %p94 = scmp.ne.s32.totalorder %s83, %s84
      %p95 = scmp.eq.s32.totalorder %s19, 0
      %p96 = por %p94, %p95
      %p97 = scmp.ne.s32.totalorder %s83, %s84
      %p98 = scmp.eq.s32.totalorder %s20, 1
      %p99 = por %p97, %p98
      %p101 = scmp.ne.s32.totalorder %s84, %s100
      %p102 = scmp.eq.s32.totalorder %s20, 0
      %p103 = por %p101, %p102
      %s104 = ssub.s32 %s21, %s33
      %s105 = ssub.s32 %s22, %s29
      %s106 = sor.u32 %s104, %s105
      %p107 = scmp.eq.s32.totalorder %s106, 0
      %s109 = sadd.s32 %s108, 1
      %s110 = scalar_select %p107, %s108, %s109
      %p113 = pneg %p107
      %p114 = scmp.eq.s32.totalorder %s14, 1
      %p115 = por %p113, %p114
      %p116 = scmp.ne.s32.totalorder %s108, %s111
      %p117 = scmp.eq.s32.totalorder %s14, 0
      %p118 = por %p116, %p117
      %p119 = scmp.ne.s32.totalorder %s108, %s111
      %p120 = scmp.eq.s32.totalorder %s19, 1
      %p121 = por %p119, %p120
      %p122 = scmp.ne.s32.totalorder %s111, %s112
      %p123 = scmp.eq.s32.totalorder %s19, 0
      %p124 = por %p122, %p123
      %p125 = scmp.ne.s32.totalorder %s111, %s112
      %p126 = scmp.eq.s32.totalorder %s20, 1
      %p127 = por %p125, %p126
      %p129 = scmp.ne.s32.totalorder %s112, %s128
      %p130 = scmp.eq.s32.totalorder %s20, 0
      %p131 = por %p129, %p130
      %p132 = scmp.le.s32.totalorder 1, %s14
      %p133 = scmp.lt.s32.totalorder %s14, 3
      %p134 = pnand %p132, %p133
      %p135 = pneg %p134
      // Predicated region
      $region9: #{tpu_custom_call.1} parent=5 // pred_check
        _
      $region10: #{tpu_custom_call.1} parent=5 // pred_check_branch
        %137 = sbr.rel (%p134) target = $region12
      $region11: #{tpu_custom_call.1} parent=5 // pred_region
        %s138 = ssub.s32 %s14, 1
        // Predicated region
        $region13: #{tpu_custom_call.1} parent=11 // pred_check
          %p139 = pneg %p47
        $region14: #{tpu_custom_call.1} parent=11 // pred_check_branch
          %141 = sbr.rel (%p139) target = $region16
        $region15: #{tpu_custom_call.1} parent=11 // pred_region
          %s143 = ssub.s32 2048, 2048
          %144 = vsyncadd [#allocation3], %s143
          %s145 = sshll.u32 [#allocation2], 4
          %s146 = int_to_ptr.vmem [resolvable:$true] %s145
          %151 = dma.hbm_to_vmem [thread:$0]  %s0, 2048, %s146, [#allocation3], 128, 128, 8
        $region16: #{tpu_custom_call.1} parent=11 // pred_fallthru
          _
        // Predicated region
        $region17: #{tpu_custom_call.1} parent=11 // pred_check
          %p152 = pneg %p68
        $region18: #{tpu_custom_call.1} parent=11 // pred_check_branch
          %154 = sbr.rel (%p152) target = $region20
        $region19: #{tpu_custom_call.1} parent=11 // pred_region
          %s156 = ssub.s32 2048, 2048
          %157 = vsyncadd [#allocation6], %s156
          %s158 = sshll.u32 [#allocation5], 4
          %s159 = int_to_ptr.vmem [resolvable:$true] %s158
          %164 = dma.hbm_to_vmem [thread:$0]  %s1, 2048, %s159, [#allocation6], 128, 128, 8
        $region20: #{tpu_custom_call.1} parent=11 // pred_fallthru
          _
      $region12: #{tpu_custom_call.1} parent=5 // pred_fallthru
        _
      %p165 = scmp.lt.s32.totalorder %s14, 2
      // Predicated region
      $region21: #{tpu_custom_call.1} parent=5 // pred_check
        %p166 = pneg %p165
      $region22: #{tpu_custom_call.1} parent=5 // pred_check_branch
        %168 = sbr.rel (%p166) target = $region24
      $region23: #{tpu_custom_call.1} parent=5 // pred_region
        // Predicated region
        $region25: #{tpu_custom_call.1} parent=23 // pred_check
          %p169 = pneg %p90
        $region26: #{tpu_custom_call.1} parent=23 // pred_check_branch
          %171 = sbr.rel (%p169) target = $region28
        $region27: #{tpu_custom_call.1} parent=23 // pred_region
          %s172 = sand.u32 %s14, 1
          %s173 = scalar_lea.sflag [#allocation3], %s172
          %s174 = sand.u32 %s80, 1
          %s175 = smul.addr %s174, 1024
          %s176 = scalar_lea.vmem [#allocation7], %s175
          %s177 = smul.u32 8, %s22
          %s179 = ssub.s32 16384, 16384
          %180 = vsyncadd %s173, %s179
          %s181 = smul.addr %s177, 16
          %s182 = smul.addr %s21, 128
          %s183 = sadd.s32 %s181, %s182
          %s184 = smul.addr %s183, 128
          %s185 = scalar_lea.hbm %s2, %s184
          %s186 = sshll.u32 %s176, 4
          %s187 = int_to_ptr.vmem [resolvable:$true] %s186
          %192 = dma.hbm_to_vmem [thread:$0]  %s185, 16384, %s187, %s173, 128, 128, 8
        $region28: #{tpu_custom_call.1} parent=23 // pred_fallthru
          _
      $region24: #{tpu_custom_call.1} parent=5 // pred_fallthru
        _
      %p193 = scmp.le.s32.totalorder 1, %s14
      %p194 = scmp.lt.s32.totalorder %s14, 3
      %p195 = pnand %p193, %p194
      %p196 = pneg %p195
      // Predicated region
      $region29: #{tpu_custom_call.1} parent=5 // pred_check
        _
      $region30: #{tpu_custom_call.1} parent=5 // pred_check_branch
        %198 = sbr.rel (%p195) target = $region32
      $region31: #{tpu_custom_call.1} parent=5 // pred_region
        %s199 = ssub.s32 %s14, 1
        // Predicated region
        $region33: #{tpu_custom_call.1} parent=31 // pred_check
          %p200 = pneg %p47
        $region34: #{tpu_custom_call.1} parent=31 // pred_check_branch
          %202 = sbr.rel (%p200) target = $region36
        $region35: #{tpu_custom_call.1} parent=31 // pred_region
          %203 = dma.done [#allocation3], 2048
        $region36: #{tpu_custom_call.1} parent=31 // pred_fallthru
          _
        // Predicated region
        $region37: #{tpu_custom_call.1} parent=31 // pred_check
          %p204 = pneg %p68
        $region38: #{tpu_custom_call.1} parent=31 // pred_check_branch
          %206 = sbr.rel (%p204) target = $region40
        $region39: #{tpu_custom_call.1} parent=31 // pred_region
          %207 = dma.done [#allocation6], 2048
        $region40: #{tpu_custom_call.1} parent=31 // pred_fallthru
          _
        %s208 = sand.u32 %s19, 1
        %s209 = scalar_lea.sflag [#allocation3], %s208
        %s210 = sand.u32 %s83, 1
        %s211 = smul.addr %s210, 1024
        %s212 = scalar_lea.vmem [#allocation7], %s211
        // Predicated region
        $region41: #{tpu_custom_call.1} parent=31 // pred_check
          %p213 = pneg %p96
        $region42: #{tpu_custom_call.1} parent=31 // pred_check_branch
          %215 = sbr.rel (%p213) target = $region44
        $region43: #{tpu_custom_call.1} parent=31 // pred_region
          %216 = dma.done %s209, 16384
        $region44: #{tpu_custom_call.1} parent=31 // pred_fallthru
          _
        %p217 = pneg %p47
        %p218 = pneg %p44
        %p219 = pneg %p68
        %p220 = pneg %p65
        %s221 = sand.u32 %s19, 1
        %s222 = scalar_lea.sflag [#allocation3], %s221
        %s223 = sand.u32 %s83, 1
        %s224 = smul.addr %s223, 1024
        %s225 = scalar_lea.vmem [#allocation7], %s224
        %p226 = pneg %p96
        %p227 = pneg %p93
        %p228 = pneg %p124
        %p229 = pneg %p121
        %s230 = sand.u32 %s111, 1
        %s231 = scalar_lea.sflag [#allocation4], %s230
        %s232 = sand.u32 %s111, 1
        %s233 = smul.addr %s232, 1024
        %s234 = scalar_lea.vmem [#allocation8], %s233
        %s235 = smul.u32 8, %s24
        %s236 = smul.u32 8, %s24
        %v237 = vld [vmem:[#allocation2] sm:$0xff]
        %v238 = vld [vmem:[#allocation2 + $0x8] sm:$0xff]
        %v239 = vld [vmem:[#allocation2 + $0x10] sm:$0xff]
        %v240 = vld [vmem:[#allocation2 + $0x18] sm:$0xff]
        %v241 = vld [vmem:[#allocation2 + $0x20] sm:$0xff]
        %v242 = vld [vmem:[#allocation2 + $0x28] sm:$0xff]
        %v243 = vld [vmem:[#allocation2 + $0x30] sm:$0xff]
        %v244 = vld [vmem:[#allocation2 + $0x38] sm:$0xff]
        %v245 = vld [vmem:[#allocation2 + $0x40] sm:$0xff]
        %v246 = vld [vmem:[#allocation2 + $0x48] sm:$0xff]
        %v247 = vld [vmem:[#allocation2 + $0x50] sm:$0xff]
        %v248 = vld [vmem:[#allocation2 + $0x58] sm:$0xff]
        %v249 = vld [vmem:[#allocation2 + $0x60] sm:$0xff]
        %v250 = vld [vmem:[#allocation2 + $0x68] sm:$0xff]
        %v251 = vld [vmem:[#allocation2 + $0x70] sm:$0xff]
        %v252 = vld [vmem:[#allocation2 + $0x78] sm:$0xff]
        %v253 = vld [vmem:[#allocation5] sm:$0xff]
        %v254 = vld [vmem:[#allocation5 + $0x8] sm:$0xff]
        %v255 = vld [vmem:[#allocation5 + $0x10] sm:$0xff]
        %v256 = vld [vmem:[#allocation5 + $0x18] sm:$0xff]
        %v257 = vld [vmem:[#allocation5 + $0x20] sm:$0xff]
        %v258 = vld [vmem:[#allocation5 + $0x28] sm:$0xff]
        %v259 = vld [vmem:[#allocation5 + $0x30] sm:$0xff]
        %v260 = vld [vmem:[#allocation5 + $0x38] sm:$0xff]
        %v261 = vld [vmem:[#allocation5 + $0x40] sm:$0xff]
        %v262 = vld [vmem:[#allocation5 + $0x48] sm:$0xff]
        %v263 = vld [vmem:[#allocation5 + $0x50] sm:$0xff]
        %v264 = vld [vmem:[#allocation5 + $0x58] sm:$0xff]
        %v265 = vld [vmem:[#allocation5 + $0x60] sm:$0xff]
        %v266 = vld [vmem:[#allocation5 + $0x68] sm:$0xff]
        %v267 = vld [vmem:[#allocation5 + $0x70] sm:$0xff]
        %v268 = vld [vmem:[#allocation5 + $0x78] sm:$0xff]
        %v269 = vld [vmem:[%s212] sm:$0xff]
        %v270 = vld [vmem:[%s212 + $0x8] sm:$0xff]
        %v271 = vld [vmem:[%s212 + $0x10] sm:$0xff]
        %v272 = vld [vmem:[%s212 + $0x18] sm:$0xff]
        %v273 = vld [vmem:[%s212 + $0x20] sm:$0xff]
        %v274 = vld [vmem:[%s212 + $0x28] sm:$0xff]
        %v275 = vld [vmem:[%s212 + $0x30] sm:$0xff]
        %v276 = vld [vmem:[%s212 + $0x38] sm:$0xff]
        %v277 = vld [vmem:[%s212 + $0x40] sm:$0xff]
        %v278 = vld [vmem:[%s212 + $0x48] sm:$0xff]
        %v279 = vld [vmem:[%s212 + $0x50] sm:$0xff]
        %v280 = vld [vmem:[%s212 + $0x58] sm:$0xff]
        %v281 = vld [vmem:[%s212 + $0x60] sm:$0xff]
        %v282 = vld [vmem:[%s212 + $0x68] sm:$0xff]
        %v283 = vld [vmem:[%s212 + $0x70] sm:$0xff]
        %v284 = vld [vmem:[%s212 + $0x78] sm:$0xff]
        %285 = vmatprep.subr.mxu0 0.0
        %286 = vmatpush1.msra.mxu0 %v268
        %287 = vmatprep.subr.mxu0 0.0
        %288 = vmatpush1.msra.mxu0 %v267
        %289 = vmatprep.subr.mxu0 0.0
        %290 = vmatpush1.msra.mxu0 %v266
        %291 = vmatprep.subr.mxu0 0.0
        %292 = vmatpush1.msra.mxu0 %v265
        %293 = vmatprep.subr.mxu0 0.0
        %294 = vmatpush1.msra.mxu0 %v264
        %295 = vmatprep.subr.mxu0 0.0
        %296 = vmatpush1.msra.mxu0 %v263
        %297 = vmatprep.subr.mxu0 0.0
        %298 = vmatpush1.msra.mxu0 %v262
        %299 = vmatprep.subr.mxu0 0.0
        %300 = vmatpush1.msra.mxu0 %v261
        %301 = vmatprep.subr.mxu0 0.0
        %302 = vmatpush1.msra.mxu0 %v260
        %303 = vmatprep.subr.mxu0 0.0
        %304 = vmatpush1.msra.mxu0 %v259
        %305 = vmatprep.subr.mxu0 0.0
        %306 = vmatpush1.msra.mxu0 %v258
        %307 = vmatprep.subr.mxu0 0.0
        %308 = vmatpush1.msra.mxu0 %v257
        %309 = vmatprep.subr.mxu0 0.0
        %310 = vmatpush1.msra.mxu0 %v256
        %311 = vmatprep.subr.mxu0 0.0
        %312 = vmatpush1.msra.mxu0 %v255
        %313 = vmatprep.subr.mxu0 0.0
        %314 = vmatpush1.msra.mxu0 %v254
        %315 = vmatprep.subr.mxu0 0.0
        %316 = vmatpush1.msra.mxu0 %v253
        %317 = vmatprep.subr.mxu0 0.0
        %318 = vmatpush2.msra.mxu0 0.0
        %319 = vmatprep.subr.mxu0 0.0
        %320 = vmatpush2.msra.mxu0 0.0
        %321 = vmatprep.subr.mxu0 0.0
        %322 = vmatpush2.msra.mxu0 0.0
        %323 = vmatprep.subr.mxu0 0.0
        %324 = vmatpush2.msra.mxu0 0.0
        %325 = vmatprep.subr.mxu0 0.0
        %326 = vmatpush2.msra.mxu0 0.0
        %327 = vmatprep.subr.mxu0 0.0
        %328 = vmatpush2.msra.mxu0 0.0
        %329 = vmatprep.subr.mxu0 0.0
        %330 = vmatpush2.msra.mxu0 0.0
        %331 = vmatprep.subr.mxu0 0.0
        %332 = vmatpush2.msra.mxu0 0.0
        %333 = vmatprep.subr.mxu0 0.0
        %334 = vmatpush2.msra.mxu0 0.0
        %335 = vmatprep.subr.mxu0 0.0
        %336 = vmatpush2.msra.mxu0 0.0
        %337 = vmatprep.subr.mxu0 0.0
        %338 = vmatpush2.msra.mxu0 0.0
        %339 = vmatprep.subr.mxu0 0.0
        %340 = vmatpush2.msra.mxu0 0.0
        %341 = vmatprep.subr.mxu0 0.0
        %342 = vmatpush2.msra.mxu0 0.0
        %343 = vmatprep.subr.mxu0 0.0
        %344 = vmatpush2.msra.mxu0 0.0
        %345 = vmatprep.subr.mxu0 0.0
        %346 = vmatpush2.msra.mxu0 0.0
        %347 = vmatprep.subr.mxu0 0.0
        %348 = vmatpush2.msra.mxu0 0.0
        %349 = vmatprep.mubr.f32.mxu0 0.0
        %350 = vmatmul.mubr.f32.gmra.mxu0 %v269
        %v351 = vpop.f32.mrf.mxu0
        %v352 = vadd.f32 0.0, %v351
        %v353 = vpop.f32.mrf.mxu0
        %354 = vmatprep.mubr.f32.mxu0 0.0
        %355 = vmatmul.mubr.f32.gmra.mxu0 %v270
        %v356 = vpop.f32.mrf.mxu0
        %v357 = vadd.f32 0.0, %v356
        %v358 = vpop.f32.mrf.mxu0
        %359 = vmatprep.mubr.f32.mxu0 0.0
        %360 = vmatmul.mubr.f32.gmra.mxu0 %v271
        %v361 = vpop.f32.mrf.mxu0
        %v362 = vadd.f32 0.0, %v361
        %v363 = vpop.f32.mrf.mxu0
        %364 = vmatprep.mubr.f32.mxu0 0.0
        %365 = vmatmul.mubr.f32.gmra.mxu0 %v272
        %v366 = vpop.f32.mrf.mxu0
        %v367 = vadd.f32 0.0, %v366
        %v368 = vpop.f32.mrf.mxu0
        %369 = vmatprep.mubr.f32.mxu0 0.0
        %370 = vmatmul.mubr.f32.gmra.mxu0 %v273
        %v371 = vpop.f32.mrf.mxu0
        %v372 = vadd.f32 0.0, %v371
        %v373 = vpop.f32.mrf.mxu0
        %374 = vmatprep.mubr.f32.mxu0 0.0
        %375 = vmatmul.mubr.f32.gmra.mxu0 %v274
        %v376 = vpop.f32.mrf.mxu0
        %v377 = vadd.f32 0.0, %v376
        %v378 = vpop.f32.mrf.mxu0
        %379 = vmatprep.mubr.f32.mxu0 0.0
        %380 = vmatmul.mubr.f32.gmra.mxu0 %v275
        %v381 = vpop.f32.mrf.mxu0
        %v382 = vadd.f32 0.0, %v381
        %v383 = vpop.f32.mrf.mxu0
        %384 = vmatprep.mubr.f32.mxu0 0.0
        %385 = vmatmul.mubr.f32.gmra.mxu0 %v276
        %v386 = vpop.f32.mrf.mxu0
        %v387 = vadd.f32 0.0, %v386
        %v388 = vpop.f32.mrf.mxu0
        %389 = vmatprep.mubr.f32.mxu0 0.0
        %390 = vmatmul.mubr.f32.gmra.mxu0 %v277
        %v391 = vpop.f32.mrf.mxu0
        %v392 = vadd.f32 0.0, %v391
        %v393 = vpop.f32.mrf.mxu0
        %394 = vmatprep.mubr.f32.mxu0 0.0
        %395 = vmatmul.mubr.f32.gmra.mxu0 %v278
        %v396 = vpop.f32.mrf.mxu0
        %v397 = vadd.f32 0.0, %v396
        %v398 = vpop.f32.mrf.mxu0
        %399 = vmatprep.mubr.f32.mxu0 0.0
        %400 = vmatmul.mubr.f32.gmra.mxu0 %v279
        %v401 = vpop.f32.mrf.mxu0
        %v402 = vadd.f32 0.0, %v401
        %v403 = vpop.f32.mrf.mxu0
        %404 = vmatprep.mubr.f32.mxu0 0.0
        %405 = vmatmul.mubr.f32.gmra.mxu0 %v280
        %v406 = vpop.f32.mrf.mxu0
        %v407 = vadd.f32 0.0, %v406
        %v408 = vpop.f32.mrf.mxu0
        %409 = vmatprep.mubr.f32.mxu0 0.0
        %410 = vmatmul.mubr.f32.gmra.mxu0 %v281
        %v411 = vpop.f32.mrf.mxu0
        %v412 = vadd.f32 0.0, %v411
        %v413 = vpop.f32.mrf.mxu0
        %414 = vmatprep.mubr.f32.mxu0 0.0
        %415 = vmatmul.mubr.f32.gmra.mxu0 %v282
        %v416 = vpop.f32.mrf.mxu0
        %v417 = vadd.f32 0.0, %v416
        %v418 = vpop.f32.mrf.mxu0
        %419 = vmatprep.mubr.f32.mxu0 0.0
        %420 = vmatmul.mubr.f32.gmra.mxu0 %v283
        %v421 = vpop.f32.mrf.mxu0
        %v422 = vadd.f32 0.0, %v421
        %v423 = vpop.f32.mrf.mxu0
        %424 = vmatprep.mubr.f32.mxu0 0.0
        %425 = vmatmul.mubr.f32.gmra.mxu0 %v284
        %v426 = vpop.f32.mrf.mxu0
        %v427 = vadd.f32 0.0, %v426
        %v428 = vpop.f32.mrf.mxu0
        %429 = vdwg.mxu0
        %430 = vmatprep.subr.mxu0 0.0
        %431 = vmatpush1.msra.mxu0 %v427
        %432 = vmatprep.subr.mxu0 0.0
        %433 = vmatpush1.msra.mxu0 %v422
        %434 = vmatprep.subr.mxu0 0.0
        %435 = vmatpush1.msra.mxu0 %v417
        %436 = vmatprep.subr.mxu0 0.0
        %437 = vmatpush1.msra.mxu0 %v412
        %438 = vmatprep.subr.mxu0 0.0
        %439 = vmatpush1.msra.mxu0 %v407
        %440 = vmatprep.subr.mxu0 0.0
        %441 = vmatpush1.msra.mxu0 %v402
        %442 = vmatprep.subr.mxu0 0.0
        %443 = vmatpush1.msra.mxu0 %v397
        %444 = vmatprep.subr.mxu0 0.0
        %445 = vmatpush1.msra.mxu0 %v392
        %446 = vmatprep.subr.mxu0 0.0
        %447 = vmatpush1.msra.mxu0 %v387
        %448 = vmatprep.subr.mxu0 0.0
        %449 = vmatpush1.msra.mxu0 %v382
        %450 = vmatprep.subr.mxu0 0.0
        %451 = vmatpush1.msra.mxu0 %v377
        %452 = vmatprep.subr.mxu0 0.0
        %453 = vmatpush1.msra.mxu0 %v372
        %454 = vmatprep.subr.mxu0 0.0
        %455 = vmatpush1.msra.mxu0 %v367
        %456 = vmatprep.subr.mxu0 0.0
        %457 = vmatpush1.msra.mxu0 %v362
        %458 = vmatprep.subr.mxu0 0.0
        %459 = vmatpush1.msra.mxu0 %v357
        %460 = vmatprep.subr.mxu0 0.0
        %461 = vmatpush1.msra.mxu0 %v352
        %462 = vmatprep.subr.mxu0 0.0
        %463 = vmatpush2.msra.mxu0 0.0
        %464 = vmatprep.subr.mxu0 0.0
        %465 = vmatpush2.msra.mxu0 0.0
        %466 = vmatprep.subr.mxu0 0.0
        %467 = vmatpush2.msra.mxu0 0.0
        %468 = vmatprep.subr.mxu0 0.0
        %469 = vmatpush2.msra.mxu0 0.0
        %470 = vmatprep.subr.mxu0 0.0
        %471 = vmatpush2.msra.mxu0 0.0
        %472 = vmatprep.subr.mxu0 0.0
        %473 = vmatpush2.msra.mxu0 0.0
        %474 = vmatprep.subr.mxu0 0.0
        %475 = vmatpush2.msra.mxu0 0.0
        %476 = vmatprep.subr.mxu0 0.0
        %477 = vmatpush2.msra.mxu0 0.0
        %478 = vmatprep.subr.mxu0 0.0
        %479 = vmatpush2.msra.mxu0 0.0
        %480 = vmatprep.subr.mxu0 0.0
        %481 = vmatpush2.msra.mxu0 0.0
        %482 = vmatprep.subr.mxu0 0.0
        %483 = vmatpush2.msra.mxu0 0.0
        %484 = vmatprep.subr.mxu0 0.0
        %485 = vmatpush2.msra.mxu0 0.0
        %486 = vmatprep.subr.mxu0 0.0
        %487 = vmatpush2.msra.mxu0 0.0
        %488 = vmatprep.subr.mxu0 0.0
        %489 = vmatpush2.msra.mxu0 0.0
        %490 = vmatprep.subr.mxu0 0.0
        %491 = vmatpush2.msra.mxu0 0.0
        %492 = vmatprep.subr.mxu0 0.0
        %493 = vmatpush2.msra.mxu0 0.0
        %494 = vmatprep.mubr.f32.mxu0 0.0
        %495 = vmatmul.mubr.f32.gmra.mxu0 %v237
        %v496 = vpop.f32.mrf.mxu0
        %v497 = vadd.f32 0.0, %v496
        %v498 = vpop.f32.mrf.mxu0
        %499 = vmatprep.mubr.f32.mxu0 0.0
        %500 = vmatmul.mubr.f32.gmra.mxu0 %v238
        %v501 = vpop.f32.mrf.mxu0
        %v502 = vadd.f32 0.0, %v501
        %v503 = vpop.f32.mrf.mxu0
        %504 = vmatprep.mubr.f32.mxu0 0.0
        %505 = vmatmul.mubr.f32.gmra.mxu0 %v239
        %v506 = vpop.f32.mrf.mxu0
        %v507 = vadd.f32 0.0, %v506
        %v508 = vpop.f32.mrf.mxu0
        %509 = vmatprep.mubr.f32.mxu0 0.0
        %510 = vmatmul.mubr.f32.gmra.mxu0 %v240
        %v511 = vpop.f32.mrf.mxu0
        %v512 = vadd.f32 0.0, %v511
        %v513 = vpop.f32.mrf.mxu0
        %514 = vmatprep.mubr.f32.mxu0 0.0
        %515 = vmatmul.mubr.f32.gmra.mxu0 %v241
        %v516 = vpop.f32.mrf.mxu0
        %v517 = vadd.f32 0.0, %v516
        %v518 = vpop.f32.mrf.mxu0
        %519 = vmatprep.mubr.f32.mxu0 0.0
        %520 = vmatmul.mubr.f32.gmra.mxu0 %v242
        %v521 = vpop.f32.mrf.mxu0
        %v522 = vadd.f32 0.0, %v521
        %v523 = vpop.f32.mrf.mxu0
        %524 = vmatprep.mubr.f32.mxu0 0.0
        %525 = vmatmul.mubr.f32.gmra.mxu0 %v243
        %v526 = vpop.f32.mrf.mxu0
        %v527 = vadd.f32 0.0, %v526
        %v528 = vpop.f32.mrf.mxu0
        %529 = vmatprep.mubr.f32.mxu0 0.0
        %530 = vmatmul.mubr.f32.gmra.mxu0 %v244
        %v531 = vpop.f32.mrf.mxu0
        %v532 = vadd.f32 0.0, %v531
        %v533 = vpop.f32.mrf.mxu0
        %534 = vmatprep.mubr.f32.mxu0 0.0
        %535 = vmatmul.mubr.f32.gmra.mxu0 %v245
        %v536 = vpop.f32.mrf.mxu0
        %v537 = vadd.f32 0.0, %v536
        %v538 = vpop.f32.mrf.mxu0
        %539 = vmatprep.mubr.f32.mxu0 0.0
        %540 = vmatmul.mubr.f32.gmra.mxu0 %v246
        %v541 = vpop.f32.mrf.mxu0
        %v542 = vadd.f32 0.0, %v541
        %v543 = vpop.f32.mrf.mxu0
        %544 = vmatprep.mubr.f32.mxu0 0.0
        %545 = vmatmul.mubr.f32.gmra.mxu0 %v247
        %v546 = vpop.f32.mrf.mxu0
        %v547 = vadd.f32 0.0, %v546
        %v548 = vpop.f32.mrf.mxu0
        %549 = vmatprep.mubr.f32.mxu0 0.0
        %550 = vmatmul.mubr.f32.gmra.mxu0 %v248
        %v551 = vpop.f32.mrf.mxu0
        %v552 = vadd.f32 0.0, %v551
        %v553 = vpop.f32.mrf.mxu0
        %554 = vmatprep.mubr.f32.mxu0 0.0
        %555 = vmatmul.mubr.f32.gmra.mxu0 %v249
        %v556 = vpop.f32.mrf.mxu0
        %v557 = vadd.f32 0.0, %v556
        %v558 = vpop.f32.mrf.mxu0
        %559 = vmatprep.mubr.f32.mxu0 0.0
        %560 = vmatmul.mubr.f32.gmra.mxu0 %v250
        %v561 = vpop.f32.mrf.mxu0
        %v562 = vadd.f32 0.0, %v561
        %v563 = vpop.f32.mrf.mxu0
        %564 = vmatprep.mubr.f32.mxu0 0.0
        %565 = vmatmul.mubr.f32.gmra.mxu0 %v251
        %v566 = vpop.f32.mrf.mxu0
        %v567 = vadd.f32 0.0, %v566
        %v568 = vpop.f32.mrf.mxu0
        %569 = vmatprep.mubr.f32.mxu0 0.0
        %570 = vmatmul.mubr.f32.gmra.mxu0 %v252
        %v571 = vpop.f32.mrf.mxu0
        %v572 = vadd.f32 0.0, %v571
        %v573 = vpop.f32.mrf.mxu0
        %574 = vdwg.mxu0
        %575 = vst [vmem:[%s234] sm:$0xff] %v497
        %576 = vst [vmem:[%s234 + $0x8] sm:$0xff] %v502
        %577 = vst [vmem:[%s234 + $0x10] sm:$0xff] %v507
        %578 = vst [vmem:[%s234 + $0x18] sm:$0xff] %v512
        %579 = vst [vmem:[%s234 + $0x20] sm:$0xff] %v517
        %580 = vst [vmem:[%s234 + $0x28] sm:$0xff] %v522
        %581 = vst [vmem:[%s234 + $0x30] sm:$0xff] %v527
        %582 = vst [vmem:[%s234 + $0x38] sm:$0xff] %v532
        %583 = vst [vmem:[%s234 + $0x40] sm:$0xff] %v537
        %584 = vst [vmem:[%s234 + $0x48] sm:$0xff] %v542
        %585 = vst [vmem:[%s234 + $0x50] sm:$0xff] %v547
        %586 = vst [vmem:[%s234 + $0x58] sm:$0xff] %v552
        %587 = vst [vmem:[%s234 + $0x60] sm:$0xff] %v557
        %588 = vst [vmem:[%s234 + $0x68] sm:$0xff] %v562
        %589 = vst [vmem:[%s234 + $0x70] sm:$0xff] %v567
        %590 = vst [vmem:[%s234 + $0x78] sm:$0xff] %v572
        %s591 = scalar_lea.vmem %s212, 128 [#allocation7]
        %v592 = vld [vmem:[%s591] sm:$0xff]
        %v593 = vld [vmem:[%s591 + $0x8] sm:$0xff]
        %v594 = vld [vmem:[%s591 + $0x10] sm:$0xff]
        %v595 = vld [vmem:[%s591 + $0x18] sm:$0xff]
        %v596 = vld [vmem:[%s591 + $0x20] sm:$0xff]
        %v597 = vld [vmem:[%s591 + $0x28] sm:$0xff]
        %v598 = vld [vmem:[%s591 + $0x30] sm:$0xff]
        %v599 = vld [vmem:[%s591 + $0x38] sm:$0xff]
        %v600 = vld [vmem:[%s591 + $0x40] sm:$0xff]
        %v601 = vld [vmem:[%s591 + $0x48] sm:$0xff]
        %v602 = vld [vmem:[%s591 + $0x50] sm:$0xff]
        %v603 = vld [vmem:[%s591 + $0x58] sm:$0xff]
        %v604 = vld [vmem:[%s591 + $0x60] sm:$0xff]
        %v605 = vld [vmem:[%s591 + $0x68] sm:$0xff]
        %v606 = vld [vmem:[%s591 + $0x70] sm:$0xff]
        %v607 = vld [vmem:[%s591 + $0x78] sm:$0xff]
        %608 = vmatprep.subr.mxu0 0.0
        %609 = vmatpush1.msra.mxu0 %v268
        %610 = vmatprep.subr.mxu0 0.0
        %611 = vmatpush1.msra.mxu0 %v267
        %612 = vmatprep.subr.mxu0 0.0
        %613 = vmatpush1.msra.mxu0 %v266
        %614 = vmatprep.subr.mxu0 0.0
        %615 = vmatpush1.msra.mxu0 %v265
        %616 = vmatprep.subr.mxu0 0.0
        %617 = vmatpush1.msra.mxu0 %v264
        %618 = vmatprep.subr.mxu0 0.0
        %619 = vmatpush1.msra.mxu0 %v263
        %620 = vmatprep.subr.mxu0 0.0
        %621 = vmatpush1.msra.mxu0 %v262
        %622 = vmatprep.subr.mxu0 0.0
        %623 = vmatpush1.msra.mxu0 %v261
        %624 = vmatprep.subr.mxu0 0.0
        %625 = vmatpush1.msra.mxu0 %v260
        %626 = vmatprep.subr.mxu0 0.0
        %627 = vmatpush1.msra.mxu0 %v259
        %628 = vmatprep.subr.mxu0 0.0
        %629 = vmatpush1.msra.mxu0 %v258
        %630 = vmatprep.subr.mxu0 0.0
        %631 = vmatpush1.msra.mxu0 %v257
        %632 = vmatprep.subr.mxu0 0.0
        %633 = vmatpush1.msra.mxu0 %v256
        %634 = vmatprep.subr.mxu0 0.0
        %635 = vmatpush1.msra.mxu0 %v255
        %636 = vmatprep.subr.mxu0 0.0
        %637 = vmatpush1.msra.mxu0 %v254
        %638 = vmatprep.subr.mxu0 0.0
        %639 = vmatpush1.msra.mxu0 %v253
        %640 = vmatprep.subr.mxu0 0.0
        %641 = vmatpush2.msra.mxu0 0.0
        %642 = vmatprep.subr.mxu0 0.0
        %643 = vmatpush2.msra.mxu0 0.0
        %644 = vmatprep.subr.mxu0 0.0
        %645 = vmatpush2.msra.mxu0 0.0
        %646 = vmatprep.subr.mxu0 0.0
        %647 = vmatpush2.msra.mxu0 0.0
        %648 = vmatprep.subr.mxu0 0.0
        %649 = vmatpush2.msra.mxu0 0.0
        %650 = vmatprep.subr.mxu0 0.0
        %651 = vmatpush2.msra.mxu0 0.0
        %652 = vmatprep.subr.mxu0 0.0
        %653 = vmatpush2.msra.mxu0 0.0
        %654 = vmatprep.subr.mxu0 0.0
        %655 = vmatpush2.msra.mxu0 0.0
        %656 = vmatprep.subr.mxu0 0.0
        %657 = vmatpush2.msra.mxu0 0.0
        %658 = vmatprep.subr.mxu0 0.0
        %659 = vmatpush2.msra.mxu0 0.0
        %660 = vmatprep.subr.mxu0 0.0
        %661 = vmatpush2.msra.mxu0 0.0
        %662 = vmatprep.subr.mxu0 0.0
        %663 = vmatpush2.msra.mxu0 0.0
        %664 = vmatprep.subr.mxu0 0.0
        %665 = vmatpush2.msra.mxu0 0.0
        %666 = vmatprep.subr.mxu0 0.0
        %667 = vmatpush2.msra.mxu0 0.0
        %668 = vmatprep.subr.mxu0 0.0
        %669 = vmatpush2.msra.mxu0 0.0
        %670 = vmatprep.subr.mxu0 0.0
        %671 = vmatpush2.msra.mxu0 0.0
        %672 = vmatprep.mubr.f32.mxu0 0.0
        %673 = vmatmul.mubr.f32.gmra.mxu0 %v592
        %v674 = vpop.f32.mrf.mxu0
        %v675 = vadd.f32 0.0, %v674
        %v676 = vpop.f32.mrf.mxu0
        %677 = vmatprep.mubr.f32.mxu0 0.0
        %678 = vmatmul.mubr.f32.gmra.mxu0 %v593
        %v679 = vpop.f32.mrf.mxu0
        %v680 = vadd.f32 0.0, %v679
        %v681 = vpop.f32.mrf.mxu0
        %682 = vmatprep.mubr.f32.mxu0 0.0
        %683 = vmatmul.mubr.f32.gmra.mxu0 %v594
        %v684 = vpop.f32.mrf.mxu0
        %v685 = vadd.f32 0.0, %v684
        %v686 = vpop.f32.mrf.mxu0
        %687 = vmatprep.mubr.f32.mxu0 0.0
        %688 = vmatmul.mubr.f32.gmra.mxu0 %v595
        %v689 = vpop.f32.mrf.mxu0
        %v690 = vadd.f32 0.0, %v689
        %v691 = vpop.f32.mrf.mxu0
        %692 = vmatprep.mubr.f32.mxu0 0.0
        %693 = vmatmul.mubr.f32.gmra.mxu0 %v596
        %v694 = vpop.f32.mrf.mxu0
        %v695 = vadd.f32 0.0, %v694
        %v696 = vpop.f32.mrf.mxu0
        %697 = vmatprep.mubr.f32.mxu0 0.0
        %698 = vmatmul.mubr.f32.gmra.mxu0 %v597
        %v699 = vpop.f32.mrf.mxu0
        %v700 = vadd.f32 0.0, %v699
        %v701 = vpop.f32.mrf.mxu0
        %702 = vmatprep.mubr.f32.mxu0 0.0
        %703 = vmatmul.mubr.f32.gmra.mxu0 %v598
        %v704 = vpop.f32.mrf.mxu0
        %v705 = vadd.f32 0.0, %v704
        %v706 = vpop.f32.mrf.mxu0
        %707 = vmatprep.mubr.f32.mxu0 0.0
        %708 = vmatmul.mubr.f32.gmra.mxu0 %v599
        %v709 = vpop.f32.mrf.mxu0
        %v710 = vadd.f32 0.0, %v709
        %v711 = vpop.f32.mrf.mxu0
        %712 = vmatprep.mubr.f32.mxu0 0.0
        %713 = vmatmul.mubr.f32.gmra.mxu0 %v600
        %v714 = vpop.f32.mrf.mxu0
        %v715 = vadd.f32 0.0, %v714
        %v716 = vpop.f32.mrf.mxu0
        %717 = vmatprep.mubr.f32.mxu0 0.0
        %718 = vmatmul.mubr.f32.gmra.mxu0 %v601
        %v719 = vpop.f32.mrf.mxu0
        %v720 = vadd.f32 0.0, %v719
        %v721 = vpop.f32.mrf.mxu0
        %722 = vmatprep.mubr.f32.mxu0 0.0
        %723 = vmatmul.mubr.f32.gmra.mxu0 %v602
        %v724 = vpop.f32.mrf.mxu0
        %v725 = vadd.f32 0.0, %v724
        %v726 = vpop.f32.mrf.mxu0
        %727 = vmatprep.mubr.f32.mxu0 0.0
        %728 = vmatmul.mubr.f32.gmra.mxu0 %v603
        %v729 = vpop.f32.mrf.mxu0
        %v730 = vadd.f32 0.0, %v729
        %v731 = vpop.f32.mrf.mxu0
        %732 = vmatprep.mubr.f32.mxu0 0.0
        %733 = vmatmul.mubr.f32.gmra.mxu0 %v604
        %v734 = vpop.f32.mrf.mxu0
        %v735 = vadd.f32 0.0, %v734
        %v736 = vpop.f32.mrf.mxu0
        %737 = vmatprep.mubr.f32.mxu0 0.0
        %738 = vmatmul.mubr.f32.gmra.mxu0 %v605
        %v739 = vpop.f32.mrf.mxu0
        %v740 = vadd.f32 0.0, %v739
        %v741 = vpop.f32.mrf.mxu0
        %742 = vmatprep.mubr.f32.mxu0 0.0
        %743 = vmatmul.mubr.f32.gmra.mxu0 %v606
        %v744 = vpop.f32.mrf.mxu0
        %v745 = vadd.f32 0.0, %v744
        %v746 = vpop.f32.mrf.mxu0
        %747 = vmatprep.mubr.f32.mxu0 0.0
        %748 = vmatmul.mubr.f32.gmra.mxu0 %v607
        %v749 = vpop.f32.mrf.mxu0
        %v750 = vadd.f32 0.0, %v749
        %v751 = vpop.f32.mrf.mxu0
        %752 = vdwg.mxu0
        %753 = vmatprep.subr.mxu0 0.0
        %754 = vmatpush1.msra.mxu0 %v750
        %755 = vmatprep.subr.mxu0 0.0
        %756 = vmatpush1.msra.mxu0 %v745
        %757 = vmatprep.subr.mxu0 0.0
        %758 = vmatpush1.msra.mxu0 %v740
        %759 = vmatprep.subr.mxu0 0.0
        %760 = vmatpush1.msra.mxu0 %v735
        %761 = vmatprep.subr.mxu0 0.0
        %762 = vmatpush1.msra.mxu0 %v730
        %763 = vmatprep.subr.mxu0 0.0
        %764 = vmatpush1.msra.mxu0 %v725
        %765 = vmatprep.subr.mxu0 0.0
        %766 = vmatpush1.msra.mxu0 %v720
        %767 = vmatprep.subr.mxu0 0.0
        %768 = vmatpush1.msra.mxu0 %v715
        %769 = vmatprep.subr.mxu0 0.0
        %770 = vmatpush1.msra.mxu0 %v710
        %771 = vmatprep.subr.mxu0 0.0
        %772 = vmatpush1.msra.mxu0 %v705
        %773 = vmatprep.subr.mxu0 0.0
        %774 = vmatpush1.msra.mxu0 %v700
        %775 = vmatprep.subr.mxu0 0.0
        %776 = vmatpush1.msra.mxu0 %v695
        %777 = vmatprep.subr.mxu0 0.0
        %778 = vmatpush1.msra.mxu0 %v690
        %779 = vmatprep.subr.mxu0 0.0
        %780 = vmatpush1.msra.mxu0 %v685
        %781 = vmatprep.subr.mxu0 0.0
        %782 = vmatpush1.msra.mxu0 %v680
        %783 = vmatprep.subr.mxu0 0.0
        %784 = vmatpush1.msra.mxu0 %v675
        %785 = vmatprep.subr.mxu0 0.0
        %786 = vmatpush2.msra.mxu0 0.0
        %787 = vmatprep.subr.mxu0 0.0
        %788 = vmatpush2.msra.mxu0 0.0
        %789 = vmatprep.subr.mxu0 0.0
        %790 = vmatpush2.msra.mxu0 0.0
        %791 = vmatprep.subr.mxu0 0.0
        %792 = vmatpush2.msra.mxu0 0.0
        %793 = vmatprep.subr.mxu0 0.0
        %794 = vmatpush2.msra.mxu0 0.0
        %795 = vmatprep.subr.mxu0 0.0
        %796 = vmatpush2.msra.mxu0 0.0
        %797 = vmatprep.subr.mxu0 0.0
        %798 = vmatpush2.msra.mxu0 0.0
        %799 = vmatprep.subr.mxu0 0.0
        %800 = vmatpush2.msra.mxu0 0.0
        %801 = vmatprep.subr.mxu0 0.0
        %802 = vmatpush2.msra.mxu0 0.0
        %803 = vmatprep.subr.mxu0 0.0
        %804 = vmatpush2.msra.mxu0 0.0
        %805 = vmatprep.subr.mxu0 0.0
        %806 = vmatpush2.msra.mxu0 0.0
        %807 = vmatprep.subr.mxu0 0.0
        %808 = vmatpush2.msra.mxu0 0.0
        %809 = vmatprep.subr.mxu0 0.0
        %810 = vmatpush2.msra.mxu0 0.0
        %811 = vmatprep.subr.mxu0 0.0
        %812 = vmatpush2.msra.mxu0 0.0
        %813 = vmatprep.subr.mxu0 0.0
        %814 = vmatpush2.msra.mxu0 0.0
        %815 = vmatprep.subr.mxu0 0.0
        %816 = vmatpush2.msra.mxu0 0.0
        %817 = vmatprep.mubr.f32.mxu0 0.0
        %818 = vmatmul.mubr.f32.gmra.mxu0 %v237
        %v819 = vpop.f32.mrf.mxu0
        %v820 = vadd.f32 0.0, %v819
        %v821 = vpop.f32.mrf.mxu0
        %822 = vmatprep.mubr.f32.mxu0 0.0
        %823 = vmatmul.mubr.f32.gmra.mxu0 %v238
        %v824 = vpop.f32.mrf.mxu0
        %v825 = vadd.f32 0.0, %v824
        %v826 = vpop.f32.mrf.mxu0
        %827 = vmatprep.mubr.f32.mxu0 0.0
        %828 = vmatmul.mubr.f32.gmra.mxu0 %v239
        %v829 = vpop.f32.mrf.mxu0
        %v830 = vadd.f32 0.0, %v829
        %v831 = vpop.f32.mrf.mxu0
        %832 = vmatprep.mubr.f32.mxu0 0.0
        %833 = vmatmul.mubr.f32.gmra.mxu0 %v240
        %v834 = vpop.f32.mrf.mxu0
        %v835 = vadd.f32 0.0, %v834
        %v836 = vpop.f32.mrf.mxu0
        %837 = vmatprep.mubr.f32.mxu0 0.0
        %838 = vmatmul.mubr.f32.gmra.mxu0 %v241
        %v839 = vpop.f32.mrf.mxu0
        %v840 = vadd.f32 0.0, %v839
        %v841 = vpop.f32.mrf.mxu0
        %842 = vmatprep.mubr.f32.mxu0 0.0
        %843 = vmatmul.mubr.f32.gmra.mxu0 %v242
        %v844 = vpop.f32.mrf.mxu0
        %v845 = vadd.f32 0.0, %v844
        %v846 = vpop.f32.mrf.mxu0
        %847 = vmatprep.mubr.f32.mxu0 0.0
        %848 = vmatmul.mubr.f32.gmra.mxu0 %v243
        %v849 = vpop.f32.mrf.mxu0
        %v850 = vadd.f32 0.0, %v849
        %v851 = vpop.f32.mrf.mxu0
        %852 = vmatprep.mubr.f32.mxu0 0.0
        %853 = vmatmul.mubr.f32.gmra.mxu0 %v244
        %v854 = vpop.f32.mrf.mxu0
        %v855 = vadd.f32 0.0, %v854
        %v856 = vpop.f32.mrf.mxu0
        %857 = vmatprep.mubr.f32.mxu0 0.0
        %858 = vmatmul.mubr.f32.gmra.mxu0 %v245
        %v859 = vpop.f32.mrf.mxu0
        %v860 = vadd.f32 0.0, %v859
        %v861 = vpop.f32.mrf.mxu0
        %862 = vmatprep.mubr.f32.mxu0 0.0
        %863 = vmatmul.mubr.f32.gmra.mxu0 %v246
        %v864 = vpop.f32.mrf.mxu0
        %v865 = vadd.f32 0.0, %v864
        %v866 = vpop.f32.mrf.mxu0
        %867 = vmatprep.mubr.f32.mxu0 0.0
        %868 = vmatmul.mubr.f32.gmra.mxu0 %v247
        %v869 = vpop.f32.mrf.mxu0
        %v870 = vadd.f32 0.0, %v869
        %v871 = vpop.f32.mrf.mxu0
        %872 = vmatprep.mubr.f32.mxu0 0.0
        %873 = vmatmul.mubr.f32.gmra.mxu0 %v248
        %v874 = vpop.f32.mrf.mxu0
        %v875 = vadd.f32 0.0, %v874
        %v876 = vpop.f32.mrf.mxu0
        %877 = vmatprep.mubr.f32.mxu0 0.0
        %878 = vmatmul.mubr.f32.gmra.mxu0 %v249
        %v879 = vpop.f32.mrf.mxu0
        %v880 = vadd.f32 0.0, %v879
        %v881 = vpop.f32.mrf.mxu0
        %882 = vmatprep.mubr.f32.mxu0 0.0
        %883 = vmatmul.mubr.f32.gmra.mxu0 %v250
        %v884 = vpop.f32.mrf.mxu0
        %v885 = vadd.f32 0.0, %v884
        %v886 = vpop.f32.mrf.mxu0
        %887 = vmatprep.mubr.f32.mxu0 0.0
        %888 = vmatmul.mubr.f32.gmra.mxu0 %v251
        %v889 = vpop.f32.mrf.mxu0
        %v890 = vadd.f32 0.0, %v889
        %v891 = vpop.f32.mrf.mxu0
        %892 = vmatprep.mubr.f32.mxu0 0.0
        %893 = vmatmul.mubr.f32.gmra.mxu0 %v252
        %v894 = vpop.f32.mrf.mxu0
        %v895 = vadd.f32 0.0, %v894
        %v896 = vpop.f32.mrf.mxu0
        %897 = vdwg.mxu0
        %s898 = scalar_lea.vmem %s234, 128 [#allocation8]
        %899 = vst [vmem:[%s898] sm:$0xff] %v820
        %900 = vst [vmem:[%s898 + $0x8] sm:$0xff] %v825
        %901 = vst [vmem:[%s898 + $0x10] sm:$0xff] %v830
        %902 = vst [vmem:[%s898 + $0x18] sm:$0xff] %v835
        %903 = vst [vmem:[%s898 + $0x20] sm:$0xff] %v840
        %904 = vst [vmem:[%s898 + $0x28] sm:$0xff] %v845
        %905 = vst [vmem:[%s898 + $0x30] sm:$0xff] %v850
        %906 = vst [vmem:[%s898 + $0x38] sm:$0xff] %v855
        %907 = vst [vmem:[%s898 + $0x40] sm:$0xff] %v860
        %908 = vst [vmem:[%s898 + $0x48] sm:$0xff] %v865
        %909 = vst [vmem:[%s898 + $0x50] sm:$0xff] %v870
        %910 = vst [vmem:[%s898 + $0x58] sm:$0xff] %v875
        %911 = vst [vmem:[%s898 + $0x60] sm:$0xff] %v880
        %912 = vst [vmem:[%s898 + $0x68] sm:$0xff] %v885
        %913 = vst [vmem:[%s898 + $0x70] sm:$0xff] %v890
        %914 = vst [vmem:[%s898 + $0x78] sm:$0xff] %v895
        %s915 = scalar_lea.vmem %s212, 256 [#allocation7]
        %v916 = vld [vmem:[%s915] sm:$0xff]
        %v917 = vld [vmem:[%s915 + $0x8] sm:$0xff]
        %v918 = vld [vmem:[%s915 + $0x10] sm:$0xff]
        %v919 = vld [vmem:[%s915 + $0x18] sm:$0xff]
        %v920 = vld [vmem:[%s915 + $0x20] sm:$0xff]
        %v921 = vld [vmem:[%s915 + $0x28] sm:$0xff]
        %v922 = vld [vmem:[%s915 + $0x30] sm:$0xff]
        %v923 = vld [vmem:[%s915 + $0x38] sm:$0xff]
        %v924 = vld [vmem:[%s915 + $0x40] sm:$0xff]
        %v925 = vld [vmem:[%s915 + $0x48] sm:$0xff]
        %v926 = vld [vmem:[%s915 + $0x50] sm:$0xff]
        %v927 = vld [vmem:[%s915 + $0x58] sm:$0xff]
        %v928 = vld [vmem:[%s915 + $0x60] sm:$0xff]
        %v929 = vld [vmem:[%s915 + $0x68] sm:$0xff]
        %v930 = vld [vmem:[%s915 + $0x70] sm:$0xff]
        %v931 = vld [vmem:[%s915 + $0x78] sm:$0xff]
        %932 = vmatprep.subr.mxu0 0.0
        %933 = vmatpush1.msra.mxu0 %v268
        %934 = vmatprep.subr.mxu0 0.0
        %935 = vmatpush1.msra.mxu0 %v267
        %936 = vmatprep.subr.mxu0 0.0
        %937 = vmatpush1.msra.mxu0 %v266
        %938 = vmatprep.subr.mxu0 0.0
        %939 = vmatpush1.msra.mxu0 %v265
        %940 = vmatprep.subr.mxu0 0.0
        %941 = vmatpush1.msra.mxu0 %v264
        %942 = vmatprep.subr.mxu0 0.0
        %943 = vmatpush1.msra.mxu0 %v263
        %944 = vmatprep.subr.mxu0 0.0
        %945 = vmatpush1.msra.mxu0 %v262
        %946 = vmatprep.subr.mxu0 0.0
        %947 = vmatpush1.msra.mxu0 %v261
        %948 = vmatprep.subr.mxu0 0.0
        %949 = vmatpush1.msra.mxu0 %v260
        %950 = vmatprep.subr.mxu0 0.0
        %951 = vmatpush1.msra.mxu0 %v259
        %952 = vmatprep.subr.mxu0 0.0
        %953 = vmatpush1.msra.mxu0 %v258
        %954 = vmatprep.subr.mxu0 0.0
        %955 = vmatpush1.msra.mxu0 %v257
        %956 = vmatprep.subr.mxu0 0.0
        %957 = vmatpush1.msra.mxu0 %v256
        %958 = vmatprep.subr.mxu0 0.0
        %959 = vmatpush1.msra.mxu0 %v255
        %960 = vmatprep.subr.mxu0 0.0
        %961 = vmatpush1.msra.mxu0 %v254
        %962 = vmatprep.subr.mxu0 0.0
        %963 = vmatpush1.msra.mxu0 %v253
        %964 = vmatprep.subr.mxu0 0.0
        %965 = vmatpush2.msra.mxu0 0.0
        %966 = vmatprep.subr.mxu0 0.0
        %967 = vmatpush2.msra.mxu0 0.0
        %968 = vmatprep.subr.mxu0 0.0
        %969 = vmatpush2.msra.mxu0 0.0
        %970 = vmatprep.subr.mxu0 0.0
        %971 = vmatpush2.msra.mxu0 0.0
        %972 = vmatprep.subr.mxu0 0.0
        %973 = vmatpush2.msra.mxu0 0.0
        %974 = vmatprep.subr.mxu0 0.0
        %975 = vmatpush2.msra.mxu0 0.0
        %976 = vmatprep.subr.mxu0 0.0
        %977 = vmatpush2.msra.mxu0 0.0
        %978 = vmatprep.subr.mxu0 0.0
        %979 = vmatpush2.msra.mxu0 0.0
        %980 = vmatprep.subr.mxu0 0.0
        %981 = vmatpush2.msra.mxu0 0.0
        %982 = vmatprep.subr.mxu0 0.0
        %983 = vmatpush2.msra.mxu0 0.0
        %984 = vmatprep.subr.mxu0 0.0
        %985 = vmatpush2.msra.mxu0 0.0
        %986 = vmatprep.subr.mxu0 0.0
        %987 = vmatpush2.msra.mxu0 0.0
        %988 = vmatprep.subr.mxu0 0.0
        %989 = vmatpush2.msra.mxu0 0.0
        %990 = vmatprep.subr.mxu0 0.0
        %991 = vmatpush2.msra.mxu0 0.0
        %992 = vmatprep.subr.mxu0 0.0
        %993 = vmatpush2.msra.mxu0 0.0
        %994 = vmatprep.subr.mxu0 0.0
        %995 = vmatpush2.msra.mxu0 0.0
        %996 = vmatprep.mubr.f32.mxu0 0.0
        %997 = vmatmul.mubr.f32.gmra.mxu0 %v916
        %v998 = vpop.f32.mrf.mxu0
        %v999 = vadd.f32 0.0, %v998
        %v1000 = vpop.f32.mrf.mxu0
        %1001 = vmatprep.mubr.f32.mxu0 0.0
        %1002 = vmatmul.mubr.f32.gmra.mxu0 %v917
        %v1003 = vpop.f32.mrf.mxu0
        %v1004 = vadd.f32 0.0, %v1003
        %v1005 = vpop.f32.mrf.mxu0
        %1006 = vmatprep.mubr.f32.mxu0 0.0
        %1007 = vmatmul.mubr.f32.gmra.mxu0 %v918
        %v1008 = vpop.f32.mrf.mxu0
        %v1009 = vadd.f32 0.0, %v1008
        %v1010 = vpop.f32.mrf.mxu0
        %1011 = vmatprep.mubr.f32.mxu0 0.0
        %1012 = vmatmul.mubr.f32.gmra.mxu0 %v919
        %v1013 = vpop.f32.mrf.mxu0
        %v1014 = vadd.f32 0.0, %v1013
        %v1015 = vpop.f32.mrf.mxu0
        %1016 = vmatprep.mubr.f32.mxu0 0.0
        %1017 = vmatmul.mubr.f32.gmra.mxu0 %v920
        %v1018 = vpop.f32.mrf.mxu0
        %v1019 = vadd.f32 0.0, %v1018
        %v1020 = vpop.f32.mrf.mxu0
        %1021 = vmatprep.mubr.f32.mxu0 0.0
        %1022 = vmatmul.mubr.f32.gmra.mxu0 %v921
        %v1023 = vpop.f32.mrf.mxu0
        %v1024 = vadd.f32 0.0, %v1023
        %v1025 = vpop.f32.mrf.mxu0
        %1026 = vmatprep.mubr.f32.mxu0 0.0
        %1027 = vmatmul.mubr.f32.gmra.mxu0 %v922
        %v1028 = vpop.f32.mrf.mxu0
        %v1029 = vadd.f32 0.0, %v1028
        %v1030 = vpop.f32.mrf.mxu0
        %1031 = vmatprep.mubr.f32.mxu0 0.0
        %1032 = vmatmul.mubr.f32.gmra.mxu0 %v923
        %v1033 = vpop.f32.mrf.mxu0
        %v1034 = vadd.f32 0.0, %v1033
        %v1035 = vpop.f32.mrf.mxu0
        %1036 = vmatprep.mubr.f32.mxu0 0.0
        %1037 = vmatmul.mubr.f32.gmra.mxu0 %v924
        %v1038 = vpop.f32.mrf.mxu0
        %v1039 = vadd.f32 0.0, %v1038
        %v1040 = vpop.f32.mrf.mxu0
        %1041 = vmatprep.mubr.f32.mxu0 0.0
        %1042 = vmatmul.mubr.f32.gmra.mxu0 %v925
        %v1043 = vpop.f32.mrf.mxu0
        %v1044 = vadd.f32 0.0, %v1043
        %v1045 = vpop.f32.mrf.mxu0
        %1046 = vmatprep.mubr.f32.mxu0 0.0
        %1047 = vmatmul.mubr.f32.gmra.mxu0 %v926
        %v1048 = vpop.f32.mrf.mxu0
        %v1049 = vadd.f32 0.0, %v1048
        %v1050 = vpop.f32.mrf.mxu0
        %1051 = vmatprep.mubr.f32.mxu0 0.0
        %1052 = vmatmul.mubr.f32.gmra.mxu0 %v927
        %v1053 = vpop.f32.mrf.mxu0
        %v1054 = vadd.f32 0.0, %v1053
        %v1055 = vpop.f32.mrf.mxu0
        %1056 = vmatprep.mubr.f32.mxu0 0.0
        %1057 = vmatmul.mubr.f32.gmra.mxu0 %v928
        %v1058 = vpop.f32.mrf.mxu0
        %v1059 = vadd.f32 0.0, %v1058
        %v1060 = vpop.f32.mrf.mxu0
        %1061 = vmatprep.mubr.f32.mxu0 0.0
        %1062 = vmatmul.mubr.f32.gmra.mxu0 %v929
        %v1063 = vpop.f32.mrf.mxu0
        %v1064 = vadd.f32 0.0, %v1063
        %v1065 = vpop.f32.mrf.mxu0
        %1066 = vmatprep.mubr.f32.mxu0 0.0
        %1067 = vmatmul.mubr.f32.gmra.mxu0 %v930
        %v1068 = vpop.f32.mrf.mxu0
        %v1069 = vadd.f32 0.0, %v1068
        %v1070 = vpop.f32.mrf.mxu0
        %1071 = vmatprep.mubr.f32.mxu0 0.0
        %1072 = vmatmul.mubr.f32.gmra.mxu0 %v931
        %v1073 = vpop.f32.mrf.mxu0
        %v1074 = vadd.f32 0.0, %v1073
        %v1075 = vpop.f32.mrf.mxu0
        %1076 = vdwg.mxu0
        %1077 = vmatprep.subr.mxu0 0.0
        %1078 = vmatpush1.msra.mxu0 %v1074
        %1079 = vmatprep.subr.mxu0 0.0
        %1080 = vmatpush1.msra.mxu0 %v1069
        %1081 = vmatprep.subr.mxu0 0.0
        %1082 = vmatpush1.msra.mxu0 %v1064
        %1083 = vmatprep.subr.mxu0 0.0
        %1084 = vmatpush1.msra.mxu0 %v1059
        %1085 = vmatprep.subr.mxu0 0.0
        %1086 = vmatpush1.msra.mxu0 %v1054
        %1087 = vmatprep.subr.mxu0 0.0
        %1088 = vmatpush1.msra.mxu0 %v1049
        %1089 = vmatprep.subr.mxu0 0.0
        %1090 = vmatpush1.msra.mxu0 %v1044
        %1091 = vmatprep.subr.mxu0 0.0
        %1092 = vmatpush1.msra.mxu0 %v1039
        %1093 = vmatprep.subr.mxu0 0.0
        %1094 = vmatpush1.msra.mxu0 %v1034
        %1095 = vmatprep.subr.mxu0 0.0
        %1096 = vmatpush1.msra.mxu0 %v1029
        %1097 = vmatprep.subr.mxu0 0.0
        %1098 = vmatpush1.msra.mxu0 %v1024
        %1099 = vmatprep.subr.mxu0 0.0
        %1100 = vmatpush1.msra.mxu0 %v1019
        %1101 = vmatprep.subr.mxu0 0.0
        %1102 = vmatpush1.msra.mxu0 %v1014
        %1103 = vmatprep.subr.mxu0 0.0
        %1104 = vmatpush1.msra.mxu0 %v1009
        %1105 = vmatprep.subr.mxu0 0.0
        %1106 = vmatpush1.msra.mxu0 %v1004
        %1107 = vmatprep.subr.mxu0 0.0
        %1108 = vmatpush1.msra.mxu0 %v999
        %1109 = vmatprep.subr.mxu0 0.0
        %1110 = vmatpush2.msra.mxu0 0.0
        %1111 = vmatprep.subr.mxu0 0.0
        %1112 = vmatpush2.msra.mxu0 0.0
        %1113 = vmatprep.subr.mxu0 0.0
        %1114 = vmatpush2.msra.mxu0 0.0
        %1115 = vmatprep.subr.mxu0 0.0
        %1116 = vmatpush2.msra.mxu0 0.0
        %1117 = vmatprep.subr.mxu0 0.0
        %1118 = vmatpush2.msra.mxu0 0.0
        %1119 = vmatprep.subr.mxu0 0.0
        %1120 = vmatpush2.msra.mxu0 0.0
        %1121 = vmatprep.subr.mxu0 0.0
        %1122 = vmatpush2.msra.mxu0 0.0
        %1123 = vmatprep.subr.mxu0 0.0
        %1124 = vmatpush2.msra.mxu0 0.0
        %1125 = vmatprep.subr.mxu0 0.0
        %1126 = vmatpush2.msra.mxu0 0.0
        %1127 = vmatprep.subr.mxu0 0.0
        %1128 = vmatpush2.msra.mxu0 0.0
        %1129 = vmatprep.subr.mxu0 0.0
        %1130 = vmatpush2.msra.mxu0 0.0
        %1131 = vmatprep.subr.mxu0 0.0
        %1132 = vmatpush2.msra.mxu0 0.0
        %1133 = vmatprep.subr.mxu0 0.0
        %1134 = vmatpush2.msra.mxu0 0.0
        %1135 = vmatprep.subr.mxu0 0.0
        %1136 = vmatpush2.msra.mxu0 0.0
        %1137 = vmatprep.subr.mxu0 0.0
        %1138 = vmatpush2.msra.mxu0 0.0
        %1139 = vmatprep.subr.mxu0 0.0
        %1140 = vmatpush2.msra.mxu0 0.0
        %1141 = vmatprep.mubr.f32.mxu0 0.0
        %1142 = vmatmul.mubr.f32.gmra.mxu0 %v237
        %v1143 = vpop.f32.mrf.mxu0
        %v1144 = vadd.f32 0.0, %v1143
        %v1145 = vpop.f32.mrf.mxu0
        %1146 = vmatprep.mubr.f32.mxu0 0.0
        %1147 = vmatmul.mubr.f32.gmra.mxu0 %v238
        %v1148 = vpop.f32.mrf.mxu0
        %v1149 = vadd.f32 0.0, %v1148
        %v1150 = vpop.f32.mrf.mxu0
        %1151 = vmatprep.mubr.f32.mxu0 0.0
        %1152 = vmatmul.mubr.f32.gmra.mxu0 %v239
        %v1153 = vpop.f32.mrf.mxu0
        %v1154 = vadd.f32 0.0, %v1153
        %v1155 = vpop.f32.mrf.mxu0
        %1156 = vmatprep.mubr.f32.mxu0 0.0
        %1157 = vmatmul.mubr.f32.gmra.mxu0 %v240
        %v1158 = vpop.f32.mrf.mxu0
        %v1159 = vadd.f32 0.0, %v1158
        %v1160 = vpop.f32.mrf.mxu0
        %1161 = vmatprep.mubr.f32.mxu0 0.0
        %1162 = vmatmul.mubr.f32.gmra.mxu0 %v241
        %v1163 = vpop.f32.mrf.mxu0
        %v1164 = vadd.f32 0.0, %v1163
        %v1165 = vpop.f32.mrf.mxu0
        %1166 = vmatprep.mubr.f32.mxu0 0.0
        %1167 = vmatmul.mubr.f32.gmra.mxu0 %v242
        %v1168 = vpop.f32.mrf.mxu0
        %v1169 = vadd.f32 0.0, %v1168
        %v1170 = vpop.f32.mrf.mxu0
        %1171 = vmatprep.mubr.f32.mxu0 0.0
        %1172 = vmatmul.mubr.f32.gmra.mxu0 %v243
        %v1173 = vpop.f32.mrf.mxu0
        %v1174 = vadd.f32 0.0, %v1173
        %v1175 = vpop.f32.mrf.mxu0
        %1176 = vmatprep.mubr.f32.mxu0 0.0
        %1177 = vmatmul.mubr.f32.gmra.mxu0 %v244
        %v1178 = vpop.f32.mrf.mxu0
        %v1179 = vadd.f32 0.0, %v1178
        %v1180 = vpop.f32.mrf.mxu0
        %1181 = vmatprep.mubr.f32.mxu0 0.0
        %1182 = vmatmul.mubr.f32.gmra.mxu0 %v245
        %v1183 = vpop.f32.mrf.mxu0
        %v1184 = vadd.f32 0.0, %v1183
        %v1185 = vpop.f32.mrf.mxu0
        %1186 = vmatprep.mubr.f32.mxu0 0.0
        %1187 = vmatmul.mubr.f32.gmra.mxu0 %v246
        %v1188 = vpop.f32.mrf.mxu0
        %v1189 = vadd.f32 0.0, %v1188
        %v1190 = vpop.f32.mrf.mxu0
        %1191 = vmatprep.mubr.f32.mxu0 0.0
        %1192 = vmatmul.mubr.f32.gmra.mxu0 %v247
        %v1193 = vpop.f32.mrf.mxu0
        %v1194 = vadd.f32 0.0, %v1193
        %v1195 = vpop.f32.mrf.mxu0
        %1196 = vmatprep.mubr.f32.mxu0 0.0
        %1197 = vmatmul.mubr.f32.gmra.mxu0 %v248
        %v1198 = vpop.f32.mrf.mxu0
        %v1199 = vadd.f32 0.0, %v1198
        %v1200 = vpop.f32.mrf.mxu0
        %1201 = vmatprep.mubr.f32.mxu0 0.0
        %1202 = vmatmul.mubr.f32.gmra.mxu0 %v249
        %v1203 = vpop.f32.mrf.mxu0
        %v1204 = vadd.f32 0.0, %v1203
        %v1205 = vpop.f32.mrf.mxu0
        %1206 = vmatprep.mubr.f32.mxu0 0.0
        %1207 = vmatmul.mubr.f32.gmra.mxu0 %v250
        %v1208 = vpop.f32.mrf.mxu0
        %v1209 = vadd.f32 0.0, %v1208
        %v1210 = vpop.f32.mrf.mxu0
        %1211 = vmatprep.mubr.f32.mxu0 0.0
        %1212 = vmatmul.mubr.f32.gmra.mxu0 %v251
        %v1213 = vpop.f32.mrf.mxu0
        %v1214 = vadd.f32 0.0, %v1213
        %v1215 = vpop.f32.mrf.mxu0
        %1216 = vmatprep.mubr.f32.mxu0 0.0
        %1217 = vmatmul.mubr.f32.gmra.mxu0 %v252
        %v1218 = vpop.f32.mrf.mxu0
        %v1219 = vadd.f32 0.0, %v1218
        %v1220 = vpop.f32.mrf.mxu0
        %1221 = vdwg.mxu0
        %s1222 = scalar_lea.vmem %s234, 256 [#allocation8]
        %1223 = vst [vmem:[%s1222] sm:$0xff] %v1144
        %1224 = vst [vmem:[%s1222 + $0x8] sm:$0xff] %v1149
        %1225 = vst [vmem:[%s1222 + $0x10] sm:$0xff] %v1154
        %1226 = vst [vmem:[%s1222 + $0x18] sm:$0xff] %v1159
        %1227 = vst [vmem:[%s1222 + $0x20] sm:$0xff] %v1164
        %1228 = vst [vmem:[%s1222 + $0x28] sm:$0xff] %v1169
        %1229 = vst [vmem:[%s1222 + $0x30] sm:$0xff] %v1174
        %1230 = vst [vmem:[%s1222 + $0x38] sm:$0xff] %v1179
        %1231 = vst [vmem:[%s1222 + $0x40] sm:$0xff] %v1184
        %1232 = vst [vmem:[%s1222 + $0x48] sm:$0xff] %v1189
        %1233 = vst [vmem:[%s1222 + $0x50] sm:$0xff] %v1194
        %1234 = vst [vmem:[%s1222 + $0x58] sm:$0xff] %v1199
        %1235 = vst [vmem:[%s1222 + $0x60] sm:$0xff] %v1204
        %1236 = vst [vmem:[%s1222 + $0x68] sm:$0xff] %v1209
        %1237 = vst [vmem:[%s1222 + $0x70] sm:$0xff] %v1214
        %1238 = vst [vmem:[%s1222 + $0x78] sm:$0xff] %v1219
        %s1239 = scalar_lea.vmem %s212, 384 [#allocation7]
        %v1240 = vld [vmem:[%s1239] sm:$0xff]
        %v1241 = vld [vmem:[%s1239 + $0x8] sm:$0xff]
        %v1242 = vld [vmem:[%s1239 + $0x10] sm:$0xff]
        %v1243 = vld [vmem:[%s1239 + $0x18] sm:$0xff]
        %v1244 = vld [vmem:[%s1239 + $0x20] sm:$0xff]
        %v1245 = vld [vmem:[%s1239 + $0x28] sm:$0xff]
        %v1246 = vld [vmem:[%s1239 + $0x30] sm:$0xff]
        %v1247 = vld [vmem:[%s1239 + $0x38] sm:$0xff]
        %v1248 = vld [vmem:[%s1239 + $0x40] sm:$0xff]
        %v1249 = vld [vmem:[%s1239 + $0x48] sm:$0xff]
        %v1250 = vld [vmem:[%s1239 + $0x50] sm:$0xff]
        %v1251 = vld [vmem:[%s1239 + $0x58] sm:$0xff]
        %v1252 = vld [vmem:[%s1239 + $0x60] sm:$0xff]
        %v1253 = vld [vmem:[%s1239 + $0x68] sm:$0xff]
        %v1254 = vld [vmem:[%s1239 + $0x70] sm:$0xff]
        %v1255 = vld [vmem:[%s1239 + $0x78] sm:$0xff]
        %1256 = vmatprep.subr.mxu0 0.0
        %1257 = vmatpush1.msra.mxu0 %v268
        %1258 = vmatprep.subr.mxu0 0.0
        %1259 = vmatpush1.msra.mxu0 %v267
        %1260 = vmatprep.subr.mxu0 0.0
        %1261 = vmatpush1.msra.mxu0 %v266
        %1262 = vmatprep.subr.mxu0 0.0
        %1263 = vmatpush1.msra.mxu0 %v265
        %1264 = vmatprep.subr.mxu0 0.0
        %1265 = vmatpush1.msra.mxu0 %v264
        %1266 = vmatprep.subr.mxu0 0.0
        %1267 = vmatpush1.msra.mxu0 %v263
        %1268 = vmatprep.subr.mxu0 0.0
        %1269 = vmatpush1.msra.mxu0 %v262
        %1270 = vmatprep.subr.mxu0 0.0
        %1271 = vmatpush1.msra.mxu0 %v261
        %1272 = vmatprep.subr.mxu0 0.0
        %1273 = vmatpush1.msra.mxu0 %v260
        %1274 = vmatprep.subr.mxu0 0.0
        %1275 = vmatpush1.msra.mxu0 %v259
        %1276 = vmatprep.subr.mxu0 0.0
        %1277 = vmatpush1.msra.mxu0 %v258
        %1278 = vmatprep.subr.mxu0 0.0
        %1279 = vmatpush1.msra.mxu0 %v257
        %1280 = vmatprep.subr.mxu0 0.0
        %1281 = vmatpush1.msra.mxu0 %v256
        %1282 = vmatprep.subr.mxu0 0.0
        %1283 = vmatpush1.msra.mxu0 %v255
        %1284 = vmatprep.subr.mxu0 0.0
        %1285 = vmatpush1.msra.mxu0 %v254
        %1286 = vmatprep.subr.mxu0 0.0
        %1287 = vmatpush1.msra.mxu0 %v253
        %1288 = vmatprep.subr.mxu0 0.0
        %1289 = vmatpush2.msra.mxu0 0.0
        %1290 = vmatprep.subr.mxu0 0.0
        %1291 = vmatpush2.msra.mxu0 0.0
        %1292 = vmatprep.subr.mxu0 0.0
        %1293 = vmatpush2.msra.mxu0 0.0
        %1294 = vmatprep.subr.mxu0 0.0
        %1295 = vmatpush2.msra.mxu0 0.0
        %1296 = vmatprep.subr.mxu0 0.0
        %1297 = vmatpush2.msra.mxu0 0.0
        %1298 = vmatprep.subr.mxu0 0.0
        %1299 = vmatpush2.msra.mxu0 0.0
        %1300 = vmatprep.subr.mxu0 0.0
        %1301 = vmatpush2.msra.mxu0 0.0
        %1302 = vmatprep.subr.mxu0 0.0
        %1303 = vmatpush2.msra.mxu0 0.0
        %1304 = vmatprep.subr.mxu0 0.0
        %1305 = vmatpush2.msra.mxu0 0.0
        %1306 = vmatprep.subr.mxu0 0.0
        %1307 = vmatpush2.msra.mxu0 0.0
        %1308 = vmatprep.subr.mxu0 0.0
        %1309 = vmatpush2.msra.mxu0 0.0
        %1310 = vmatprep.subr.mxu0 0.0
        %1311 = vmatpush2.msra.mxu0 0.0
        %1312 = vmatprep.subr.mxu0 0.0
        %1313 = vmatpush2.msra.mxu0 0.0
        %1314 = vmatprep.subr.mxu0 0.0
        %1315 = vmatpush2.msra.mxu0 0.0
        %1316 = vmatprep.subr.mxu0 0.0
        %1317 = vmatpush2.msra.mxu0 0.0
        %1318 = vmatprep.subr.mxu0 0.0
        %1319 = vmatpush2.msra.mxu0 0.0
        %1320 = vmatprep.mubr.f32.mxu0 0.0
        %1321 = vmatmul.mubr.f32.gmra.mxu0 %v1240
        %v1322 = vpop.f32.mrf.mxu0
        %v1323 = vadd.f32 0.0, %v1322
        %v1324 = vpop.f32.mrf.mxu0
        %1325 = vmatprep.mubr.f32.mxu0 0.0
        %1326 = vmatmul.mubr.f32.gmra.mxu0 %v1241
        %v1327 = vpop.f32.mrf.mxu0
        %v1328 = vadd.f32 0.0, %v1327
        %v1329 = vpop.f32.mrf.mxu0
        %1330 = vmatprep.mubr.f32.mxu0 0.0
        %1331 = vmatmul.mubr.f32.gmra.mxu0 %v1242
        %v1332 = vpop.f32.mrf.mxu0
        %v1333 = vadd.f32 0.0, %v1332
        %v1334 = vpop.f32.mrf.mxu0
        %1335 = vmatprep.mubr.f32.mxu0 0.0
        %1336 = vmatmul.mubr.f32.gmra.mxu0 %v1243
        %v1337 = vpop.f32.mrf.mxu0
        %v1338 = vadd.f32 0.0, %v1337
        %v1339 = vpop.f32.mrf.mxu0
        %1340 = vmatprep.mubr.f32.mxu0 0.0
        %1341 = vmatmul.mubr.f32.gmra.mxu0 %v1244
        %v1342 = vpop.f32.mrf.mxu0
        %v1343 = vadd.f32 0.0, %v1342
        %v1344 = vpop.f32.mrf.mxu0
        %1345 = vmatprep.mubr.f32.mxu0 0.0
        %1346 = vmatmul.mubr.f32.gmra.mxu0 %v1245
        %v1347 = vpop.f32.mrf.mxu0
        %v1348 = vadd.f32 0.0, %v1347
        %v1349 = vpop.f32.mrf.mxu0
        %1350 = vmatprep.mubr.f32.mxu0 0.0
        %1351 = vmatmul.mubr.f32.gmra.mxu0 %v1246
        %v1352 = vpop.f32.mrf.mxu0
        %v1353 = vadd.f32 0.0, %v1352
        %v1354 = vpop.f32.mrf.mxu0
        %1355 = vmatprep.mubr.f32.mxu0 0.0
        %1356 = vmatmul.mubr.f32.gmra.mxu0 %v1247
        %v1357 = vpop.f32.mrf.mxu0
        %v1358 = vadd.f32 0.0, %v1357
        %v1359 = vpop.f32.mrf.mxu0
        %1360 = vmatprep.mubr.f32.mxu0 0.0
        %1361 = vmatmul.mubr.f32.gmra.mxu0 %v1248
        %v1362 = vpop.f32.mrf.mxu0
        %v1363 = vadd.f32 0.0, %v1362
        %v1364 = vpop.f32.mrf.mxu0
        %1365 = vmatprep.mubr.f32.mxu0 0.0
        %1366 = vmatmul.mubr.f32.gmra.mxu0 %v1249
        %v1367 = vpop.f32.mrf.mxu0
        %v1368 = vadd.f32 0.0, %v1367
        %v1369 = vpop.f32.mrf.mxu0
        %1370 = vmatprep.mubr.f32.mxu0 0.0
        %1371 = vmatmul.mubr.f32.gmra.mxu0 %v1250
        %v1372 = vpop.f32.mrf.mxu0
        %v1373 = vadd.f32 0.0, %v1372
        %v1374 = vpop.f32.mrf.mxu0
        %1375 = vmatprep.mubr.f32.mxu0 0.0
        %1376 = vmatmul.mubr.f32.gmra.mxu0 %v1251
        %v1377 = vpop.f32.mrf.mxu0
        %v1378 = vadd.f32 0.0, %v1377
        %v1379 = vpop.f32.mrf.mxu0
        %1380 = vmatprep.mubr.f32.mxu0 0.0
        %1381 = vmatmul.mubr.f32.gmra.mxu0 %v1252
        %v1382 = vpop.f32.mrf.mxu0
        %v1383 = vadd.f32 0.0, %v1382
        %v1384 = vpop.f32.mrf.mxu0
        %1385 = vmatprep.mubr.f32.mxu0 0.0
        %1386 = vmatmul.mubr.f32.gmra.mxu0 %v1253
        %v1387 = vpop.f32.mrf.mxu0
        %v1388 = vadd.f32 0.0, %v1387
        %v1389 = vpop.f32.mrf.mxu0
        %1390 = vmatprep.mubr.f32.mxu0 0.0
        %1391 = vmatmul.mubr.f32.gmra.mxu0 %v1254
        %v1392 = vpop.f32.mrf.mxu0
        %v1393 = vadd.f32 0.0, %v1392
        %v1394 = vpop.f32.mrf.mxu0
        %1395 = vmatprep.mubr.f32.mxu0 0.0
        %1396 = vmatmul.mubr.f32.gmra.mxu0 %v1255
        %v1397 = vpop.f32.mrf.mxu0
        %v1398 = vadd.f32 0.0, %v1397
        %v1399 = vpop.f32.mrf.mxu0
        %1400 = vdwg.mxu0
        %1401 = vmatprep.subr.mxu0 0.0
        %1402 = vmatpush1.msra.mxu0 %v1398
        %1403 = vmatprep.subr.mxu0 0.0
        %1404 = vmatpush1.msra.mxu0 %v1393
        %1405 = vmatprep.subr.mxu0 0.0
        %1406 = vmatpush1.msra.mxu0 %v1388
        %1407 = vmatprep.subr.mxu0 0.0
        %1408 = vmatpush1.msra.mxu0 %v1383
        %1409 = vmatprep.subr.mxu0 0.0
        %1410 = vmatpush1.msra.mxu0 %v1378
        %1411 = vmatprep.subr.mxu0 0.0
        %1412 = vmatpush1.msra.mxu0 %v1373
        %1413 = vmatprep.subr.mxu0 0.0
        %1414 = vmatpush1.msra.mxu0 %v1368
        %1415 = vmatprep.subr.mxu0 0.0
        %1416 = vmatpush1.msra.mxu0 %v1363
        %1417 = vmatprep.subr.mxu0 0.0
        %1418 = vmatpush1.msra.mxu0 %v1358
        %1419 = vmatprep.subr.mxu0 0.0
        %1420 = vmatpush1.msra.mxu0 %v1353
        %1421 = vmatprep.subr.mxu0 0.0
        %1422 = vmatpush1.msra.mxu0 %v1348
        %1423 = vmatprep.subr.mxu0 0.0
        %1424 = vmatpush1.msra.mxu0 %v1343
        %1425 = vmatprep.subr.mxu0 0.0
        %1426 = vmatpush1.msra.mxu0 %v1338
        %1427 = vmatprep.subr.mxu0 0.0
        %1428 = vmatpush1.msra.mxu0 %v1333
        %1429 = vmatprep.subr.mxu0 0.0
        %1430 = vmatpush1.msra.mxu0 %v1328
        %1431 = vmatprep.subr.mxu0 0.0
        %1432 = vmatpush1.msra.mxu0 %v1323
        %1433 = vmatprep.subr.mxu0 0.0
        %1434 = vmatpush2.msra.mxu0 0.0
        %1435 = vmatprep.subr.mxu0 0.0
        %1436 = vmatpush2.msra.mxu0 0.0
        %1437 = vmatprep.subr.mxu0 0.0
        %1438 = vmatpush2.msra.mxu0 0.0
        %1439 = vmatprep.subr.mxu0 0.0
        %1440 = vmatpush2.msra.mxu0 0.0
        %1441 = vmatprep.subr.mxu0 0.0
        %1442 = vmatpush2.msra.mxu0 0.0
        %1443 = vmatprep.subr.mxu0 0.0
        %1444 = vmatpush2.msra.mxu0 0.0
        %1445 = vmatprep.subr.mxu0 0.0
        %1446 = vmatpush2.msra.mxu0 0.0
        %1447 = vmatprep.subr.mxu0 0.0
        %1448 = vmatpush2.msra.mxu0 0.0
        %1449 = vmatprep.subr.mxu0 0.0
        %1450 = vmatpush2.msra.mxu0 0.0
        %1451 = vmatprep.subr.mxu0 0.0
        %1452 = vmatpush2.msra.mxu0 0.0
        %1453 = vmatprep.subr.mxu0 0.0
        %1454 = vmatpush2.msra.mxu0 0.0
        %1455 = vmatprep.subr.mxu0 0.0
        %1456 = vmatpush2.msra.mxu0 0.0
        %1457 = vmatprep.subr.mxu0 0.0
        %1458 = vmatpush2.msra.mxu0 0.0
        %1459 = vmatprep.subr.mxu0 0.0
        %1460 = vmatpush2.msra.mxu0 0.0
        %1461 = vmatprep.subr.mxu0 0.0
        %1462 = vmatpush2.msra.mxu0 0.0
        %1463 = vmatprep.subr.mxu0 0.0
        %1464 = vmatpush2.msra.mxu0 0.0
        %1465 = vmatprep.mubr.f32.mxu0 0.0
        %1466 = vmatmul.mubr.f32.gmra.mxu0 %v237
        %v1467 = vpop.f32.mrf.mxu0
        %v1468 = vadd.f32 0.0, %v1467
        %v1469 = vpop.f32.mrf.mxu0
        %1470 = vmatprep.mubr.f32.mxu0 0.0
        %1471 = vmatmul.mubr.f32.gmra.mxu0 %v238
        %v1472 = vpop.f32.mrf.mxu0
        %v1473 = vadd.f32 0.0, %v1472
        %v1474 = vpop.f32.mrf.mxu0
        %1475 = vmatprep.mubr.f32.mxu0 0.0
        %1476 = vmatmul.mubr.f32.gmra.mxu0 %v239
        %v1477 = vpop.f32.mrf.mxu0
        %v1478 = vadd.f32 0.0, %v1477
        %v1479 = vpop.f32.mrf.mxu0
        %1480 = vmatprep.mubr.f32.mxu0 0.0
        %1481 = vmatmul.mubr.f32.gmra.mxu0 %v240
        %v1482 = vpop.f32.mrf.mxu0
        %v1483 = vadd.f32 0.0, %v1482
        %v1484 = vpop.f32.mrf.mxu0
        %1485 = vmatprep.mubr.f32.mxu0 0.0
        %1486 = vmatmul.mubr.f32.gmra.mxu0 %v241
        %v1487 = vpop.f32.mrf.mxu0
        %v1488 = vadd.f32 0.0, %v1487
        %v1489 = vpop.f32.mrf.mxu0
        %1490 = vmatprep.mubr.f32.mxu0 0.0
        %1491 = vmatmul.mubr.f32.gmra.mxu0 %v242
        %v1492 = vpop.f32.mrf.mxu0
        %v1493 = vadd.f32 0.0, %v1492
        %v1494 = vpop.f32.mrf.mxu0
        %1495 = vmatprep.mubr.f32.mxu0 0.0
        %1496 = vmatmul.mubr.f32.gmra.mxu0 %v243
        %v1497 = vpop.f32.mrf.mxu0
        %v1498 = vadd.f32 0.0, %v1497
        %v1499 = vpop.f32.mrf.mxu0
        %1500 = vmatprep.mubr.f32.mxu0 0.0
        %1501 = vmatmul.mubr.f32.gmra.mxu0 %v244
        %v1502 = vpop.f32.mrf.mxu0
        %v1503 = vadd.f32 0.0, %v1502
        %v1504 = vpop.f32.mrf.mxu0
        %1505 = vmatprep.mubr.f32.mxu0 0.0
        %1506 = vmatmul.mubr.f32.gmra.mxu0 %v245
        %v1507 = vpop.f32.mrf.mxu0
        %v1508 = vadd.f32 0.0, %v1507
        %v1509 = vpop.f32.mrf.mxu0
        %1510 = vmatprep.mubr.f32.mxu0 0.0
        %1511 = vmatmul.mubr.f32.gmra.mxu0 %v246
        %v1512 = vpop.f32.mrf.mxu0
        %v1513 = vadd.f32 0.0, %v1512
        %v1514 = vpop.f32.mrf.mxu0
        %1515 = vmatprep.mubr.f32.mxu0 0.0
        %1516 = vmatmul.mubr.f32.gmra.mxu0 %v247
        %v1517 = vpop.f32.mrf.mxu0
        %v1518 = vadd.f32 0.0, %v1517
        %v1519 = vpop.f32.mrf.mxu0
        %1520 = vmatprep.mubr.f32.mxu0 0.0
        %1521 = vmatmul.mubr.f32.gmra.mxu0 %v248
        %v1522 = vpop.f32.mrf.mxu0
        %v1523 = vadd.f32 0.0, %v1522
        %v1524 = vpop.f32.mrf.mxu0
        %1525 = vmatprep.mubr.f32.mxu0 0.0
        %1526 = vmatmul.mubr.f32.gmra.mxu0 %v249
        %v1527 = vpop.f32.mrf.mxu0
        %v1528 = vadd.f32 0.0, %v1527
        %v1529 = vpop.f32.mrf.mxu0
        %1530 = vmatprep.mubr.f32.mxu0 0.0
        %1531 = vmatmul.mubr.f32.gmra.mxu0 %v250
        %v1532 = vpop.f32.mrf.mxu0
        %v1533 = vadd.f32 0.0, %v1532
        %v1534 = vpop.f32.mrf.mxu0
        %1535 = vmatprep.mubr.f32.mxu0 0.0
        %1536 = vmatmul.mubr.f32.gmra.mxu0 %v251
        %v1537 = vpop.f32.mrf.mxu0
        %v1538 = vadd.f32 0.0, %v1537
        %v1539 = vpop.f32.mrf.mxu0
        %1540 = vmatprep.mubr.f32.mxu0 0.0
        %1541 = vmatmul.mubr.f32.gmra.mxu0 %v252
        %v1542 = vpop.f32.mrf.mxu0
        %v1543 = vadd.f32 0.0, %v1542
        %v1544 = vpop.f32.mrf.mxu0
        %1545 = vdwg.mxu0
        %s1546 = scalar_lea.vmem %s234, 384 [#allocation8]
        %1547 = vst [vmem:[%s1546] sm:$0xff] %v1468
        %1548 = vst [vmem:[%s1546 + $0x8] sm:$0xff] %v1473
        %1549 = vst [vmem:[%s1546 + $0x10] sm:$0xff] %v1478
        %1550 = vst [vmem:[%s1546 + $0x18] sm:$0xff] %v1483
        %1551 = vst [vmem:[%s1546 + $0x20] sm:$0xff] %v1488
        %1552 = vst [vmem:[%s1546 + $0x28] sm:$0xff] %v1493
        %1553 = vst [vmem:[%s1546 + $0x30] sm:$0xff] %v1498
        %1554 = vst [vmem:[%s1546 + $0x38] sm:$0xff] %v1503
        %1555 = vst [vmem:[%s1546 + $0x40] sm:$0xff] %v1508
        %1556 = vst [vmem:[%s1546 + $0x48] sm:$0xff] %v1513
        %1557 = vst [vmem:[%s1546 + $0x50] sm:$0xff] %v1518
        %1558 = vst [vmem:[%s1546 + $0x58] sm:$0xff] %v1523
        %1559 = vst [vmem:[%s1546 + $0x60] sm:$0xff] %v1528
        %1560 = vst [vmem:[%s1546 + $0x68] sm:$0xff] %v1533
        %1561 = vst [vmem:[%s1546 + $0x70] sm:$0xff] %v1538
        %1562 = vst [vmem:[%s1546 + $0x78] sm:$0xff] %v1543
        %s1563 = scalar_lea.vmem %s212, 512 [#allocation7]
        %v1564 = vld [vmem:[%s1563] sm:$0xff]
        %v1565 = vld [vmem:[%s1563 + $0x8] sm:$0xff]
        %v1566 = vld [vmem:[%s1563 + $0x10] sm:$0xff]
        %v1567 = vld [vmem:[%s1563 + $0x18] sm:$0xff]
        %v1568 = vld [vmem:[%s1563 + $0x20] sm:$0xff]
        %v1569 = vld [vmem:[%s1563 + $0x28] sm:$0xff]
        %v1570 = vld [vmem:[%s1563 + $0x30] sm:$0xff]
        %v1571 = vld [vmem:[%s1563 + $0x38] sm:$0xff]
        %v1572 = vld [vmem:[%s1563 + $0x40] sm:$0xff]
        %v1573 = vld [vmem:[%s1563 + $0x48] sm:$0xff]
        %v1574 = vld [vmem:[%s1563 + $0x50] sm:$0xff]
        %v1575 = vld [vmem:[%s1563 + $0x58] sm:$0xff]
        %v1576 = vld [vmem:[%s1563 + $0x60] sm:$0xff]
        %v1577 = vld [vmem:[%s1563 + $0x68] sm:$0xff]
        %v1578 = vld [vmem:[%s1563 + $0x70] sm:$0xff]
        %v1579 = vld [vmem:[%s1563 + $0x78] sm:$0xff]
        %1580 = vmatprep.subr.mxu0 0.0
        %1581 = vmatpush1.msra.mxu0 %v268
        %1582 = vmatprep.subr.mxu0 0.0
        %1583 = vmatpush1.msra.mxu0 %v267
        %1584 = vmatprep.subr.mxu0 0.0
        %1585 = vmatpush1.msra.mxu0 %v266
        %1586 = vmatprep.subr.mxu0 0.0
        %1587 = vmatpush1.msra.mxu0 %v265
        %1588 = vmatprep.subr.mxu0 0.0
        %1589 = vmatpush1.msra.mxu0 %v264
        %1590 = vmatprep.subr.mxu0 0.0
        %1591 = vmatpush1.msra.mxu0 %v263
        %1592 = vmatprep.subr.mxu0 0.0
        %1593 = vmatpush1.msra.mxu0 %v262
        %1594 = vmatprep.subr.mxu0 0.0
        %1595 = vmatpush1.msra.mxu0 %v261
        %1596 = vmatprep.subr.mxu0 0.0
        %1597 = vmatpush1.msra.mxu0 %v260
        %1598 = vmatprep.subr.mxu0 0.0
        %1599 = vmatpush1.msra.mxu0 %v259
        %1600 = vmatprep.subr.mxu0 0.0
        %1601 = vmatpush1.msra.mxu0 %v258
        %1602 = vmatprep.subr.mxu0 0.0
        %1603 = vmatpush1.msra.mxu0 %v257
        %1604 = vmatprep.subr.mxu0 0.0
        %1605 = vmatpush1.msra.mxu0 %v256
        %1606 = vmatprep.subr.mxu0 0.0
        %1607 = vmatpush1.msra.mxu0 %v255
        %1608 = vmatprep.subr.mxu0 0.0
        %1609 = vmatpush1.msra.mxu0 %v254
        %1610 = vmatprep.subr.mxu0 0.0
        %1611 = vmatpush1.msra.mxu0 %v253
        %1612 = vmatprep.subr.mxu0 0.0
        %1613 = vmatpush2.msra.mxu0 0.0
        %1614 = vmatprep.subr.mxu0 0.0
        %1615 = vmatpush2.msra.mxu0 0.0
        %1616 = vmatprep.subr.mxu0 0.0
        %1617 = vmatpush2.msra.mxu0 0.0
        %1618 = vmatprep.subr.mxu0 0.0
        %1619 = vmatpush2.msra.mxu0 0.0
        %1620 = vmatprep.subr.mxu0 0.0
        %1621 = vmatpush2.msra.mxu0 0.0
        %1622 = vmatprep.subr.mxu0 0.0
        %1623 = vmatpush2.msra.mxu0 0.0
        %1624 = vmatprep.subr.mxu0 0.0
        %1625 = vmatpush2.msra.mxu0 0.0
        %1626 = vmatprep.subr.mxu0 0.0
        %1627 = vmatpush2.msra.mxu0 0.0
        %1628 = vmatprep.subr.mxu0 0.0
        %1629 = vmatpush2.msra.mxu0 0.0
        %1630 = vmatprep.subr.mxu0 0.0
        %1631 = vmatpush2.msra.mxu0 0.0
        %1632 = vmatprep.subr.mxu0 0.0
        %1633 = vmatpush2.msra.mxu0 0.0
        %1634 = vmatprep.subr.mxu0 0.0
        %1635 = vmatpush2.msra.mxu0 0.0
        %1636 = vmatprep.subr.mxu0 0.0
        %1637 = vmatpush2.msra.mxu0 0.0
        %1638 = vmatprep.subr.mxu0 0.0
        %1639 = vmatpush2.msra.mxu0 0.0
        %1640 = vmatprep.subr.mxu0 0.0
        %1641 = vmatpush2.msra.mxu0 0.0
        %1642 = vmatprep.subr.mxu0 0.0
        %1643 = vmatpush2.msra.mxu0 0.0
        %1644 = vmatprep.mubr.f32.mxu0 0.0
        %1645 = vmatmul.mubr.f32.gmra.mxu0 %v1564
        %v1646 = vpop.f32.mrf.mxu0
        %v1647 = vadd.f32 0.0, %v1646
        %v1648 = vpop.f32.mrf.mxu0
        %1649 = vmatprep.mubr.f32.mxu0 0.0
        %1650 = vmatmul.mubr.f32.gmra.mxu0 %v1565
        %v1651 = vpop.f32.mrf.mxu0
        %v1652 = vadd.f32 0.0, %v1651
        %v1653 = vpop.f32.mrf.mxu0
        %1654 = vmatprep.mubr.f32.mxu0 0.0
        %1655 = vmatmul.mubr.f32.gmra.mxu0 %v1566
        %v1656 = vpop.f32.mrf.mxu0
        %v1657 = vadd.f32 0.0, %v1656
        %v1658 = vpop.f32.mrf.mxu0
        %1659 = vmatprep.mubr.f32.mxu0 0.0
        %1660 = vmatmul.mubr.f32.gmra.mxu0 %v1567
        %v1661 = vpop.f32.mrf.mxu0
        %v1662 = vadd.f32 0.0, %v1661
        %v1663 = vpop.f32.mrf.mxu0
        %1664 = vmatprep.mubr.f32.mxu0 0.0
        %1665 = vmatmul.mubr.f32.gmra.mxu0 %v1568
        %v1666 = vpop.f32.mrf.mxu0
        %v1667 = vadd.f32 0.0, %v1666
        %v1668 = vpop.f32.mrf.mxu0
        %1669 = vmatprep.mubr.f32.mxu0 0.0
        %1670 = vmatmul.mubr.f32.gmra.mxu0 %v1569
        %v1671 = vpop.f32.mrf.mxu0
        %v1672 = vadd.f32 0.0, %v1671
        %v1673 = vpop.f32.mrf.mxu0
        %1674 = vmatprep.mubr.f32.mxu0 0.0
        %1675 = vmatmul.mubr.f32.gmra.mxu0 %v1570
        %v1676 = vpop.f32.mrf.mxu0
        %v1677 = vadd.f32 0.0, %v1676
        %v1678 = vpop.f32.mrf.mxu0
        %1679 = vmatprep.mubr.f32.mxu0 0.0
        %1680 = vmatmul.mubr.f32.gmra.mxu0 %v1571
        %v1681 = vpop.f32.mrf.mxu0
        %v1682 = vadd.f32 0.0, %v1681
        %v1683 = vpop.f32.mrf.mxu0
        %1684 = vmatprep.mubr.f32.mxu0 0.0
        %1685 = vmatmul.mubr.f32.gmra.mxu0 %v1572
        %v1686 = vpop.f32.mrf.mxu0
        %v1687 = vadd.f32 0.0, %v1686
        %v1688 = vpop.f32.mrf.mxu0
        %1689 = vmatprep.mubr.f32.mxu0 0.0
        %1690 = vmatmul.mubr.f32.gmra.mxu0 %v1573
        %v1691 = vpop.f32.mrf.mxu0
        %v1692 = vadd.f32 0.0, %v1691
        %v1693 = vpop.f32.mrf.mxu0
        %1694 = vmatprep.mubr.f32.mxu0 0.0
        %1695 = vmatmul.mubr.f32.gmra.mxu0 %v1574
        %v1696 = vpop.f32.mrf.mxu0
        %v1697 = vadd.f32 0.0, %v1696
        %v1698 = vpop.f32.mrf.mxu0
        %1699 = vmatprep.mubr.f32.mxu0 0.0
        %1700 = vmatmul.mubr.f32.gmra.mxu0 %v1575
        %v1701 = vpop.f32.mrf.mxu0
        %v1702 = vadd.f32 0.0, %v1701
        %v1703 = vpop.f32.mrf.mxu0
        %1704 = vmatprep.mubr.f32.mxu0 0.0
        %1705 = vmatmul.mubr.f32.gmra.mxu0 %v1576
        %v1706 = vpop.f32.mrf.mxu0
        %v1707 = vadd.f32 0.0, %v1706
        %v1708 = vpop.f32.mrf.mxu0
        %1709 = vmatprep.mubr.f32.mxu0 0.0
        %1710 = vmatmul.mubr.f32.gmra.mxu0 %v1577
        %v1711 = vpop.f32.mrf.mxu0
        %v1712 = vadd.f32 0.0, %v1711
        %v1713 = vpop.f32.mrf.mxu0
        %1714 = vmatprep.mubr.f32.mxu0 0.0
        %1715 = vmatmul.mubr.f32.gmra.mxu0 %v1578
        %v1716 = vpop.f32.mrf.mxu0
        %v1717 = vadd.f32 0.0, %v1716
        %v1718 = vpop.f32.mrf.mxu0
        %1719 = vmatprep.mubr.f32.mxu0 0.0
        %1720 = vmatmul.mubr.f32.gmra.mxu0 %v1579
        %v1721 = vpop.f32.mrf.mxu0
        %v1722 = vadd.f32 0.0, %v1721
        %v1723 = vpop.f32.mrf.mxu0
        %1724 = vdwg.mxu0
        %1725 = vmatprep.subr.mxu0 0.0
        %1726 = vmatpush1.msra.mxu0 %v1722
        %1727 = vmatprep.subr.mxu0 0.0
        %1728 = vmatpush1.msra.mxu0 %v1717
        %1729 = vmatprep.subr.mxu0 0.0
        %1730 = vmatpush1.msra.mxu0 %v1712
        %1731 = vmatprep.subr.mxu0 0.0
        %1732 = vmatpush1.msra.mxu0 %v1707
        %1733 = vmatprep.subr.mxu0 0.0
        %1734 = vmatpush1.msra.mxu0 %v1702
        %1735 = vmatprep.subr.mxu0 0.0
        %1736 = vmatpush1.msra.mxu0 %v1697
        %1737 = vmatprep.subr.mxu0 0.0
        %1738 = vmatpush1.msra.mxu0 %v1692
        %1739 = vmatprep.subr.mxu0 0.0
        %1740 = vmatpush1.msra.mxu0 %v1687
        %1741 = vmatprep.subr.mxu0 0.0
        %1742 = vmatpush1.msra.mxu0 %v1682
        %1743 = vmatprep.subr.mxu0 0.0
        %1744 = vmatpush1.msra.mxu0 %v1677
        %1745 = vmatprep.subr.mxu0 0.0
        %1746 = vmatpush1.msra.mxu0 %v1672
        %1747 = vmatprep.subr.mxu0 0.0
        %1748 = vmatpush1.msra.mxu0 %v1667
        %1749 = vmatprep.subr.mxu0 0.0
        %1750 = vmatpush1.msra.mxu0 %v1662
        %1751 = vmatprep.subr.mxu0 0.0
        %1752 = vmatpush1.msra.mxu0 %v1657
        %1753 = vmatprep.subr.mxu0 0.0
        %1754 = vmatpush1.msra.mxu0 %v1652
        %1755 = vmatprep.subr.mxu0 0.0
        %1756 = vmatpush1.msra.mxu0 %v1647
        %1757 = vmatprep.subr.mxu0 0.0
        %1758 = vmatpush2.msra.mxu0 0.0
        %1759 = vmatprep.subr.mxu0 0.0
        %1760 = vmatpush2.msra.mxu0 0.0
        %1761 = vmatprep.subr.mxu0 0.0
        %1762 = vmatpush2.msra.mxu0 0.0
        %1763 = vmatprep.subr.mxu0 0.0
        %1764 = vmatpush2.msra.mxu0 0.0
        %1765 = vmatprep.subr.mxu0 0.0
        %1766 = vmatpush2.msra.mxu0 0.0
        %1767 = vmatprep.subr.mxu0 0.0
        %1768 = vmatpush2.msra.mxu0 0.0
        %1769 = vmatprep.subr.mxu0 0.0
        %1770 = vmatpush2.msra.mxu0 0.0
        %1771 = vmatprep.subr.mxu0 0.0
        %1772 = vmatpush2.msra.mxu0 0.0
        %1773 = vmatprep.subr.mxu0 0.0
        %1774 = vmatpush2.msra.mxu0 0.0
        %1775 = vmatprep.subr.mxu0 0.0
        %1776 = vmatpush2.msra.mxu0 0.0
        %1777 = vmatprep.subr.mxu0 0.0
        %1778 = vmatpush2.msra.mxu0 0.0
        %1779 = vmatprep.subr.mxu0 0.0
        %1780 = vmatpush2.msra.mxu0 0.0
        %1781 = vmatprep.subr.mxu0 0.0
        %1782 = vmatpush2.msra.mxu0 0.0
        %1783 = vmatprep.subr.mxu0 0.0
        %1784 = vmatpush2.msra.mxu0 0.0
        %1785 = vmatprep.subr.mxu0 0.0
        %1786 = vmatpush2.msra.mxu0 0.0
        %1787 = vmatprep.subr.mxu0 0.0
        %1788 = vmatpush2.msra.mxu0 0.0
        %1789 = vmatprep.mubr.f32.mxu0 0.0
        %1790 = vmatmul.mubr.f32.gmra.mxu0 %v237
        %v1791 = vpop.f32.mrf.mxu0
        %v1792 = vadd.f32 0.0, %v1791
        %v1793 = vpop.f32.mrf.mxu0
        %1794 = vmatprep.mubr.f32.mxu0 0.0
        %1795 = vmatmul.mubr.f32.gmra.mxu0 %v238
        %v1796 = vpop.f32.mrf.mxu0
        %v1797 = vadd.f32 0.0, %v1796
        %v1798 = vpop.f32.mrf.mxu0
        %1799 = vmatprep.mubr.f32.mxu0 0.0
        %1800 = vmatmul.mubr.f32.gmra.mxu0 %v239
        %v1801 = vpop.f32.mrf.mxu0
        %v1802 = vadd.f32 0.0, %v1801
        %v1803 = vpop.f32.mrf.mxu0
        %1804 = vmatprep.mubr.f32.mxu0 0.0
        %1805 = vmatmul.mubr.f32.gmra.mxu0 %v240
        %v1806 = vpop.f32.mrf.mxu0
        %v1807 = vadd.f32 0.0, %v1806
        %v1808 = vpop.f32.mrf.mxu0
        %1809 = vmatprep.mubr.f32.mxu0 0.0
        %1810 = vmatmul.mubr.f32.gmra.mxu0 %v241
        %v1811 = vpop.f32.mrf.mxu0
        %v1812 = vadd.f32 0.0, %v1811
        %v1813 = vpop.f32.mrf.mxu0
        %1814 = vmatprep.mubr.f32.mxu0 0.0
        %1815 = vmatmul.mubr.f32.gmra.mxu0 %v242
        %v1816 = vpop.f32.mrf.mxu0
        %v1817 = vadd.f32 0.0, %v1816
        %v1818 = vpop.f32.mrf.mxu0
        %1819 = vmatprep.mubr.f32.mxu0 0.0
        %1820 = vmatmul.mubr.f32.gmra.mxu0 %v243
        %v1821 = vpop.f32.mrf.mxu0
        %v1822 = vadd.f32 0.0, %v1821
        %v1823 = vpop.f32.mrf.mxu0
        %1824 = vmatprep.mubr.f32.mxu0 0.0
        %1825 = vmatmul.mubr.f32.gmra.mxu0 %v244
        %v1826 = vpop.f32.mrf.mxu0
        %v1827 = vadd.f32 0.0, %v1826
        %v1828 = vpop.f32.mrf.mxu0
        %1829 = vmatprep.mubr.f32.mxu0 0.0
        %1830 = vmatmul.mubr.f32.gmra.mxu0 %v245
        %v1831 = vpop.f32.mrf.mxu0
        %v1832 = vadd.f32 0.0, %v1831
        %v1833 = vpop.f32.mrf.mxu0
        %1834 = vmatprep.mubr.f32.mxu0 0.0
        %1835 = vmatmul.mubr.f32.gmra.mxu0 %v246
        %v1836 = vpop.f32.mrf.mxu0
        %v1837 = vadd.f32 0.0, %v1836
        %v1838 = vpop.f32.mrf.mxu0
        %1839 = vmatprep.mubr.f32.mxu0 0.0
        %1840 = vmatmul.mubr.f32.gmra.mxu0 %v247
        %v1841 = vpop.f32.mrf.mxu0
        %v1842 = vadd.f32 0.0, %v1841
        %v1843 = vpop.f32.mrf.mxu0
        %1844 = vmatprep.mubr.f32.mxu0 0.0
        %1845 = vmatmul.mubr.f32.gmra.mxu0 %v248
        %v1846 = vpop.f32.mrf.mxu0
        %v1847 = vadd.f32 0.0, %v1846
        %v1848 = vpop.f32.mrf.mxu0
        %1849 = vmatprep.mubr.f32.mxu0 0.0
        %1850 = vmatmul.mubr.f32.gmra.mxu0 %v249
        %v1851 = vpop.f32.mrf.mxu0
        %v1852 = vadd.f32 0.0, %v1851
        %v1853 = vpop.f32.mrf.mxu0
        %1854 = vmatprep.mubr.f32.mxu0 0.0
        %1855 = vmatmul.mubr.f32.gmra.mxu0 %v250
        %v1856 = vpop.f32.mrf.mxu0
        %v1857 = vadd.f32 0.0, %v1856
        %v1858 = vpop.f32.mrf.mxu0
        %1859 = vmatprep.mubr.f32.mxu0 0.0
        %1860 = vmatmul.mubr.f32.gmra.mxu0 %v251
        %v1861 = vpop.f32.mrf.mxu0
        %v1862 = vadd.f32 0.0, %v1861
        %v1863 = vpop.f32.mrf.mxu0
        %1864 = vmatprep.mubr.f32.mxu0 0.0
        %1865 = vmatmul.mubr.f32.gmra.mxu0 %v252
        %v1866 = vpop.f32.mrf.mxu0
        %v1867 = vadd.f32 0.0, %v1866
        %v1868 = vpop.f32.mrf.mxu0
        %1869 = vdwg.mxu0
        %s1870 = scalar_lea.vmem %s234, 512 [#allocation8]
        %1871 = vst [vmem:[%s1870] sm:$0xff] %v1792
        %1872 = vst [vmem:[%s1870 + $0x8] sm:$0xff] %v1797
        %1873 = vst [vmem:[%s1870 + $0x10] sm:$0xff] %v1802
        %1874 = vst [vmem:[%s1870 + $0x18] sm:$0xff] %v1807
        %1875 = vst [vmem:[%s1870 + $0x20] sm:$0xff] %v1812
        %1876 = vst [vmem:[%s1870 + $0x28] sm:$0xff] %v1817
        %1877 = vst [vmem:[%s1870 + $0x30] sm:$0xff] %v1822
        %1878 = vst [vmem:[%s1870 + $0x38] sm:$0xff] %v1827
        %1879 = vst [vmem:[%s1870 + $0x40] sm:$0xff] %v1832
        %1880 = vst [vmem:[%s1870 + $0x48] sm:$0xff] %v1837
        %1881 = vst [vmem:[%s1870 + $0x50] sm:$0xff] %v1842
        %1882 = vst [vmem:[%s1870 + $0x58] sm:$0xff] %v1847
        %1883 = vst [vmem:[%s1870 + $0x60] sm:$0xff] %v1852
        %1884 = vst [vmem:[%s1870 + $0x68] sm:$0xff] %v1857
        %1885 = vst [vmem:[%s1870 + $0x70] sm:$0xff] %v1862
        %1886 = vst [vmem:[%s1870 + $0x78] sm:$0xff] %v1867
        %s1887 = scalar_lea.vmem %s212, 640 [#allocation7]
        %v1888 = vld [vmem:[%s1887] sm:$0xff]
        %v1889 = vld [vmem:[%s1887 + $0x8] sm:$0xff]
        %v1890 = vld [vmem:[%s1887 + $0x10] sm:$0xff]
        %v1891 = vld [vmem:[%s1887 + $0x18] sm:$0xff]
        %v1892 = vld [vmem:[%s1887 + $0x20] sm:$0xff]
        %v1893 = vld [vmem:[%s1887 + $0x28] sm:$0xff]
        %v1894 = vld [vmem:[%s1887 + $0x30] sm:$0xff]
        %v1895 = vld [vmem:[%s1887 + $0x38] sm:$0xff]
        %v1896 = vld [vmem:[%s1887 + $0x40] sm:$0xff]
        %v1897 = vld [vmem:[%s1887 + $0x48] sm:$0xff]
        %v1898 = vld [vmem:[%s1887 + $0x50] sm:$0xff]
        %v1899 = vld [vmem:[%s1887 + $0x58] sm:$0xff]
        %v1900 = vld [vmem:[%s1887 + $0x60] sm:$0xff]
        %v1901 = vld [vmem:[%s1887 + $0x68] sm:$0xff]
        %v1902 = vld [vmem:[%s1887 + $0x70] sm:$0xff]
        %v1903 = vld [vmem:[%s1887 + $0x78] sm:$0xff]
        %1904 = vmatprep.subr.mxu0 0.0
        %1905 = vmatpush1.msra.mxu0 %v268
        %1906 = vmatprep.subr.mxu0 0.0
        %1907 = vmatpush1.msra.mxu0 %v267
        %1908 = vmatprep.subr.mxu0 0.0
        %1909 = vmatpush1.msra.mxu0 %v266
        %1910 = vmatprep.subr.mxu0 0.0
        %1911 = vmatpush1.msra.mxu0 %v265
        %1912 = vmatprep.subr.mxu0 0.0
        %1913 = vmatpush1.msra.mxu0 %v264
        %1914 = vmatprep.subr.mxu0 0.0
        %1915 = vmatpush1.msra.mxu0 %v263
        %1916 = vmatprep.subr.mxu0 0.0
        %1917 = vmatpush1.msra.mxu0 %v262
        %1918 = vmatprep.subr.mxu0 0.0
        %1919 = vmatpush1.msra.mxu0 %v261
        %1920 = vmatprep.subr.mxu0 0.0
        %1921 = vmatpush1.msra.mxu0 %v260
        %1922 = vmatprep.subr.mxu0 0.0
        %1923 = vmatpush1.msra.mxu0 %v259
        %1924 = vmatprep.subr.mxu0 0.0
        %1925 = vmatpush1.msra.mxu0 %v258
        %1926 = vmatprep.subr.mxu0 0.0
        %1927 = vmatpush1.msra.mxu0 %v257
        %1928 = vmatprep.subr.mxu0 0.0
        %1929 = vmatpush1.msra.mxu0 %v256
        %1930 = vmatprep.subr.mxu0 0.0
        %1931 = vmatpush1.msra.mxu0 %v255
        %1932 = vmatprep.subr.mxu0 0.0
        %1933 = vmatpush1.msra.mxu0 %v254
        %1934 = vmatprep.subr.mxu0 0.0
        %1935 = vmatpush1.msra.mxu0 %v253
        %1936 = vmatprep.subr.mxu0 0.0
        %1937 = vmatpush2.msra.mxu0 0.0
        %1938 = vmatprep.subr.mxu0 0.0
        %1939 = vmatpush2.msra.mxu0 0.0
        %1940 = vmatprep.subr.mxu0 0.0
        %1941 = vmatpush2.msra.mxu0 0.0
        %1942 = vmatprep.subr.mxu0 0.0
        %1943 = vmatpush2.msra.mxu0 0.0
        %1944 = vmatprep.subr.mxu0 0.0
        %1945 = vmatpush2.msra.mxu0 0.0
        %1946 = vmatprep.subr.mxu0 0.0
        %1947 = vmatpush2.msra.mxu0 0.0
        %1948 = vmatprep.subr.mxu0 0.0
        %1949 = vmatpush2.msra.mxu0 0.0
        %1950 = vmatprep.subr.mxu0 0.0
        %1951 = vmatpush2.msra.mxu0 0.0
        %1952 = vmatprep.subr.mxu0 0.0
        %1953 = vmatpush2.msra.mxu0 0.0
        %1954 = vmatprep.subr.mxu0 0.0
        %1955 = vmatpush2.msra.mxu0 0.0
        %1956 = vmatprep.subr.mxu0 0.0
        %1957 = vmatpush2.msra.mxu0 0.0
        %1958 = vmatprep.subr.mxu0 0.0
        %1959 = vmatpush2.msra.mxu0 0.0
        %1960 = vmatprep.subr.mxu0 0.0
        %1961 = vmatpush2.msra.mxu0 0.0
        %1962 = vmatprep.subr.mxu0 0.0
        %1963 = vmatpush2.msra.mxu0 0.0
        %1964 = vmatprep.subr.mxu0 0.0
        %1965 = vmatpush2.msra.mxu0 0.0
        %1966 = vmatprep.subr.mxu0 0.0
        %1967 = vmatpush2.msra.mxu0 0.0
        %1968 = vmatprep.mubr.f32.mxu0 0.0
        %1969 = vmatmul.mubr.f32.gmra.mxu0 %v1888
        %v1970 = vpop.f32.mrf.mxu0
        %v1971 = vadd.f32 0.0, %v1970
        %v1972 = vpop.f32.mrf.mxu0
        %1973 = vmatprep.mubr.f32.mxu0 0.0
        %1974 = vmatmul.mubr.f32.gmra.mxu0 %v1889
        %v1975 = vpop.f32.mrf.mxu0
        %v1976 = vadd.f32 0.0, %v1975
        %v1977 = vpop.f32.mrf.mxu0
        %1978 = vmatprep.mubr.f32.mxu0 0.0
        %1979 = vmatmul.mubr.f32.gmra.mxu0 %v1890
        %v1980 = vpop.f32.mrf.mxu0
        %v1981 = vadd.f32 0.0, %v1980
        %v1982 = vpop.f32.mrf.mxu0
        %1983 = vmatprep.mubr.f32.mxu0 0.0
        %1984 = vmatmul.mubr.f32.gmra.mxu0 %v1891
        %v1985 = vpop.f32.mrf.mxu0
        %v1986 = vadd.f32 0.0, %v1985
        %v1987 = vpop.f32.mrf.mxu0
        %1988 = vmatprep.mubr.f32.mxu0 0.0
        %1989 = vmatmul.mubr.f32.gmra.mxu0 %v1892
        %v1990 = vpop.f32.mrf.mxu0
        %v1991 = vadd.f32 0.0, %v1990
        %v1992 = vpop.f32.mrf.mxu0
        %1993 = vmatprep.mubr.f32.mxu0 0.0
        %1994 = vmatmul.mubr.f32.gmra.mxu0 %v1893
        %v1995 = vpop.f32.mrf.mxu0
        %v1996 = vadd.f32 0.0, %v1995
        %v1997 = vpop.f32.mrf.mxu0
        %1998 = vmatprep.mubr.f32.mxu0 0.0
        %1999 = vmatmul.mubr.f32.gmra.mxu0 %v1894
        %v2000 = vpop.f32.mrf.mxu0
        %v2001 = vadd.f32 0.0, %v2000
        %v2002 = vpop.f32.mrf.mxu0
        %2003 = vmatprep.mubr.f32.mxu0 0.0
        %2004 = vmatmul.mubr.f32.gmra.mxu0 %v1895
        %v2005 = vpop.f32.mrf.mxu0
        %v2006 = vadd.f32 0.0, %v2005
        %v2007 = vpop.f32.mrf.mxu0
        %2008 = vmatprep.mubr.f32.mxu0 0.0
        %2009 = vmatmul.mubr.f32.gmra.mxu0 %v1896
        %v2010 = vpop.f32.mrf.mxu0
        %v2011 = vadd.f32 0.0, %v2010
        %v2012 = vpop.f32.mrf.mxu0
        %2013 = vmatprep.mubr.f32.mxu0 0.0
        %2014 = vmatmul.mubr.f32.gmra.mxu0 %v1897
        %v2015 = vpop.f32.mrf.mxu0
        %v2016 = vadd.f32 0.0, %v2015
        %v2017 = vpop.f32.mrf.mxu0
        %2018 = vmatprep.mubr.f32.mxu0 0.0
        %2019 = vmatmul.mubr.f32.gmra.mxu0 %v1898
        %v2020 = vpop.f32.mrf.mxu0
        %v2021 = vadd.f32 0.0, %v2020
        %v2022 = vpop.f32.mrf.mxu0
        %2023 = vmatprep.mubr.f32.mxu0 0.0
        %2024 = vmatmul.mubr.f32.gmra.mxu0 %v1899
        %v2025 = vpop.f32.mrf.mxu0
        %v2026 = vadd.f32 0.0, %v2025
        %v2027 = vpop.f32.mrf.mxu0
        %2028 = vmatprep.mubr.f32.mxu0 0.0
        %2029 = vmatmul.mubr.f32.gmra.mxu0 %v1900
        %v2030 = vpop.f32.mrf.mxu0
        %v2031 = vadd.f32 0.0, %v2030
        %v2032 = vpop.f32.mrf.mxu0
        %2033 = vmatprep.mubr.f32.mxu0 0.0
        %2034 = vmatmul.mubr.f32.gmra.mxu0 %v1901
        %v2035 = vpop.f32.mrf.mxu0
        %v2036 = vadd.f32 0.0, %v2035
        %v2037 = vpop.f32.mrf.mxu0
        %2038 = vmatprep.mubr.f32.mxu0 0.0
        %2039 = vmatmul.mubr.f32.gmra.mxu0 %v1902
        %v2040 = vpop.f32.mrf.mxu0
        %v2041 = vadd.f32 0.0, %v2040
        %v2042 = vpop.f32.mrf.mxu0
        %2043 = vmatprep.mubr.f32.mxu0 0.0
        %2044 = vmatmul.mubr.f32.gmra.mxu0 %v1903
        %v2045 = vpop.f32.mrf.mxu0
        %v2046 = vadd.f32 0.0, %v2045
        %v2047 = vpop.f32.mrf.mxu0
        %2048 = vdwg.mxu0
        %2049 = vmatprep.subr.mxu0 0.0
        %2050 = vmatpush1.msra.mxu0 %v2046
        %2051 = vmatprep.subr.mxu0 0.0
        %2052 = vmatpush1.msra.mxu0 %v2041
        %2053 = vmatprep.subr.mxu0 0.0
        %2054 = vmatpush1.msra.mxu0 %v2036
        %2055 = vmatprep.subr.mxu0 0.0
        %2056 = vmatpush1.msra.mxu0 %v2031
        %2057 = vmatprep.subr.mxu0 0.0
        %2058 = vmatpush1.msra.mxu0 %v2026
        %2059 = vmatprep.subr.mxu0 0.0
        %2060 = vmatpush1.msra.mxu0 %v2021
        %2061 = vmatprep.subr.mxu0 0.0
        %2062 = vmatpush1.msra.mxu0 %v2016
        %2063 = vmatprep.subr.mxu0 0.0
        %2064 = vmatpush1.msra.mxu0 %v2011
        %2065 = vmatprep.subr.mxu0 0.0
        %2066 = vmatpush1.msra.mxu0 %v2006
        %2067 = vmatprep.subr.mxu0 0.0
        %2068 = vmatpush1.msra.mxu0 %v2001
        %2069 = vmatprep.subr.mxu0 0.0
        %2070 = vmatpush1.msra.mxu0 %v1996
        %2071 = vmatprep.subr.mxu0 0.0
        %2072 = vmatpush1.msra.mxu0 %v1991
        %2073 = vmatprep.subr.mxu0 0.0
        %2074 = vmatpush1.msra.mxu0 %v1986
        %2075 = vmatprep.subr.mxu0 0.0
        %2076 = vmatpush1.msra.mxu0 %v1981
        %2077 = vmatprep.subr.mxu0 0.0
        %2078 = vmatpush1.msra.mxu0 %v1976
        %2079 = vmatprep.subr.mxu0 0.0
        %2080 = vmatpush1.msra.mxu0 %v1971
        %2081 = vmatprep.subr.mxu0 0.0
        %2082 = vmatpush2.msra.mxu0 0.0
        %2083 = vmatprep.subr.mxu0 0.0
        %2084 = vmatpush2.msra.mxu0 0.0
        %2085 = vmatprep.subr.mxu0 0.0
        %2086 = vmatpush2.msra.mxu0 0.0
        %2087 = vmatprep.subr.mxu0 0.0
        %2088 = vmatpush2.msra.mxu0 0.0
        %2089 = vmatprep.subr.mxu0 0.0
        %2090 = vmatpush2.msra.mxu0 0.0
        %2091 = vmatprep.subr.mxu0 0.0
        %2092 = vmatpush2.msra.mxu0 0.0
        %2093 = vmatprep.subr.mxu0 0.0
        %2094 = vmatpush2.msra.mxu0 0.0
        %2095 = vmatprep.subr.mxu0 0.0
        %2096 = vmatpush2.msra.mxu0 0.0
        %2097 = vmatprep.subr.mxu0 0.0
        %2098 = vmatpush2.msra.mxu0 0.0
        %2099 = vmatprep.subr.mxu0 0.0
        %2100 = vmatpush2.msra.mxu0 0.0
        %2101 = vmatprep.subr.mxu0 0.0
        %2102 = vmatpush2.msra.mxu0 0.0
        %2103 = vmatprep.subr.mxu0 0.0
        %2104 = vmatpush2.msra.mxu0 0.0
        %2105 = vmatprep.subr.mxu0 0.0
        %2106 = vmatpush2.msra.mxu0 0.0
        %2107 = vmatprep.subr.mxu0 0.0
        %2108 = vmatpush2.msra.mxu0 0.0
        %2109 = vmatprep.subr.mxu0 0.0
        %2110 = vmatpush2.msra.mxu0 0.0
        %2111 = vmatprep.subr.mxu0 0.0
        %2112 = vmatpush2.msra.mxu0 0.0
        %2113 = vmatprep.mubr.f32.mxu0 0.0
        %2114 = vmatmul.mubr.f32.gmra.mxu0 %v237
        %v2115 = vpop.f32.mrf.mxu0
        %v2116 = vadd.f32 0.0, %v2115
        %v2117 = vpop.f32.mrf.mxu0
        %2118 = vmatprep.mubr.f32.mxu0 0.0
        %2119 = vmatmul.mubr.f32.gmra.mxu0 %v238
        %v2120 = vpop.f32.mrf.mxu0
        %v2121 = vadd.f32 0.0, %v2120
        %v2122 = vpop.f32.mrf.mxu0
        %2123 = vmatprep.mubr.f32.mxu0 0.0
        %2124 = vmatmul.mubr.f32.gmra.mxu0 %v239
        %v2125 = vpop.f32.mrf.mxu0
        %v2126 = vadd.f32 0.0, %v2125
        %v2127 = vpop.f32.mrf.mxu0
        %2128 = vmatprep.mubr.f32.mxu0 0.0
        %2129 = vmatmul.mubr.f32.gmra.mxu0 %v240
        %v2130 = vpop.f32.mrf.mxu0
        %v2131 = vadd.f32 0.0, %v2130
        %v2132 = vpop.f32.mrf.mxu0
        %2133 = vmatprep.mubr.f32.mxu0 0.0
        %2134 = vmatmul.mubr.f32.gmra.mxu0 %v241
        %v2135 = vpop.f32.mrf.mxu0
        %v2136 = vadd.f32 0.0, %v2135
        %v2137 = vpop.f32.mrf.mxu0
        %2138 = vmatprep.mubr.f32.mxu0 0.0
        %2139 = vmatmul.mubr.f32.gmra.mxu0 %v242
        %v2140 = vpop.f32.mrf.mxu0
        %v2141 = vadd.f32 0.0, %v2140
        %v2142 = vpop.f32.mrf.mxu0
        %2143 = vmatprep.mubr.f32.mxu0 0.0
        %2144 = vmatmul.mubr.f32.gmra.mxu0 %v243
        %v2145 = vpop.f32.mrf.mxu0
        %v2146 = vadd.f32 0.0, %v2145
        %v2147 = vpop.f32.mrf.mxu0
        %2148 = vmatprep.mubr.f32.mxu0 0.0
        %2149 = vmatmul.mubr.f32.gmra.mxu0 %v244
        %v2150 = vpop.f32.mrf.mxu0
        %v2151 = vadd.f32 0.0, %v2150
        %v2152 = vpop.f32.mrf.mxu0
        %2153 = vmatprep.mubr.f32.mxu0 0.0
        %2154 = vmatmul.mubr.f32.gmra.mxu0 %v245
        %v2155 = vpop.f32.mrf.mxu0
        %v2156 = vadd.f32 0.0, %v2155
        %v2157 = vpop.f32.mrf.mxu0
        %2158 = vmatprep.mubr.f32.mxu0 0.0
        %2159 = vmatmul.mubr.f32.gmra.mxu0 %v246
        %v2160 = vpop.f32.mrf.mxu0
        %v2161 = vadd.f32 0.0, %v2160
        %v2162 = vpop.f32.mrf.mxu0
        %2163 = vmatprep.mubr.f32.mxu0 0.0
        %2164 = vmatmul.mubr.f32.gmra.mxu0 %v247
        %v2165 = vpop.f32.mrf.mxu0
        %v2166 = vadd.f32 0.0, %v2165
        %v2167 = vpop.f32.mrf.mxu0
        %2168 = vmatprep.mubr.f32.mxu0 0.0
        %2169 = vmatmul.mubr.f32.gmra.mxu0 %v248
        %v2170 = vpop.f32.mrf.mxu0
        %v2171 = vadd.f32 0.0, %v2170
        %v2172 = vpop.f32.mrf.mxu0
        %2173 = vmatprep.mubr.f32.mxu0 0.0
        %2174 = vmatmul.mubr.f32.gmra.mxu0 %v249
        %v2175 = vpop.f32.mrf.mxu0
        %v2176 = vadd.f32 0.0, %v2175
        %v2177 = vpop.f32.mrf.mxu0
        %2178 = vmatprep.mubr.f32.mxu0 0.0
        %2179 = vmatmul.mubr.f32.gmra.mxu0 %v250
        %v2180 = vpop.f32.mrf.mxu0
        %v2181 = vadd.f32 0.0, %v2180
        %v2182 = vpop.f32.mrf.mxu0
        %2183 = vmatprep.mubr.f32.mxu0 0.0
        %2184 = vmatmul.mubr.f32.gmra.mxu0 %v251
        %v2185 = vpop.f32.mrf.mxu0
        %v2186 = vadd.f32 0.0, %v2185
        %v2187 = vpop.f32.mrf.mxu0
        %2188 = vmatprep.mubr.f32.mxu0 0.0
        %2189 = vmatmul.mubr.f32.gmra.mxu0 %v252
        %v2190 = vpop.f32.mrf.mxu0
        %v2191 = vadd.f32 0.0, %v2190
        %v2192 = vpop.f32.mrf.mxu0
        %2193 = vdwg.mxu0
        %s2194 = scalar_lea.vmem %s234, 640 [#allocation8]
        %2195 = vst [vmem:[%s2194] sm:$0xff] %v2116
        %2196 = vst [vmem:[%s2194 + $0x8] sm:$0xff] %v2121
        %2197 = vst [vmem:[%s2194 + $0x10] sm:$0xff] %v2126
        %2198 = vst [vmem:[%s2194 + $0x18] sm:$0xff] %v2131
        %2199 = vst [vmem:[%s2194 + $0x20] sm:$0xff] %v2136
        %2200 = vst [vmem:[%s2194 + $0x28] sm:$0xff] %v2141
        %2201 = vst [vmem:[%s2194 + $0x30] sm:$0xff] %v2146
        %2202 = vst [vmem:[%s2194 + $0x38] sm:$0xff] %v2151
        %2203 = vst [vmem:[%s2194 + $0x40] sm:$0xff] %v2156
        %2204 = vst [vmem:[%s2194 + $0x48] sm:$0xff] %v2161
        %2205 = vst [vmem:[%s2194 + $0x50] sm:$0xff] %v2166
        %2206 = vst [vmem:[%s2194 + $0x58] sm:$0xff] %v2171
        %2207 = vst [vmem:[%s2194 + $0x60] sm:$0xff] %v2176
        %2208 = vst [vmem:[%s2194 + $0x68] sm:$0xff] %v2181
        %2209 = vst [vmem:[%s2194 + $0x70] sm:$0xff] %v2186
        %2210 = vst [vmem:[%s2194 + $0x78] sm:$0xff] %v2191
        %s2211 = scalar_lea.vmem %s212, 768 [#allocation7]
        %v2212 = vld [vmem:[%s2211] sm:$0xff]
        %v2213 = vld [vmem:[%s2211 + $0x8] sm:$0xff]
        %v2214 = vld [vmem:[%s2211 + $0x10] sm:$0xff]
        %v2215 = vld [vmem:[%s2211 + $0x18] sm:$0xff]
        %v2216 = vld [vmem:[%s2211 + $0x20] sm:$0xff]
        %v2217 = vld [vmem:[%s2211 + $0x28] sm:$0xff]
        %v2218 = vld [vmem:[%s2211 + $0x30] sm:$0xff]
        %v2219 = vld [vmem:[%s2211 + $0x38] sm:$0xff]
        %v2220 = vld [vmem:[%s2211 + $0x40] sm:$0xff]
        %v2221 = vld [vmem:[%s2211 + $0x48] sm:$0xff]
        %v2222 = vld [vmem:[%s2211 + $0x50] sm:$0xff]
        %v2223 = vld [vmem:[%s2211 + $0x58] sm:$0xff]
        %v2224 = vld [vmem:[%s2211 + $0x60] sm:$0xff]
        %v2225 = vld [vmem:[%s2211 + $0x68] sm:$0xff]
        %v2226 = vld [vmem:[%s2211 + $0x70] sm:$0xff]
        %v2227 = vld [vmem:[%s2211 + $0x78] sm:$0xff]
        %2228 = vmatprep.subr.mxu0 0.0
        %2229 = vmatpush1.msra.mxu0 %v268
        %2230 = vmatprep.subr.mxu0 0.0
        %2231 = vmatpush1.msra.mxu0 %v267
        %2232 = vmatprep.subr.mxu0 0.0
        %2233 = vmatpush1.msra.mxu0 %v266
        %2234 = vmatprep.subr.mxu0 0.0
        %2235 = vmatpush1.msra.mxu0 %v265
        %2236 = vmatprep.subr.mxu0 0.0
        %2237 = vmatpush1.msra.mxu0 %v264
        %2238 = vmatprep.subr.mxu0 0.0
        %2239 = vmatpush1.msra.mxu0 %v263
        %2240 = vmatprep.subr.mxu0 0.0
        %2241 = vmatpush1.msra.mxu0 %v262
        %2242 = vmatprep.subr.mxu0 0.0
        %2243 = vmatpush1.msra.mxu0 %v261
        %2244 = vmatprep.subr.mxu0 0.0
        %2245 = vmatpush1.msra.mxu0 %v260
        %2246 = vmatprep.subr.mxu0 0.0
        %2247 = vmatpush1.msra.mxu0 %v259
        %2248 = vmatprep.subr.mxu0 0.0
        %2249 = vmatpush1.msra.mxu0 %v258
        %2250 = vmatprep.subr.mxu0 0.0
        %2251 = vmatpush1.msra.mxu0 %v257
        %2252 = vmatprep.subr.mxu0 0.0
        %2253 = vmatpush1.msra.mxu0 %v256
        %2254 = vmatprep.subr.mxu0 0.0
        %2255 = vmatpush1.msra.mxu0 %v255
        %2256 = vmatprep.subr.mxu0 0.0
        %2257 = vmatpush1.msra.mxu0 %v254
        %2258 = vmatprep.subr.mxu0 0.0
        %2259 = vmatpush1.msra.mxu0 %v253
        %2260 = vmatprep.subr.mxu0 0.0
        %2261 = vmatpush2.msra.mxu0 0.0
        %2262 = vmatprep.subr.mxu0 0.0
        %2263 = vmatpush2.msra.mxu0 0.0
        %2264 = vmatprep.subr.mxu0 0.0
        %2265 = vmatpush2.msra.mxu0 0.0
        %2266 = vmatprep.subr.mxu0 0.0
        %2267 = vmatpush2.msra.mxu0 0.0
        %2268 = vmatprep.subr.mxu0 0.0
        %2269 = vmatpush2.msra.mxu0 0.0
        %2270 = vmatprep.subr.mxu0 0.0
        %2271 = vmatpush2.msra.mxu0 0.0
        %2272 = vmatprep.subr.mxu0 0.0
        %2273 = vmatpush2.msra.mxu0 0.0
        %2274 = vmatprep.subr.mxu0 0.0
        %2275 = vmatpush2.msra.mxu0 0.0
        %2276 = vmatprep.subr.mxu0 0.0
        %2277 = vmatpush2.msra.mxu0 0.0
        %2278 = vmatprep.subr.mxu0 0.0
        %2279 = vmatpush2.msra.mxu0 0.0
        %2280 = vmatprep.subr.mxu0 0.0
        %2281 = vmatpush2.msra.mxu0 0.0
        %2282 = vmatprep.subr.mxu0 0.0
        %2283 = vmatpush2.msra.mxu0 0.0
        %2284 = vmatprep.subr.mxu0 0.0
        %2285 = vmatpush2.msra.mxu0 0.0
        %2286 = vmatprep.subr.mxu0 0.0
        %2287 = vmatpush2.msra.mxu0 0.0
        %2288 = vmatprep.subr.mxu0 0.0
        %2289 = vmatpush2.msra.mxu0 0.0
        %2290 = vmatprep.subr.mxu0 0.0
        %2291 = vmatpush2.msra.mxu0 0.0
        %2292 = vmatprep.mubr.f32.mxu0 0.0
        %2293 = vmatmul.mubr.f32.gmra.mxu0 %v2212
        %v2294 = vpop.f32.mrf.mxu0
        %v2295 = vadd.f32 0.0, %v2294
        %v2296 = vpop.f32.mrf.mxu0
        %2297 = vmatprep.mubr.f32.mxu0 0.0
        %2298 = vmatmul.mubr.f32.gmra.mxu0 %v2213
        %v2299 = vpop.f32.mrf.mxu0
        %v2300 = vadd.f32 0.0, %v2299
        %v2301 = vpop.f32.mrf.mxu0
        %2302 = vmatprep.mubr.f32.mxu0 0.0
        %2303 = vmatmul.mubr.f32.gmra.mxu0 %v2214
        %v2304 = vpop.f32.mrf.mxu0
        %v2305 = vadd.f32 0.0, %v2304
        %v2306 = vpop.f32.mrf.mxu0
        %2307 = vmatprep.mubr.f32.mxu0 0.0
        %2308 = vmatmul.mubr.f32.gmra.mxu0 %v2215
        %v2309 = vpop.f32.mrf.mxu0
        %v2310 = vadd.f32 0.0, %v2309
        %v2311 = vpop.f32.mrf.mxu0
        %2312 = vmatprep.mubr.f32.mxu0 0.0
        %2313 = vmatmul.mubr.f32.gmra.mxu0 %v2216
        %v2314 = vpop.f32.mrf.mxu0
        %v2315 = vadd.f32 0.0, %v2314
        %v2316 = vpop.f32.mrf.mxu0
        %2317 = vmatprep.mubr.f32.mxu0 0.0
        %2318 = vmatmul.mubr.f32.gmra.mxu0 %v2217
        %v2319 = vpop.f32.mrf.mxu0
        %v2320 = vadd.f32 0.0, %v2319
        %v2321 = vpop.f32.mrf.mxu0
        %2322 = vmatprep.mubr.f32.mxu0 0.0
        %2323 = vmatmul.mubr.f32.gmra.mxu0 %v2218
        %v2324 = vpop.f32.mrf.mxu0
        %v2325 = vadd.f32 0.0, %v2324
        %v2326 = vpop.f32.mrf.mxu0
        %2327 = vmatprep.mubr.f32.mxu0 0.0
        %2328 = vmatmul.mubr.f32.gmra.mxu0 %v2219
        %v2329 = vpop.f32.mrf.mxu0
        %v2330 = vadd.f32 0.0, %v2329
        %v2331 = vpop.f32.mrf.mxu0
        %2332 = vmatprep.mubr.f32.mxu0 0.0
        %2333 = vmatmul.mubr.f32.gmra.mxu0 %v2220
        %v2334 = vpop.f32.mrf.mxu0
        %v2335 = vadd.f32 0.0, %v2334
        %v2336 = vpop.f32.mrf.mxu0
        %2337 = vmatprep.mubr.f32.mxu0 0.0
        %2338 = vmatmul.mubr.f32.gmra.mxu0 %v2221
        %v2339 = vpop.f32.mrf.mxu0
        %v2340 = vadd.f32 0.0, %v2339
        %v2341 = vpop.f32.mrf.mxu0
        %2342 = vmatprep.mubr.f32.mxu0 0.0
        %2343 = vmatmul.mubr.f32.gmra.mxu0 %v2222
        %v2344 = vpop.f32.mrf.mxu0
        %v2345 = vadd.f32 0.0, %v2344
        %v2346 = vpop.f32.mrf.mxu0
        %2347 = vmatprep.mubr.f32.mxu0 0.0
        %2348 = vmatmul.mubr.f32.gmra.mxu0 %v2223
        %v2349 = vpop.f32.mrf.mxu0
        %v2350 = vadd.f32 0.0, %v2349
        %v2351 = vpop.f32.mrf.mxu0
        %2352 = vmatprep.mubr.f32.mxu0 0.0
        %2353 = vmatmul.mubr.f32.gmra.mxu0 %v2224
        %v2354 = vpop.f32.mrf.mxu0
        %v2355 = vadd.f32 0.0, %v2354
        %v2356 = vpop.f32.mrf.mxu0
        %2357 = vmatprep.mubr.f32.mxu0 0.0
        %2358 = vmatmul.mubr.f32.gmra.mxu0 %v2225
        %v2359 = vpop.f32.mrf.mxu0
        %v2360 = vadd.f32 0.0, %v2359
        %v2361 = vpop.f32.mrf.mxu0
        %2362 = vmatprep.mubr.f32.mxu0 0.0
        %2363 = vmatmul.mubr.f32.gmra.mxu0 %v2226
        %v2364 = vpop.f32.mrf.mxu0
        %v2365 = vadd.f32 0.0, %v2364
        %v2366 = vpop.f32.mrf.mxu0
        %2367 = vmatprep.mubr.f32.mxu0 0.0
        %2368 = vmatmul.mubr.f32.gmra.mxu0 %v2227
        %v2369 = vpop.f32.mrf.mxu0
        %v2370 = vadd.f32 0.0, %v2369
        %v2371 = vpop.f32.mrf.mxu0
        %2372 = vdwg.mxu0
        %2373 = vmatprep.subr.mxu0 0.0
        %2374 = vmatpush1.msra.mxu0 %v2370
        %2375 = vmatprep.subr.mxu0 0.0
        %2376 = vmatpush1.msra.mxu0 %v2365
        %2377 = vmatprep.subr.mxu0 0.0
        %2378 = vmatpush1.msra.mxu0 %v2360
        %2379 = vmatprep.subr.mxu0 0.0
        %2380 = vmatpush1.msra.mxu0 %v2355
        %2381 = vmatprep.subr.mxu0 0.0
        %2382 = vmatpush1.msra.mxu0 %v2350
        %2383 = vmatprep.subr.mxu0 0.0
        %2384 = vmatpush1.msra.mxu0 %v2345
        %2385 = vmatprep.subr.mxu0 0.0
        %2386 = vmatpush1.msra.mxu0 %v2340
        %2387 = vmatprep.subr.mxu0 0.0
        %2388 = vmatpush1.msra.mxu0 %v2335
        %2389 = vmatprep.subr.mxu0 0.0
        %2390 = vmatpush1.msra.mxu0 %v2330
        %2391 = vmatprep.subr.mxu0 0.0
        %2392 = vmatpush1.msra.mxu0 %v2325
        %2393 = vmatprep.subr.mxu0 0.0
        %2394 = vmatpush1.msra.mxu0 %v2320
        %2395 = vmatprep.subr.mxu0 0.0
        %2396 = vmatpush1.msra.mxu0 %v2315
        %2397 = vmatprep.subr.mxu0 0.0
        %2398 = vmatpush1.msra.mxu0 %v2310
        %2399 = vmatprep.subr.mxu0 0.0
        %2400 = vmatpush1.msra.mxu0 %v2305
        %2401 = vmatprep.subr.mxu0 0.0
        %2402 = vmatpush1.msra.mxu0 %v2300
        %2403 = vmatprep.subr.mxu0 0.0
        %2404 = vmatpush1.msra.mxu0 %v2295
        %2405 = vmatprep.subr.mxu0 0.0
        %2406 = vmatpush2.msra.mxu0 0.0
        %2407 = vmatprep.subr.mxu0 0.0
        %2408 = vmatpush2.msra.mxu0 0.0
        %2409 = vmatprep.subr.mxu0 0.0
        %2410 = vmatpush2.msra.mxu0 0.0
        %2411 = vmatprep.subr.mxu0 0.0
        %2412 = vmatpush2.msra.mxu0 0.0
        %2413 = vmatprep.subr.mxu0 0.0
        %2414 = vmatpush2.msra.mxu0 0.0
        %2415 = vmatprep.subr.mxu0 0.0
        %2416 = vmatpush2.msra.mxu0 0.0
        %2417 = vmatprep.subr.mxu0 0.0
        %2418 = vmatpush2.msra.mxu0 0.0
        %2419 = vmatprep.subr.mxu0 0.0
        %2420 = vmatpush2.msra.mxu0 0.0
        %2421 = vmatprep.subr.mxu0 0.0
        %2422 = vmatpush2.msra.mxu0 0.0
        %2423 = vmatprep.subr.mxu0 0.0
        %2424 = vmatpush2.msra.mxu0 0.0
        %2425 = vmatprep.subr.mxu0 0.0
        %2426 = vmatpush2.msra.mxu0 0.0
        %2427 = vmatprep.subr.mxu0 0.0
        %2428 = vmatpush2.msra.mxu0 0.0
        %2429 = vmatprep.subr.mxu0 0.0
        %2430 = vmatpush2.msra.mxu0 0.0
        %2431 = vmatprep.subr.mxu0 0.0
        %2432 = vmatpush2.msra.mxu0 0.0
        %2433 = vmatprep.subr.mxu0 0.0
        %2434 = vmatpush2.msra.mxu0 0.0
        %2435 = vmatprep.subr.mxu0 0.0
        %2436 = vmatpush2.msra.mxu0 0.0
        %2437 = vmatprep.mubr.f32.mxu0 0.0
        %2438 = vmatmul.mubr.f32.gmra.mxu0 %v237
        %v2439 = vpop.f32.mrf.mxu0
        %v2440 = vadd.f32 0.0, %v2439
        %v2441 = vpop.f32.mrf.mxu0
        %2442 = vmatprep.mubr.f32.mxu0 0.0
        %2443 = vmatmul.mubr.f32.gmra.mxu0 %v238
        %v2444 = vpop.f32.mrf.mxu0
        %v2445 = vadd.f32 0.0, %v2444
        %v2446 = vpop.f32.mrf.mxu0
        %2447 = vmatprep.mubr.f32.mxu0 0.0
        %2448 = vmatmul.mubr.f32.gmra.mxu0 %v239
        %v2449 = vpop.f32.mrf.mxu0
        %v2450 = vadd.f32 0.0, %v2449
        %v2451 = vpop.f32.mrf.mxu0
        %2452 = vmatprep.mubr.f32.mxu0 0.0
        %2453 = vmatmul.mubr.f32.gmra.mxu0 %v240
        %v2454 = vpop.f32.mrf.mxu0
        %v2455 = vadd.f32 0.0, %v2454
        %v2456 = vpop.f32.mrf.mxu0
        %2457 = vmatprep.mubr.f32.mxu0 0.0
        %2458 = vmatmul.mubr.f32.gmra.mxu0 %v241
        %v2459 = vpop.f32.mrf.mxu0
        %v2460 = vadd.f32 0.0, %v2459
        %v2461 = vpop.f32.mrf.mxu0
        %2462 = vmatprep.mubr.f32.mxu0 0.0
        %2463 = vmatmul.mubr.f32.gmra.mxu0 %v242
        %v2464 = vpop.f32.mrf.mxu0
        %v2465 = vadd.f32 0.0, %v2464
        %v2466 = vpop.f32.mrf.mxu0
        %2467 = vmatprep.mubr.f32.mxu0 0.0
        %2468 = vmatmul.mubr.f32.gmra.mxu0 %v243
        %v2469 = vpop.f32.mrf.mxu0
        %v2470 = vadd.f32 0.0, %v2469
        %v2471 = vpop.f32.mrf.mxu0
        %2472 = vmatprep.mubr.f32.mxu0 0.0
        %2473 = vmatmul.mubr.f32.gmra.mxu0 %v244
        %v2474 = vpop.f32.mrf.mxu0
        %v2475 = vadd.f32 0.0, %v2474
        %v2476 = vpop.f32.mrf.mxu0
        %2477 = vmatprep.mubr.f32.mxu0 0.0
        %2478 = vmatmul.mubr.f32.gmra.mxu0 %v245
        %v2479 = vpop.f32.mrf.mxu0
        %v2480 = vadd.f32 0.0, %v2479
        %v2481 = vpop.f32.mrf.mxu0
        %2482 = vmatprep.mubr.f32.mxu0 0.0
        %2483 = vmatmul.mubr.f32.gmra.mxu0 %v246
        %v2484 = vpop.f32.mrf.mxu0
        %v2485 = vadd.f32 0.0, %v2484
        %v2486 = vpop.f32.mrf.mxu0
        %2487 = vmatprep.mubr.f32.mxu0 0.0
        %2488 = vmatmul.mubr.f32.gmra.mxu0 %v247
        %v2489 = vpop.f32.mrf.mxu0
        %v2490 = vadd.f32 0.0, %v2489
        %v2491 = vpop.f32.mrf.mxu0
        %2492 = vmatprep.mubr.f32.mxu0 0.0
        %2493 = vmatmul.mubr.f32.gmra.mxu0 %v248
        %v2494 = vpop.f32.mrf.mxu0
        %v2495 = vadd.f32 0.0, %v2494
        %v2496 = vpop.f32.mrf.mxu0
        %2497 = vmatprep.mubr.f32.mxu0 0.0
        %2498 = vmatmul.mubr.f32.gmra.mxu0 %v249
        %v2499 = vpop.f32.mrf.mxu0
        %v2500 = vadd.f32 0.0, %v2499
        %v2501 = vpop.f32.mrf.mxu0
        %2502 = vmatprep.mubr.f32.mxu0 0.0
        %2503 = vmatmul.mubr.f32.gmra.mxu0 %v250
        %v2504 = vpop.f32.mrf.mxu0
        %v2505 = vadd.f32 0.0, %v2504
        %v2506 = vpop.f32.mrf.mxu0
        %2507 = vmatprep.mubr.f32.mxu0 0.0
        %2508 = vmatmul.mubr.f32.gmra.mxu0 %v251
        %v2509 = vpop.f32.mrf.mxu0
        %v2510 = vadd.f32 0.0, %v2509
        %v2511 = vpop.f32.mrf.mxu0
        %2512 = vmatprep.mubr.f32.mxu0 0.0
        %2513 = vmatmul.mubr.f32.gmra.mxu0 %v252
        %v2514 = vpop.f32.mrf.mxu0
        %v2515 = vadd.f32 0.0, %v2514
        %v2516 = vpop.f32.mrf.mxu0
        %2517 = vdwg.mxu0
        %s2518 = scalar_lea.vmem %s234, 768 [#allocation8]
        %2519 = vst [vmem:[%s2518] sm:$0xff] %v2440
        %2520 = vst [vmem:[%s2518 + $0x8] sm:$0xff] %v2445
        %2521 = vst [vmem:[%s2518 + $0x10] sm:$0xff] %v2450
        %2522 = vst [vmem:[%s2518 + $0x18] sm:$0xff] %v2455
        %2523 = vst [vmem:[%s2518 + $0x20] sm:$0xff] %v2460
        %2524 = vst [vmem:[%s2518 + $0x28] sm:$0xff] %v2465
        %2525 = vst [vmem:[%s2518 + $0x30] sm:$0xff] %v2470
        %2526 = vst [vmem:[%s2518 + $0x38] sm:$0xff] %v2475
        %2527 = vst [vmem:[%s2518 + $0x40] sm:$0xff] %v2480
        %2528 = vst [vmem:[%s2518 + $0x48] sm:$0xff] %v2485
        %2529 = vst [vmem:[%s2518 + $0x50] sm:$0xff] %v2490
        %2530 = vst [vmem:[%s2518 + $0x58] sm:$0xff] %v2495
        %2531 = vst [vmem:[%s2518 + $0x60] sm:$0xff] %v2500
        %2532 = vst [vmem:[%s2518 + $0x68] sm:$0xff] %v2505
        %2533 = vst [vmem:[%s2518 + $0x70] sm:$0xff] %v2510
        %2534 = vst [vmem:[%s2518 + $0x78] sm:$0xff] %v2515
        %s2535 = scalar_lea.vmem %s212, 896 [#allocation7]
        %v2536 = vld [vmem:[%s2535] sm:$0xff]
        %v2537 = vld [vmem:[%s2535 + $0x8] sm:$0xff]
        %v2538 = vld [vmem:[%s2535 + $0x10] sm:$0xff]
        %v2539 = vld [vmem:[%s2535 + $0x18] sm:$0xff]
        %v2540 = vld [vmem:[%s2535 + $0x20] sm:$0xff]
        %v2541 = vld [vmem:[%s2535 + $0x28] sm:$0xff]
        %v2542 = vld [vmem:[%s2535 + $0x30] sm:$0xff]
        %v2543 = vld [vmem:[%s2535 + $0x38] sm:$0xff]
        %v2544 = vld [vmem:[%s2535 + $0x40] sm:$0xff]
        %v2545 = vld [vmem:[%s2535 + $0x48] sm:$0xff]
        %v2546 = vld [vmem:[%s2535 + $0x50] sm:$0xff]
        %v2547 = vld [vmem:[%s2535 + $0x58] sm:$0xff]
        %v2548 = vld [vmem:[%s2535 + $0x60] sm:$0xff]
        %v2549 = vld [vmem:[%s2535 + $0x68] sm:$0xff]
        %v2550 = vld [vmem:[%s2535 + $0x70] sm:$0xff]
        %v2551 = vld [vmem:[%s2535 + $0x78] sm:$0xff]
        %2552 = vmatprep.subr.mxu0 0.0
        %2553 = vmatpush1.msra.mxu0 %v268
        %2554 = vmatprep.subr.mxu0 0.0
        %2555 = vmatpush1.msra.mxu0 %v267
        %2556 = vmatprep.subr.mxu0 0.0
        %2557 = vmatpush1.msra.mxu0 %v266
        %2558 = vmatprep.subr.mxu0 0.0
        %2559 = vmatpush1.msra.mxu0 %v265
        %2560 = vmatprep.subr.mxu0 0.0
        %2561 = vmatpush1.msra.mxu0 %v264
        %2562 = vmatprep.subr.mxu0 0.0
        %2563 = vmatpush1.msra.mxu0 %v263
        %2564 = vmatprep.subr.mxu0 0.0
        %2565 = vmatpush1.msra.mxu0 %v262
        %2566 = vmatprep.subr.mxu0 0.0
        %2567 = vmatpush1.msra.mxu0 %v261
        %2568 = vmatprep.subr.mxu0 0.0
        %2569 = vmatpush1.msra.mxu0 %v260
        %2570 = vmatprep.subr.mxu0 0.0
        %2571 = vmatpush1.msra.mxu0 %v259
        %2572 = vmatprep.subr.mxu0 0.0
        %2573 = vmatpush1.msra.mxu0 %v258
        %2574 = vmatprep.subr.mxu0 0.0
        %2575 = vmatpush1.msra.mxu0 %v257
        %2576 = vmatprep.subr.mxu0 0.0
        %2577 = vmatpush1.msra.mxu0 %v256
        %2578 = vmatprep.subr.mxu0 0.0
        %2579 = vmatpush1.msra.mxu0 %v255
        %2580 = vmatprep.subr.mxu0 0.0
        %2581 = vmatpush1.msra.mxu0 %v254
        %2582 = vmatprep.subr.mxu0 0.0
        %2583 = vmatpush1.msra.mxu0 %v253
        %2584 = vmatprep.subr.mxu0 0.0
        %2585 = vmatpush2.msra.mxu0 0.0
        %2586 = vmatprep.subr.mxu0 0.0
        %2587 = vmatpush2.msra.mxu0 0.0
        %2588 = vmatprep.subr.mxu0 0.0
        %2589 = vmatpush2.msra.mxu0 0.0
        %2590 = vmatprep.subr.mxu0 0.0
        %2591 = vmatpush2.msra.mxu0 0.0
        %2592 = vmatprep.subr.mxu0 0.0
        %2593 = vmatpush2.msra.mxu0 0.0
        %2594 = vmatprep.subr.mxu0 0.0
        %2595 = vmatpush2.msra.mxu0 0.0
        %2596 = vmatprep.subr.mxu0 0.0
        %2597 = vmatpush2.msra.mxu0 0.0
        %2598 = vmatprep.subr.mxu0 0.0
        %2599 = vmatpush2.msra.mxu0 0.0
        %2600 = vmatprep.subr.mxu0 0.0
        %2601 = vmatpush2.msra.mxu0 0.0
        %2602 = vmatprep.subr.mxu0 0.0
        %2603 = vmatpush2.msra.mxu0 0.0
        %2604 = vmatprep.subr.mxu0 0.0
        %2605 = vmatpush2.msra.mxu0 0.0
        %2606 = vmatprep.subr.mxu0 0.0
        %2607 = vmatpush2.msra.mxu0 0.0
        %2608 = vmatprep.subr.mxu0 0.0
        %2609 = vmatpush2.msra.mxu0 0.0
        %2610 = vmatprep.subr.mxu0 0.0
        %2611 = vmatpush2.msra.mxu0 0.0
        %2612 = vmatprep.subr.mxu0 0.0
        %2613 = vmatpush2.msra.mxu0 0.0
        %2614 = vmatprep.subr.mxu0 0.0
        %2615 = vmatpush2.msra.mxu0 0.0
        %2616 = vmatprep.mubr.f32.mxu0 0.0
        %2617 = vmatmul.mubr.f32.gmra.mxu0 %v2536
        %v2618 = vpop.f32.mrf.mxu0
        %v2619 = vadd.f32 0.0, %v2618
        %v2620 = vpop.f32.mrf.mxu0
        %2621 = vmatprep.mubr.f32.mxu0 0.0
        %2622 = vmatmul.mubr.f32.gmra.mxu0 %v2537
        %v2623 = vpop.f32.mrf.mxu0
        %v2624 = vadd.f32 0.0, %v2623
        %v2625 = vpop.f32.mrf.mxu0
        %2626 = vmatprep.mubr.f32.mxu0 0.0
        %2627 = vmatmul.mubr.f32.gmra.mxu0 %v2538
        %v2628 = vpop.f32.mrf.mxu0
        %v2629 = vadd.f32 0.0, %v2628
        %v2630 = vpop.f32.mrf.mxu0
        %2631 = vmatprep.mubr.f32.mxu0 0.0
        %2632 = vmatmul.mubr.f32.gmra.mxu0 %v2539
        %v2633 = vpop.f32.mrf.mxu0
        %v2634 = vadd.f32 0.0, %v2633
        %v2635 = vpop.f32.mrf.mxu0
        %2636 = vmatprep.mubr.f32.mxu0 0.0
        %2637 = vmatmul.mubr.f32.gmra.mxu0 %v2540
        %v2638 = vpop.f32.mrf.mxu0
        %v2639 = vadd.f32 0.0, %v2638
        %v2640 = vpop.f32.mrf.mxu0
        %2641 = vmatprep.mubr.f32.mxu0 0.0
        %2642 = vmatmul.mubr.f32.gmra.mxu0 %v2541
        %v2643 = vpop.f32.mrf.mxu0
        %v2644 = vadd.f32 0.0, %v2643
        %v2645 = vpop.f32.mrf.mxu0
        %2646 = vmatprep.mubr.f32.mxu0 0.0
        %2647 = vmatmul.mubr.f32.gmra.mxu0 %v2542
        %v2648 = vpop.f32.mrf.mxu0
        %v2649 = vadd.f32 0.0, %v2648
        %v2650 = vpop.f32.mrf.mxu0
        %2651 = vmatprep.mubr.f32.mxu0 0.0
        %2652 = vmatmul.mubr.f32.gmra.mxu0 %v2543
        %v2653 = vpop.f32.mrf.mxu0
        %v2654 = vadd.f32 0.0, %v2653
        %v2655 = vpop.f32.mrf.mxu0
        %2656 = vmatprep.mubr.f32.mxu0 0.0
        %2657 = vmatmul.mubr.f32.gmra.mxu0 %v2544
        %v2658 = vpop.f32.mrf.mxu0
        %v2659 = vadd.f32 0.0, %v2658
        %v2660 = vpop.f32.mrf.mxu0
        %2661 = vmatprep.mubr.f32.mxu0 0.0
        %2662 = vmatmul.mubr.f32.gmra.mxu0 %v2545
        %v2663 = vpop.f32.mrf.mxu0
        %v2664 = vadd.f32 0.0, %v2663
        %v2665 = vpop.f32.mrf.mxu0
        %2666 = vmatprep.mubr.f32.mxu0 0.0
        %2667 = vmatmul.mubr.f32.gmra.mxu0 %v2546
        %v2668 = vpop.f32.mrf.mxu0
        %v2669 = vadd.f32 0.0, %v2668
        %v2670 = vpop.f32.mrf.mxu0
        %2671 = vmatprep.mubr.f32.mxu0 0.0
        %2672 = vmatmul.mubr.f32.gmra.mxu0 %v2547
        %v2673 = vpop.f32.mrf.mxu0
        %v2674 = vadd.f32 0.0, %v2673
        %v2675 = vpop.f32.mrf.mxu0
        %2676 = vmatprep.mubr.f32.mxu0 0.0
        %2677 = vmatmul.mubr.f32.gmra.mxu0 %v2548
        %v2678 = vpop.f32.mrf.mxu0
        %v2679 = vadd.f32 0.0, %v2678
        %v2680 = vpop.f32.mrf.mxu0
        %2681 = vmatprep.mubr.f32.mxu0 0.0
        %2682 = vmatmul.mubr.f32.gmra.mxu0 %v2549
        %v2683 = vpop.f32.mrf.mxu0
        %v2684 = vadd.f32 0.0, %v2683
        %v2685 = vpop.f32.mrf.mxu0
        %2686 = vmatprep.mubr.f32.mxu0 0.0
        %2687 = vmatmul.mubr.f32.gmra.mxu0 %v2550
        %v2688 = vpop.f32.mrf.mxu0
        %v2689 = vadd.f32 0.0, %v2688
        %v2690 = vpop.f32.mrf.mxu0
        %2691 = vmatprep.mubr.f32.mxu0 0.0
        %2692 = vmatmul.mubr.f32.gmra.mxu0 %v2551
        %v2693 = vpop.f32.mrf.mxu0
        %v2694 = vadd.f32 0.0, %v2693
        %v2695 = vpop.f32.mrf.mxu0
        %2696 = vdwg.mxu0
        %2697 = vmatprep.subr.mxu0 0.0
        %2698 = vmatpush1.msra.mxu0 %v2694
        %2699 = vmatprep.subr.mxu0 0.0
        %2700 = vmatpush1.msra.mxu0 %v2689
        %2701 = vmatprep.subr.mxu0 0.0
        %2702 = vmatpush1.msra.mxu0 %v2684
        %2703 = vmatprep.subr.mxu0 0.0
        %2704 = vmatpush1.msra.mxu0 %v2679
        %2705 = vmatprep.subr.mxu0 0.0
        %2706 = vmatpush1.msra.mxu0 %v2674
        %2707 = vmatprep.subr.mxu0 0.0
        %2708 = vmatpush1.msra.mxu0 %v2669
        %2709 = vmatprep.subr.mxu0 0.0
        %2710 = vmatpush1.msra.mxu0 %v2664
        %2711 = vmatprep.subr.mxu0 0.0
        %2712 = vmatpush1.msra.mxu0 %v2659
        %2713 = vmatprep.subr.mxu0 0.0
        %2714 = vmatpush1.msra.mxu0 %v2654
        %2715 = vmatprep.subr.mxu0 0.0
        %2716 = vmatpush1.msra.mxu0 %v2649
        %2717 = vmatprep.subr.mxu0 0.0
        %2718 = vmatpush1.msra.mxu0 %v2644
        %2719 = vmatprep.subr.mxu0 0.0
        %2720 = vmatpush1.msra.mxu0 %v2639
        %2721 = vmatprep.subr.mxu0 0.0
        %2722 = vmatpush1.msra.mxu0 %v2634
        %2723 = vmatprep.subr.mxu0 0.0
        %2724 = vmatpush1.msra.mxu0 %v2629
        %2725 = vmatprep.subr.mxu0 0.0
        %2726 = vmatpush1.msra.mxu0 %v2624
        %2727 = vmatprep.subr.mxu0 0.0
        %2728 = vmatpush1.msra.mxu0 %v2619
        %2729 = vmatprep.subr.mxu0 0.0
        %2730 = vmatpush2.msra.mxu0 0.0
        %2731 = vmatprep.subr.mxu0 0.0
        %2732 = vmatpush2.msra.mxu0 0.0
        %2733 = vmatprep.subr.mxu0 0.0
        %2734 = vmatpush2.msra.mxu0 0.0
        %2735 = vmatprep.subr.mxu0 0.0
        %2736 = vmatpush2.msra.mxu0 0.0
        %2737 = vmatprep.subr.mxu0 0.0
        %2738 = vmatpush2.msra.mxu0 0.0
        %2739 = vmatprep.subr.mxu0 0.0
        %2740 = vmatpush2.msra.mxu0 0.0
        %2741 = vmatprep.subr.mxu0 0.0
        %2742 = vmatpush2.msra.mxu0 0.0
        %2743 = vmatprep.subr.mxu0 0.0
        %2744 = vmatpush2.msra.mxu0 0.0
        %2745 = vmatprep.subr.mxu0 0.0
        %2746 = vmatpush2.msra.mxu0 0.0
        %2747 = vmatprep.subr.mxu0 0.0
        %2748 = vmatpush2.msra.mxu0 0.0
        %2749 = vmatprep.subr.mxu0 0.0
        %2750 = vmatpush2.msra.mxu0 0.0
        %2751 = vmatprep.subr.mxu0 0.0
        %2752 = vmatpush2.msra.mxu0 0.0
        %2753 = vmatprep.subr.mxu0 0.0
        %2754 = vmatpush2.msra.mxu0 0.0
        %2755 = vmatprep.subr.mxu0 0.0
        %2756 = vmatpush2.msra.mxu0 0.0
        %2757 = vmatprep.subr.mxu0 0.0
        %2758 = vmatpush2.msra.mxu0 0.0
        %2759 = vmatprep.subr.mxu0 0.0
        %2760 = vmatpush2.msra.mxu0 0.0
        %2761 = vmatprep.mubr.f32.mxu0 0.0
        %2762 = vmatmul.mubr.f32.gmra.mxu0 %v237
        %v2763 = vpop.f32.mrf.mxu0
        %v2764 = vadd.f32 0.0, %v2763
        %v2765 = vpop.f32.mrf.mxu0
        %2766 = vmatprep.mubr.f32.mxu0 0.0
        %2767 = vmatmul.mubr.f32.gmra.mxu0 %v238
        %v2768 = vpop.f32.mrf.mxu0
        %v2769 = vadd.f32 0.0, %v2768
        %v2770 = vpop.f32.mrf.mxu0
        %2771 = vmatprep.mubr.f32.mxu0 0.0
        %2772 = vmatmul.mubr.f32.gmra.mxu0 %v239
        %v2773 = vpop.f32.mrf.mxu0
        %v2774 = vadd.f32 0.0, %v2773
        %v2775 = vpop.f32.mrf.mxu0
        %2776 = vmatprep.mubr.f32.mxu0 0.0
        %2777 = vmatmul.mubr.f32.gmra.mxu0 %v240
        %v2778 = vpop.f32.mrf.mxu0
        %v2779 = vadd.f32 0.0, %v2778
        %v2780 = vpop.f32.mrf.mxu0
        %2781 = vmatprep.mubr.f32.mxu0 0.0
        %2782 = vmatmul.mubr.f32.gmra.mxu0 %v241
        %v2783 = vpop.f32.mrf.mxu0
        %v2784 = vadd.f32 0.0, %v2783
        %v2785 = vpop.f32.mrf.mxu0
        %2786 = vmatprep.mubr.f32.mxu0 0.0
        %2787 = vmatmul.mubr.f32.gmra.mxu0 %v242
        %v2788 = vpop.f32.mrf.mxu0
        %v2789 = vadd.f32 0.0, %v2788
        %v2790 = vpop.f32.mrf.mxu0
        %2791 = vmatprep.mubr.f32.mxu0 0.0
        %2792 = vmatmul.mubr.f32.gmra.mxu0 %v243
        %v2793 = vpop.f32.mrf.mxu0
        %v2794 = vadd.f32 0.0, %v2793
        %v2795 = vpop.f32.mrf.mxu0
        %2796 = vmatprep.mubr.f32.mxu0 0.0
        %2797 = vmatmul.mubr.f32.gmra.mxu0 %v244
        %v2798 = vpop.f32.mrf.mxu0
        %v2799 = vadd.f32 0.0, %v2798
        %v2800 = vpop.f32.mrf.mxu0
        %2801 = vmatprep.mubr.f32.mxu0 0.0
        %2802 = vmatmul.mubr.f32.gmra.mxu0 %v245
        %v2803 = vpop.f32.mrf.mxu0
        %v2804 = vadd.f32 0.0, %v2803
        %v2805 = vpop.f32.mrf.mxu0
        %2806 = vmatprep.mubr.f32.mxu0 0.0
        %2807 = vmatmul.mubr.f32.gmra.mxu0 %v246
        %v2808 = vpop.f32.mrf.mxu0
        %v2809 = vadd.f32 0.0, %v2808
        %v2810 = vpop.f32.mrf.mxu0
        %2811 = vmatprep.mubr.f32.mxu0 0.0
        %2812 = vmatmul.mubr.f32.gmra.mxu0 %v247
        %v2813 = vpop.f32.mrf.mxu0
        %v2814 = vadd.f32 0.0, %v2813
        %v2815 = vpop.f32.mrf.mxu0
        %2816 = vmatprep.mubr.f32.mxu0 0.0
        %2817 = vmatmul.mubr.f32.gmra.mxu0 %v248
        %v2818 = vpop.f32.mrf.mxu0
        %v2819 = vadd.f32 0.0, %v2818
        %v2820 = vpop.f32.mrf.mxu0
        %2821 = vmatprep.mubr.f32.mxu0 0.0
        %2822 = vmatmul.mubr.f32.gmra.mxu0 %v249
        %v2823 = vpop.f32.mrf.mxu0
        %v2824 = vadd.f32 0.0, %v2823
        %v2825 = vpop.f32.mrf.mxu0
        %2826 = vmatprep.mubr.f32.mxu0 0.0
        %2827 = vmatmul.mubr.f32.gmra.mxu0 %v250
        %v2828 = vpop.f32.mrf.mxu0
        %v2829 = vadd.f32 0.0, %v2828
        %v2830 = vpop.f32.mrf.mxu0
        %2831 = vmatprep.mubr.f32.mxu0 0.0
        %2832 = vmatmul.mubr.f32.gmra.mxu0 %v251
        %v2833 = vpop.f32.mrf.mxu0
        %v2834 = vadd.f32 0.0, %v2833
        %v2835 = vpop.f32.mrf.mxu0
        %2836 = vmatprep.mubr.f32.mxu0 0.0
        %2837 = vmatmul.mubr.f32.gmra.mxu0 %v252
        %v2838 = vpop.f32.mrf.mxu0
        %v2839 = vadd.f32 0.0, %v2838
        %v2840 = vpop.f32.mrf.mxu0
        %2841 = vdwg.mxu0
        %s2842 = scalar_lea.vmem %s234, 896 [#allocation8]
        %2843 = vst [vmem:[%s2842] sm:$0xff] %v2764
        %2844 = vst [vmem:[%s2842 + $0x8] sm:$0xff] %v2769
        %2845 = vst [vmem:[%s2842 + $0x10] sm:$0xff] %v2774
        %2846 = vst [vmem:[%s2842 + $0x18] sm:$0xff] %v2779
        %2847 = vst [vmem:[%s2842 + $0x20] sm:$0xff] %v2784
        %2848 = vst [vmem:[%s2842 + $0x28] sm:$0xff] %v2789
        %2849 = vst [vmem:[%s2842 + $0x30] sm:$0xff] %v2794
        %2850 = vst [vmem:[%s2842 + $0x38] sm:$0xff] %v2799
        %2851 = vst [vmem:[%s2842 + $0x40] sm:$0xff] %v2804
        %2852 = vst [vmem:[%s2842 + $0x48] sm:$0xff] %v2809
        %2853 = vst [vmem:[%s2842 + $0x50] sm:$0xff] %v2814
        %2854 = vst [vmem:[%s2842 + $0x58] sm:$0xff] %v2819
        %2855 = vst [vmem:[%s2842 + $0x60] sm:$0xff] %v2824
        %2856 = vst [vmem:[%s2842 + $0x68] sm:$0xff] %v2829
        %2857 = vst [vmem:[%s2842 + $0x70] sm:$0xff] %v2834
        %2858 = vst [vmem:[%s2842 + $0x78] sm:$0xff] %v2839
        %s2859 = sand.u32 %s111, 1
        %s2860 = scalar_lea.sflag [#allocation4], %s2859
        %s2861 = sand.u32 %s111, 1
        %s2862 = smul.addr %s2861, 1024
        %s2863 = scalar_lea.vmem [#allocation8], %s2862
        // Predicated region
        $region45: #{tpu_custom_call.1} parent=31 // pred_check
          %p2864 = pneg %p121
        $region46: #{tpu_custom_call.1} parent=31 // pred_check_branch
          %2866 = sbr.rel (%p2864) target = $region48
        $region47: #{tpu_custom_call.1} parent=31 // pred_region
          %s2867 = smul.u32 8, %s24
          %s2869 = ssub.s32 16384, 16384
          %2870 = vsyncadd %s2860, %s2869
          %s2871 = smul.addr %s2867, 16
          %s2872 = smul.addr %s23, 128
          %s2873 = sadd.s32 %s2871, %s2872
          %s2874 = smul.addr %s2873, 128
          %s2875 = scalar_lea.hbm %s3, %s2874
          %s2876 = sshll.u32 %s2863, 4
          %s2877 = int_to_ptr.vmem [resolvable:$true] %s2876
          %2882 = dma.vmem_to_hbm [thread:$0]  %s2877, 16384, %s2875, %s2860, 128, 128, 8
        $region48: #{tpu_custom_call.1} parent=31 // pred_fallthru
          _
      $region32: #{tpu_custom_call.1} parent=5 // pred_fallthru
        _
      %p2883 = scmp.le.s32.totalorder 2, %s14
      // Predicated region
      $region49: #{tpu_custom_call.1} parent=5 // pred_check
        %p2884 = pneg %p2883
      $region50: #{tpu_custom_call.1} parent=5 // pred_check_branch
        %2886 = sbr.rel (%p2884) target = $region52
      $region51: #{tpu_custom_call.1} parent=5 // pred_region
        %s2887 = ssub.s32 %s14, 2
        // Predicated region
        $region53: #{tpu_custom_call.1} parent=51 // pred_check
          %p2888 = pneg %p127
        $region54: #{tpu_custom_call.1} parent=51 // pred_check_branch
          %2890 = sbr.rel (%p2888) target = $region56
        $region55: #{tpu_custom_call.1} parent=51 // pred_region
          %s2891 = sand.u32 %s112, 1
          %s2892 = scalar_lea.sflag [#allocation4], %s2891
          %s2893 = sand.u32 %s112, 1
          %s2894 = smul.addr %s2893, 1024
          %s2895 = scalar_lea.vmem [#allocation8], %s2894
          %2896 = dma.done %s2892, 16384
        $region56: #{tpu_custom_call.1} parent=51 // pred_fallthru
          _
      $region52: #{tpu_custom_call.1} parent=5 // pred_fallthru
        _
    $region6: #{tpu_custom_call.1} parent=1 // loop_footer
      %s18 = sadd.s32 1, %s14
    $region7: #{tpu_custom_call.1} parent=1 // loop_footer_branch
      %13 = sbr.rel target = $region3
    $region8: #{tpu_custom_call.1} parent=1 // loop_exit
      _
    %2897 = vsyncpa [#allocation3], 1
    %s2898 = scalar_lea.sflag [#allocation3], 1
    %2899 = vsyncpa %s2898, 1
    %2900 = vsyncpa [#allocation6], 1
    %2901 = vsyncpa [#allocation4], 1
    %s2902 = scalar_lea.sflag [#allocation4], 1
    %2903 = vsyncpa %s2902, 1

</llo_original>
